<compile_context>
chip_gen: v7x
topology: tpu7x:2x2x1
jax: 0.10.0
libtpu: 0.0.40
codegen_flags: <defaults>
</compile_context>

<pallas_src>
import jax
import jax.numpy as jnp
from jax import lax
from jax.experimental import pallas as pl
from jax.experimental.pallas import tpu as pltpu

LANE = 128
SUBLANE = 8


def _round_up(x, m):
    return (x + m - 1) // m * m


# ----------------------------------------------------------------------------
# Fused kernel: LSTM stack (recurrence in-kernel) + MLP head.
# Gate order follows PyTorch nn.LSTM: [i, f, g, o].
# ----------------------------------------------------------------------------
def make_lstm_jun_kernel(T, Bp, H, num_layers, mm_dtype):
    def kernel(*refs):
        idx = 0
        x_ref = refs[idx]; idx += 1                       # (T*Bp, I)
        layer_refs = []
        for _ in range(num_layers):
            layer_refs.append((refs[idx], refs[idx + 1], refs[idx + 2]))
            idx += 3                                      # wih_t (in,4H), whh_t (H,4H), bias (1,4H)
        (w1_ref, b1_ref, w2_ref, b2_ref,
         w3_ref, b3_ref, w4_ref, b4_ref) = refs[idx:idx + 8]
        idx += 8
        out_ref = refs[idx]; idx += 1                     # (num_layers*Bp, Cp)
        xg_sc, seq_sc, hn_sc = refs[idx:idx + 3]          # (T*Bp,4H), (T*Bp,H), (num_layers*Bp,H)

        def mm(a, w_ref):
            return jnp.dot(a.astype(mm_dtype), w_ref[...],
                           preferred_element_type=jnp.float32)

        # Fused-activation constants (hoisted out of all loops, full (Bp,4H) vregs):
        # sigmoid(x) = 0.5*tanh(0.5*x)+0.5 for i/f/o lanes, plain tanh for g lanes.
        lanes = lax.broadcasted_iota(jnp.int32, (Bp, 4 * H), 1)
        is_g = jnp.logical_and(lanes >= 2 * H, lanes < 3 * H)
        pre = jnp.where(is_g, 1.0, 0.5).astype(jnp.float32)
        post_a = pre
        post_b = jnp.where(is_g, 0.0, 0.5).astype(jnp.float32)

        for l in range(num_layers):
            wih_ref, whh_ref, bias_ref = layer_refs[l]

            # Hoisted input projection for ALL timesteps: one lane-dense matmul,
            # written straight into the (T*Bp, 4H) slab (no per-gate split).
            inp = x_ref[...] if l == 0 else seq_sc[...]
            xg_sc[...] = mm(inp, wih_ref) + bias_ref[...]

            # Fused-gate recurrent weight, loaded once per layer: (H, 4H).
            whh = whh_ref[...]

            write_seq = l < num_layers - 1   # last layer's sequence is never consumed

            h = jnp.zeros((Bp, H), jnp.float32)
            c = jnp.zeros((Bp, H), jnp.float32)

            # Static Python unroll: all scratch offsets are compile-time constants.
            for t in range(T):
                xg_t = xg_sc[t * Bp:(t + 1) * Bp, :]                      # (Bp, 4H)
                s = xg_t + jnp.dot(h.astype(mm_dtype), whh,
                                   preferred_element_type=jnp.float32)    # (Bp, 4H)
                act = jnp.tanh(s * pre) * post_a + post_b                 # one EUP pass
                i_g = act[:, 0 * H:1 * H]
                f_g = act[:, 1 * H:2 * H]
                g_g = act[:, 2 * H:3 * H]
                o_g = act[:, 3 * H:4 * H]
                c = f_g * c + i_g * g_g
                h = o_g * jnp.tanh(c)
                if write_seq:
                    seq_sc[t * Bp:(t + 1) * Bp, :] = h

            # hn for this layer -> MLP input slab (PyTorch hn.view(-1, H) ordering).
            hn_sc[l * Bp:(l + 1) * Bp, :] = h

        # MLP head: relu(hn) -> L1 -> relu -> L2 -> relu -> L3 -> relu -> L_out
        z = jnp.maximum(hn_sc[...], 0.0)
        z = jnp.maximum(mm(z, w1_ref) + b1_ref[...], 0.0)
        z = jnp.maximum(mm(z, w2_ref) + b2_ref[...], 0.0)
        z = jnp.maximum(mm(z, w3_ref) + b3_ref[...], 0.0)
        out_ref[...] = mm(z, w4_ref) + b4_ref[...]

    return kernel


# ----------------------------------------------------------------------------
# Parameter init (PyTorch layout) + one-time conversion to kernel layout.
# ----------------------------------------------------------------------------
def init_params(key, input_size, hidden_size, num_layers, num_classes):
    params = {"lstm": []}
    k = 1.0 / jnp.sqrt(hidden_size)

    def uni(key, shape, bound):
        return jax.random.uniform(key, shape, jnp.float32, -bound, bound)

    for layer in range(num_layers):
        in_sz = input_size if layer == 0 else hidden_size
        key, k1, k2, k3, k4 = jax.random.split(key, 5)
        params["lstm"].append(dict(
            w_ih=uni(k1, (4 * hidden_size, in_sz), k),
            w_hh=uni(k2, (4 * hidden_size, hidden_size), k),
            b_ih=uni(k3, (4 * hidden_size,), k),
            b_hh=uni(k4, (4 * hidden_size,), k),
        ))

    def linear(key, in_f, out_f):
        key, k1, k2 = jax.random.split(key, 3)
        bound = 1.0 / jnp.sqrt(in_f)
        return key, (uni(k1, (out_f, in_f), bound), uni(k2, (out_f,), bound))

    key, params["layer_1"] = linear(key, hidden_size, 256)
    key, params["layer_2"] = linear(key, 256, 256)
    key, params["layer_3"] = linear(key, 256, 128)
    key, params["layer_out"] = linear(key, 128, num_classes)
    return params


def prepare_params(raw, matmul_dtype=jnp.float32):
    """One-time: pre-transpose (lane-dense 4H / lane-dense output), combine biases,
    pad the head output to 128 lanes, and (optionally) pre-cast weights to bf16.
    Biases and all in-kernel elementwise state stay f32."""
    H = raw["lstm"][0]["w_hh"].shape[1]
    C = raw["layer_out"][0].shape[0]
    Cp = _round_up(C, LANE)

    lstm = []
    for p in raw["lstm"]:
        lstm.append(dict(
            wih_t=p["w_ih"].T.astype(matmul_dtype),                 # (in, 4H)
            whh_t=p["w_hh"].T.astype(matmul_dtype),                 # (H, 4H) fused gates
            bias=(p["b_ih"] + p["b_hh"]).reshape(1, 4 * H).astype(jnp.float32),
        ))

    w1, b1 = raw["layer_1"]
    w2, b2 = raw["layer_2"]
    w3, b3 = raw["layer_3"]
    w4, b4 = raw["layer_out"]
    head = dict(
        w1_t=w1.T.astype(matmul_dtype), b1=b1.reshape(1, -1).astype(jnp.float32),
        w2_t=w2.T.astype(matmul_dtype), b2=b2.reshape(1, -1).astype(jnp.float32),
        w3_t=w3.T.astype(matmul_dtype), b3=b3.reshape(1, -1).astype(jnp.float32),
        w4_t=jnp.pad(w4.T, ((0, 0), (0, Cp - C))).astype(matmul_dtype),
        b4=jnp.pad(b4.reshape(1, -1), ((0, 0), (0, Cp - C))).astype(jnp.float32),
    )
    return dict(lstm=lstm, head=head, hidden_size=H, num_classes=C,
                matmul_dtype=matmul_dtype)


# ----------------------------------------------------------------------------
# Forward wrapper: one fused pallas_call (no grid, whole arrays resident in VMEM).
# ----------------------------------------------------------------------------
def lstm_jun_forward(params, x_bti):
    # x_bti: (B, T, input_size), batch_first as in the PyTorch module.
    # Note: the PyTorch forward contains `nn.Sequential(nn.ReLU(), nn.Linear())`,
    #       a dead (and invalid) statement; it is intentionally skipped.
    lstm_params = params["lstm"]
    head = params["head"]
    num_layers = len(lstm_params)
    H = params["hidden_size"]
    C = params["num_classes"]
    Cp = head["w4_t"].shape[-1]
    mm_dtype = params["matmul_dtype"]

    B, T, I = x_bti.shape
    Bp = _round_up(max(B, 1), SUBLANE)

    # time-major, batch padded to full sublane groups, flattened for the hoisted
    # projection (single fused expression; XLA fuses transpose+pad+reshape).
    x_flat = jnp.pad(jnp.transpose(x_bti, (1, 0, 2)),
                     ((0, 0), (0, Bp - B), (0, 0))).reshape(T * Bp, I)
    x_flat = x_flat.astype(jnp.float32)

    args = [x_flat]
    for p in lstm_params:
        args += [p["wih_t"], p["whh_t"], p["bias"]]
    args += [head["w1_t"], head["b1"], head["w2_t"], head["b2"],
             head["w3_t"], head["b3"], head["w4_t"], head["b4"]]

    def vmem_spec():
        return pl.BlockSpec(memory_space=pltpu.MemorySpace.VMEM)

    scratch_shapes = [
        pltpu.VMEM((T * Bp, 4 * H), jnp.float32),        # hoisted gate pre-activations
        pltpu.VMEM((T * Bp, H), jnp.float32),            # layer output sequence
        pltpu.VMEM((num_layers * Bp, H), jnp.float32),   # stacked hn
    ]

    # VMEM limit sized from the actual footprint (inputs + output + scratch), 2x headroom.
    total_bytes = sum(int(a.size) * a.dtype.itemsize for a in args)
    total_bytes += num_layers * Bp * Cp * 4                              # output
    total_bytes += (T * Bp * 4 * H + T * Bp * H + num_layers * Bp * H) * 4  # scratch
    vmem_limit = max(4 * 1024 * 1024, _round_up(2 * total_bytes, 1024 * 1024))

    out_pad = pl.pallas_call(
        make_lstm_jun_kernel(T, Bp, H, num_layers, mm_dtype),
        out_shape=jax.ShapeDtypeStruct((num_layers * Bp, Cp), jnp.float32),
        in_specs=[vmem_spec() for _ in args],
        out_specs=vmem_spec(),
        scratch_shapes=scratch_shapes,
        compiler_params=pltpu.CompilerParams(vmem_limit_bytes=vmem_limit),
    )(*args)

    # strip batch / class padding: rows [l*Bp : l*Bp+B] per layer, first C lanes.
    out = out_pad.reshape(num_layers, Bp, Cp)[:, :B, :C]
    return out.reshape(num_layers * B, C)


# ----------------------------------------------------------------------------
# Pure-JAX reference (PyTorch-layout params) for the correctness self-check.
# ----------------------------------------------------------------------------
def reference_forward(raw, x_bti):
    B = x_bti.shape[0]
    x = jnp.transpose(x_bti, (1, 0, 2))                   # (T, B, I)
    hns = []
    for p in raw["lstm"]:
        w_ih, w_hh, b_ih, b_hh = p["w_ih"], p["w_hh"], p["b_ih"], p["b_hh"]
        H = w_hh.shape[1]

        def cell(carry, x_t, w_ih=w_ih, w_hh=w_hh, b_ih=b_ih, b_hh=b_hh, H=H):
            h, c = carry
            gates = x_t @ w_ih.T + h @ w_hh.T + b_ih + b_hh
            i = jax.nn.sigmoid(gates[:, 0:H])
            f = jax.nn.sigmoid(gates[:, H:2 * H])
            g = jnp.tanh(gates[:, 2 * H:3 * H])
            o = jax.nn.sigmoid(gates[:, 3 * H:4 * H])
            c = f * c + i * g
            h = o * jnp.tanh(c)
            return (h, c), h

        (hn, _cn), out = lax.scan(
            cell, (jnp.zeros((B, H), jnp.float32), jnp.zeros((B, H), jnp.float32)), x)
        x = out
        hns.append(hn)

    z = jax.nn.relu(jnp.concatenate(hns, axis=0))
    w1, b1 = raw["layer_1"]; z = jax.nn.relu(z @ w1.T + b1)
    w2, b2 = raw["layer_2"]; z = jax.nn.relu(z @ w2.T + b2)
    w3, b3 = raw["layer_3"]; z = jax.nn.relu(z @ w3.T + b3)
    w4, b4 = raw["layer_out"]
    return z @ w4.T + b4


if __name__ == "__main__":
    # Small config consistent with the module's forward.
    batch, seq_length = 2, 8
    input_size, hidden_size = 16, 32
    num_layers, num_classes = 2, 4

    key = jax.random.PRNGKey(0)
    key, pkey, xkey = jax.random.split(key, 3)
    raw_params = init_params(pkey, input_size, hidden_size, num_layers, num_classes)
    x = jax.random.normal(xkey, (batch, seq_length, input_size), jnp.float32)

    ref = jax.block_until_ready(reference_forward(raw_params, x))

    # f32 MXU-operand path: tight tolerance.
    params_f32 = prepare_params(raw_params, jnp.float32)
    out_f32 = jax.block_until_ready(lstm_jun_forward(params_f32, x))
    assert out_f32.shape == (num_layers * batch, num_classes)
    diff_f32 = float(jnp.max(jnp.abs(out_f32 - ref)))
    assert jnp.allclose(out_f32, ref, atol=5e-3, rtol=5e-3), f"f32 max abs diff {diff_f32}"

    # bf16 MXU-operand path (v6e/v7x fast path): f32 accumulation, looser tolerance.
    params_bf16 = prepare_params(raw_params, jnp.bfloat16)
    out_bf16 = jax.block_until_ready(lstm_jun_forward(params_bf16, x))
    diff_bf16 = float(jnp.max(jnp.abs(out_bf16 - ref)))
    assert jnp.allclose(out_bf16, ref, atol=1e-1, rtol=1e-1), f"bf16 max abs diff {diff_bf16}"

    print("KERNEL_OK")
</pallas_src>

<mosaic_0001>
module attributes {stable_mosaic.version = 11 : i64} {
  func.func @kernel(%arg0: memref<64x16xf32, #tpu.memory_space<vmem>>, %arg1: memref<16x128xf32, #tpu.memory_space<vmem>>, %arg2: memref<32x128xf32, #tpu.memory_space<vmem>>, %arg3: memref<1x128xf32, #tpu.memory_space<vmem>>, %arg4: memref<32x128xf32, #tpu.memory_space<vmem>>, %arg5: memref<32x128xf32, #tpu.memory_space<vmem>>, %arg6: memref<1x128xf32, #tpu.memory_space<vmem>>, %arg7: memref<32x256xf32, #tpu.memory_space<vmem>>, %arg8: memref<1x256xf32, #tpu.memory_space<vmem>>, %arg9: memref<256x256xf32, #tpu.memory_space<vmem>>, %arg10: memref<1x256xf32, #tpu.memory_space<vmem>>, %arg11: memref<256x128xf32, #tpu.memory_space<vmem>>, %arg12: memref<1x128xf32, #tpu.memory_space<vmem>>, %arg13: memref<128x128xf32, #tpu.memory_space<vmem>>, %arg14: memref<1x128xf32, #tpu.memory_space<vmem>>, %arg15: memref<16x128xf32, #tpu.memory_space<vmem>>, %arg16: memref<64x128xf32, #tpu.memory_space<vmem>>, %arg17: memref<64x32xf32, #tpu.memory_space<vmem>>, %arg18: memref<16x32xf32, #tpu.memory_space<vmem>>) attributes {dimension_semantics = [], scalar_prefetch = 0 : i64, scratch_operands = 3 : i64, tpu.core_type = #tpu.core_type<tc>} {
    %0 = tpu.iota {dimensions = array<i32: 1>} : vector<8x128xi32>
    %c64_i32 = arith.constant 64 : i32
    %1 = vector.broadcast %c64_i32 : i32 to vector<8x128xi32>
    %2 = arith.cmpi sge, %0, %1 : vector<8x128xi32>
    %c96_i32 = arith.constant 96 : i32
    %3 = vector.broadcast %c96_i32 : i32 to vector<8x128xi32>
    %4 = arith.cmpi slt, %0, %3 : vector<8x128xi32>
    %5 = arith.andi %2, %4 : vector<8x128xi1>
    %cst = arith.constant 1.000000e+00 : f32
    %cst_0 = arith.constant 5.000000e-01 : f32
    %6 = vector.broadcast %cst : f32 to vector<8x128xf32>
    %7 = vector.broadcast %cst_0 : f32 to vector<8x128xf32>
    %8 = arith.select %5, %6, %7 : vector<8x128xi1>, vector<8x128xf32>
    %cst_1 = arith.constant 0.000000e+00 : f32
    %cst_2 = arith.constant 5.000000e-01 : f32
    %9 = vector.broadcast %cst_1 : f32 to vector<8x128xf32>
    %10 = vector.broadcast %cst_2 : f32 to vector<8x128xf32>
    %11 = arith.select %5, %9, %10 : vector<8x128xi1>, vector<8x128xf32>
    %c0 = arith.constant 0 : index
    %c0_3 = arith.constant 0 : index
    %12 = vector.load %arg0[%c0, %c0_3] : memref<64x16xf32, #tpu.memory_space<vmem>>, vector<64x16xf32>
    %c0_4 = arith.constant 0 : index
    %c0_5 = arith.constant 0 : index
    %13 = vector.load %arg1[%c0_4, %c0_5] : memref<16x128xf32, #tpu.memory_space<vmem>>, vector<16x128xf32>
    %cst_6 = arith.constant dense<0.000000e+00> : vector<64x128xf32>
    %14 = tpu.matmul %12, %13, %cst_6 {dimension_numbers = #tpu.dot_dimension_numbers<[1], [0], [0], [1], [0, 0, 1, 1], [], []>} : vector<64x16xf32>, vector<16x128xf32>, vector<64x128xf32> -> vector<64x128xf32>
    %c0_7 = arith.constant 0 : index
    %c0_8 = arith.constant 0 : index
    %15 = vector.load %arg3[%c0_7, %c0_8] : memref<1x128xf32, #tpu.memory_space<vmem>>, vector<1x128xf32>
    %16 = vector.broadcast %15 : vector<1x128xf32> to vector<64x128xf32>
    %17 = arith.addf %14, %16 : vector<64x128xf32>
    %c0_9 = arith.constant 0 : index
    %c0_10 = arith.constant 0 : index
    %18 = vector.load %arg16[%c0_9, %c0_10] : memref<64x128xf32, #tpu.memory_space<vmem>>, vector<64x128xf32>
    tpu.vector_store %arg16[%c0_9, %c0_10], %17 {strides = array<i32>} : memref<64x128xf32, #tpu.memory_space<vmem>>, vector<64x128xf32>,
    %c0_11 = arith.constant 0 : index
    %c0_12 = arith.constant 0 : index
    %19 = vector.load %arg2[%c0_11, %c0_12] : memref<32x128xf32, #tpu.memory_space<vmem>>, vector<32x128xf32>
    %cst_13 = arith.constant 0.000000e+00 : f32
    %20 = vector.broadcast %cst_13 : f32 to vector<8x32xf32>
    %cst_14 = arith.constant 0.000000e+00 : f32
    %21 = vector.broadcast %cst_14 : f32 to vector<8x32xf32>
    %c0_15 = arith.constant 0 : index
    %c0_16 = arith.constant 0 : index
    %22 = vector.load %arg16[%c0_15, %c0_16] : memref<64x128xf32, #tpu.memory_space<vmem>>, vector<8x128xf32>
    %cst_17 = arith.constant dense<0.000000e+00> : vector<8x128xf32>
    %23 = tpu.matmul %20, %19, %cst_17 {dimension_numbers = #tpu.dot_dimension_numbers<[1], [0], [0], [1], [0, 0, 1, 1], [], []>} : vector<8x32xf32>, vector<32x128xf32>, vector<8x128xf32> -> vector<8x128xf32>
    %24 = arith.addf %22, %23 : vector<8x128xf32>
    %25 = arith.mulf %24, %8 : vector<8x128xf32>
    %26 = math.tanh %25 : vector<8x128xf32>
    %27 = arith.mulf %26, %8 : vector<8x128xf32>
    %28 = arith.addf %27, %11 : vector<8x128xf32>
    %29 = vector.extract_strided_slice %28 {offsets = [0, 0], sizes = [8, 32], strides = [1, 1]} : vector<8x128xf32> to vector<8x32xf32>
    %30 = vector.extract_strided_slice %28 {offsets = [0, 32], sizes = [8, 32], strides = [1, 1]} : vector<8x128xf32> to vector<8x32xf32>
    %31 = vector.extract_strided_slice %28 {offsets = [0, 64], sizes = [8, 32], strides = [1, 1]} : vector<8x128xf32> to vector<8x32xf32>
    %32 = vector.extract_strided_slice %28 {offsets = [0, 96], sizes = [8, 32], strides = [1, 1]} : vector<8x128xf32> to vector<8x32xf32>
    %33 = arith.mulf %30, %21 : vector<8x32xf32>
    %34 = arith.mulf %29, %31 : vector<8x32xf32>
    %35 = arith.addf %33, %34 : vector<8x32xf32>
    %36 = math.tanh %35 : vector<8x32xf32>
    %37 = arith.mulf %32, %36 : vector<8x32xf32>
    %c0_18 = arith.constant 0 : index
    %c0_19 = arith.constant 0 : index
    %38 = vector.load %arg17[%c0_18, %c0_19] : memref<64x32xf32, #tpu.memory_space<vmem>>, vector<8x32xf32>
    tpu.vector_store %arg17[%c0_18, %c0_19], %37 {strides = array<i32>} : memref<64x32xf32, #tpu.memory_space<vmem>>, vector<8x32xf32>,
    %c8 = arith.constant 8 : index
    %c0_20 = arith.constant 0 : index
    %39 = vector.load %arg16[%c8, %c0_20] : memref<64x128xf32, #tpu.memory_space<vmem>>, vector<8x128xf32>
    %cst_21 = arith.constant dense<0.000000e+00> : vector<8x128xf32>
    %40 = tpu.matmul %37, %19, %cst_21 {dimension_numbers = #tpu.dot_dimension_numbers<[1], [0], [0], [1], [0, 0, 1, 1], [], []>} : vector<8x32xf32>, vector<32x128xf32>, vector<8x128xf32> -> vector<8x128xf32>
    %41 = arith.addf %39, %40 : vector<8x128xf32>
    %42 = arith.mulf %41, %8 : vector<8x128xf32>
    %43 = math.tanh %42 : vector<8x128xf32>
    %44 = arith.mulf %43, %8 : vector<8x128xf32>
    %45 = arith.addf %44, %11 : vector<8x128xf32>
    %46 = vector.extract_strided_slice %45 {offsets = [0, 0], sizes = [8, 32], strides = [1, 1]} : vector<8x128xf32> to vector<8x32xf32>
    %47 = vector.extract_strided_slice %45 {offsets = [0, 32], sizes = [8, 32], strides = [1, 1]} : vector<8x128xf32> to vector<8x32xf32>
    %48 = vector.extract_strided_slice %45 {offsets = [0, 64], sizes = [8, 32], strides = [1, 1]} : vector<8x128xf32> to vector<8x32xf32>
    %49 = vector.extract_strided_slice %45 {offsets = [0, 96], sizes = [8, 32], strides = [1, 1]} : vector<8x128xf32> to vector<8x32xf32>
    %50 = arith.mulf %47, %35 : vector<8x32xf32>
    %51 = arith.mulf %46, %48 : vector<8x32xf32>
    %52 = arith.addf %50, %51 : vector<8x32xf32>
    %53 = math.tanh %52 : vector<8x32xf32>
    %54 = arith.mulf %49, %53 : vector<8x32xf32>
    %c8_22 = arith.constant 8 : index
    %c0_23 = arith.constant 0 : index
    %55 = vector.load %arg17[%c8_22, %c0_23] : memref<64x32xf32, #tpu.memory_space<vmem>>, vector<8x32xf32>
    tpu.vector_store %arg17[%c8_22, %c0_23], %54 {strides = array<i32>} : memref<64x32xf32, #tpu.memory_space<vmem>>, vector<8x32xf32>,
    %c16 = arith.constant 16 : index
    %c0_24 = arith.constant 0 : index
    %56 = vector.load %arg16[%c16, %c0_24] : memref<64x128xf32, #tpu.memory_space<vmem>>, vector<8x128xf32>
    %cst_25 = arith.constant dense<0.000000e+00> : vector<8x128xf32>
    %57 = tpu.matmul %54, %19, %cst_25 {dimension_numbers = #tpu.dot_dimension_numbers<[1], [0], [0], [1], [0, 0, 1, 1], [], []>} : vector<8x32xf32>, vector<32x128xf32>, vector<8x128xf32> -> vector<8x128xf32>
    %58 = arith.addf %56, %57 : vector<8x128xf32>
    %59 = arith.mulf %58, %8 : vector<8x128xf32>
    %60 = math.tanh %59 : vector<8x128xf32>
    %61 = arith.mulf %60, %8 : vector<8x128xf32>
    %62 = arith.addf %61, %11 : vector<8x128xf32>
    %63 = vector.extract_strided_slice %62 {offsets = [0, 0], sizes = [8, 32], strides = [1, 1]} : vector<8x128xf32> to vector<8x32xf32>
    %64 = vector.extract_strided_slice %62 {offsets = [0, 32], sizes = [8, 32], strides = [1, 1]} : vector<8x128xf32> to vector<8x32xf32>
    %65 = vector.extract_strided_slice %62 {offsets = [0, 64], sizes = [8, 32], strides = [1, 1]} : vector<8x128xf32> to vector<8x32xf32>
    %66 = vector.extract_strided_slice %62 {offsets = [0, 96], sizes = [8, 32], strides = [1, 1]} : vector<8x128xf32> to vector<8x32xf32>
    %67 = arith.mulf %64, %52 : vector<8x32xf32>
    %68 = arith.mulf %63, %65 : vector<8x32xf32>
    %69 = arith.addf %67, %68 : vector<8x32xf32>
    %70 = math.tanh %69 : vector<8x32xf32>
    %71 = arith.mulf %66, %70 : vector<8x32xf32>
    %c16_26 = arith.constant 16 : index
    %c0_27 = arith.constant 0 : index
    %72 = vector.load %arg17[%c16_26, %c0_27] : memref<64x32xf32, #tpu.memory_space<vmem>>, vector<8x32xf32>
    tpu.vector_store %arg17[%c16_26, %c0_27], %71 {strides = array<i32>} : memref<64x32xf32, #tpu.memory_space<vmem>>, vector<8x32xf32>,
    %c24 = arith.constant 24 : index
    %c0_28 = arith.constant 0 : index
    %73 = vector.load %arg16[%c24, %c0_28] : memref<64x128xf32, #tpu.memory_space<vmem>>, vector<8x128xf32>
    %cst_29 = arith.constant dense<0.000000e+00> : vector<8x128xf32>
    %74 = tpu.matmul %71, %19, %cst_29 {dimension_numbers = #tpu.dot_dimension_numbers<[1], [0], [0], [1], [0, 0, 1, 1], [], []>} : vector<8x32xf32>, vector<32x128xf32>, vector<8x128xf32> -> vector<8x128xf32>
    %75 = arith.addf %73, %74 : vector<8x128xf32>
    %76 = arith.mulf %75, %8 : vector<8x128xf32>
    %77 = math.tanh %76 : vector<8x128xf32>
    %78 = arith.mulf %77, %8 : vector<8x128xf32>
    %79 = arith.addf %78, %11 : vector<8x128xf32>
    %80 = vector.extract_strided_slice %79 {offsets = [0, 0], sizes = [8, 32], strides = [1, 1]} : vector<8x128xf32> to vector<8x32xf32>
    %81 = vector.extract_strided_slice %79 {offsets = [0, 32], sizes = [8, 32], strides = [1, 1]} : vector<8x128xf32> to vector<8x32xf32>
    %82 = vector.extract_strided_slice %79 {offsets = [0, 64], sizes = [8, 32], strides = [1, 1]} : vector<8x128xf32> to vector<8x32xf32>
    %83 = vector.extract_strided_slice %79 {offsets = [0, 96], sizes = [8, 32], strides = [1, 1]} : vector<8x128xf32> to vector<8x32xf32>
    %84 = arith.mulf %81, %69 : vector<8x32xf32>
    %85 = arith.mulf %80, %82 : vector<8x32xf32>
    %86 = arith.addf %84, %85 : vector<8x32xf32>
    %87 = math.tanh %86 : vector<8x32xf32>
    %88 = arith.mulf %83, %87 : vector<8x32xf32>
    %c24_30 = arith.constant 24 : index
    %c0_31 = arith.constant 0 : index
    %89 = vector.load %arg17[%c24_30, %c0_31] : memref<64x32xf32, #tpu.memory_space<vmem>>, vector<8x32xf32>
    tpu.vector_store %arg17[%c24_30, %c0_31], %88 {strides = array<i32>} : memref<64x32xf32, #tpu.memory_space<vmem>>, vector<8x32xf32>,
    %c32 = arith.constant 32 : index
    %c0_32 = arith.constant 0 : index
    %90 = vector.load %arg16[%c32, %c0_32] : memref<64x128xf32, #tpu.memory_space<vmem>>, vector<8x128xf32>
    %cst_33 = arith.constant dense<0.000000e+00> : vector<8x128xf32>
    %91 = tpu.matmul %88, %19, %cst_33 {dimension_numbers = #tpu.dot_dimension_numbers<[1], [0], [0], [1], [0, 0, 1, 1], [], []>} : vector<8x32xf32>, vector<32x128xf32>, vector<8x128xf32> -> vector<8x128xf32>
    %92 = arith.addf %90, %91 : vector<8x128xf32>
    %93 = arith.mulf %92, %8 : vector<8x128xf32>
    %94 = math.tanh %93 : vector<8x128xf32>
    %95 = arith.mulf %94, %8 : vector<8x128xf32>
    %96 = arith.addf %95, %11 : vector<8x128xf32>
    %97 = vector.extract_strided_slice %96 {offsets = [0, 0], sizes = [8, 32], strides = [1, 1]} : vector<8x128xf32> to vector<8x32xf32>
    %98 = vector.extract_strided_slice %96 {offsets = [0, 32], sizes = [8, 32], strides = [1, 1]} : vector<8x128xf32> to vector<8x32xf32>
    %99 = vector.extract_strided_slice %96 {offsets = [0, 64], sizes = [8, 32], strides = [1, 1]} : vector<8x128xf32> to vector<8x32xf32>
    %100 = vector.extract_strided_slice %96 {offsets = [0, 96], sizes = [8, 32], strides = [1, 1]} : vector<8x128xf32> to vector<8x32xf32>
    %101 = arith.mulf %98, %86 : vector<8x32xf32>
    %102 = arith.mulf %97, %99 : vector<8x32xf32>
    %103 = arith.addf %101, %102 : vector<8x32xf32>
    %104 = math.tanh %103 : vector<8x32xf32>
    %105 = arith.mulf %100, %104 : vector<8x32xf32>
    %c32_34 = arith.constant 32 : index
    %c0_35 = arith.constant 0 : index
    %106 = vector.load %arg17[%c32_34, %c0_35] : memref<64x32xf32, #tpu.memory_space<vmem>>, vector<8x32xf32>
    tpu.vector_store %arg17[%c32_34, %c0_35], %105 {strides = array<i32>} : memref<64x32xf32, #tpu.memory_space<vmem>>, vector<8x32xf32>,
    %c40 = arith.constant 40 : index
    %c0_36 = arith.constant 0 : index
    %107 = vector.load %arg16[%c40, %c0_36] : memref<64x128xf32, #tpu.memory_space<vmem>>, vector<8x128xf32>
    %cst_37 = arith.constant dense<0.000000e+00> : vector<8x128xf32>
    %108 = tpu.matmul %105, %19, %cst_37 {dimension_numbers = #tpu.dot_dimension_numbers<[1], [0], [0], [1], [0, 0, 1, 1], [], []>} : vector<8x32xf32>, vector<32x128xf32>, vector<8x128xf32> -> vector<8x128xf32>
    %109 = arith.addf %107, %108 : vector<8x128xf32>
    %110 = arith.mulf %109, %8 : vector<8x128xf32>
    %111 = math.tanh %110 : vector<8x128xf32>
    %112 = arith.mulf %111, %8 : vector<8x128xf32>
    %113 = arith.addf %112, %11 : vector<8x128xf32>
    %114 = vector.extract_strided_slice %113 {offsets = [0, 0], sizes = [8, 32], strides = [1, 1]} : vector<8x128xf32> to vector<8x32xf32>
    %115 = vector.extract_strided_slice %113 {offsets = [0, 32], sizes = [8, 32], strides = [1, 1]} : vector<8x128xf32> to vector<8x32xf32>
    %116 = vector.extract_strided_slice %113 {offsets = [0, 64], sizes = [8, 32], strides = [1, 1]} : vector<8x128xf32> to vector<8x32xf32>
    %117 = vector.extract_strided_slice %113 {offsets = [0, 96], sizes = [8, 32], strides = [1, 1]} : vector<8x128xf32> to vector<8x32xf32>
    %118 = arith.mulf %115, %103 : vector<8x32xf32>
    %119 = arith.mulf %114, %116 : vector<8x32xf32>
    %120 = arith.addf %118, %119 : vector<8x32xf32>
    %121 = math.tanh %120 : vector<8x32xf32>
    %122 = arith.mulf %117, %121 : vector<8x32xf32>
    %c40_38 = arith.constant 40 : index
    %c0_39 = arith.constant 0 : index
    %123 = vector.load %arg17[%c40_38, %c0_39] : memref<64x32xf32, #tpu.memory_space<vmem>>, vector<8x32xf32>
    tpu.vector_store %arg17[%c40_38, %c0_39], %122 {strides = array<i32>} : memref<64x32xf32, #tpu.memory_space<vmem>>, vector<8x32xf32>,
    %c48 = arith.constant 48 : index
    %c0_40 = arith.constant 0 : index
    %124 = vector.load %arg16[%c48, %c0_40] : memref<64x128xf32, #tpu.memory_space<vmem>>, vector<8x128xf32>
    %cst_41 = arith.constant dense<0.000000e+00> : vector<8x128xf32>
    %125 = tpu.matmul %122, %19, %cst_41 {dimension_numbers = #tpu.dot_dimension_numbers<[1], [0], [0], [1], [0, 0, 1, 1], [], []>} : vector<8x32xf32>, vector<32x128xf32>, vector<8x128xf32> -> vector<8x128xf32>
    %126 = arith.addf %124, %125 : vector<8x128xf32>
    %127 = arith.mulf %126, %8 : vector<8x128xf32>
    %128 = math.tanh %127 : vector<8x128xf32>
    %129 = arith.mulf %128, %8 : vector<8x128xf32>
    %130 = arith.addf %129, %11 : vector<8x128xf32>
    %131 = vector.extract_strided_slice %130 {offsets = [0, 0], sizes = [8, 32], strides = [1, 1]} : vector<8x128xf32> to vector<8x32xf32>
    %132 = vector.extract_strided_slice %130 {offsets = [0, 32], sizes = [8, 32], strides = [1, 1]} : vector<8x128xf32> to vector<8x32xf32>
    %133 = vector.extract_strided_slice %130 {offsets = [0, 64], sizes = [8, 32], strides = [1, 1]} : vector<8x128xf32> to vector<8x32xf32>
    %134 = vector.extract_strided_slice %130 {offsets = [0, 96], sizes = [8, 32], strides = [1, 1]} : vector<8x128xf32> to vector<8x32xf32>
    %135 = arith.mulf %132, %120 : vector<8x32xf32>
    %136 = arith.mulf %131, %133 : vector<8x32xf32>
    %137 = arith.addf %135, %136 : vector<8x32xf32>
    %138 = math.tanh %137 : vector<8x32xf32>
    %139 = arith.mulf %134, %138 : vector<8x32xf32>
    %c48_42 = arith.constant 48 : index
    %c0_43 = arith.constant 0 : index
    %140 = vector.load %arg17[%c48_42, %c0_43] : memref<64x32xf32, #tpu.memory_space<vmem>>, vector<8x32xf32>
    tpu.vector_store %arg17[%c48_42, %c0_43], %139 {strides = array<i32>} : memref<64x32xf32, #tpu.memory_space<vmem>>, vector<8x32xf32>,
    %c56 = arith.constant 56 : index
    %c0_44 = arith.constant 0 : index
    %141 = vector.load %arg16[%c56, %c0_44] : memref<64x128xf32, #tpu.memory_space<vmem>>, vector<8x128xf32>
    %cst_45 = arith.constant dense<0.000000e+00> : vector<8x128xf32>
    %142 = tpu.matmul %139, %19, %cst_45 {dimension_numbers = #tpu.dot_dimension_numbers<[1], [0], [0], [1], [0, 0, 1, 1], [], []>} : vector<8x32xf32>, vector<32x128xf32>, vector<8x128xf32> -> vector<8x128xf32>
    %143 = arith.addf %141, %142 : vector<8x128xf32>
    %144 = arith.mulf %143, %8 : vector<8x128xf32>
    %145 = math.tanh %144 : vector<8x128xf32>
    %146 = arith.mulf %145, %8 : vector<8x128xf32>
    %147 = arith.addf %146, %11 : vector<8x128xf32>
    %148 = vector.extract_strided_slice %147 {offsets = [0, 0], sizes = [8, 32], strides = [1, 1]} : vector<8x128xf32> to vector<8x32xf32>
    %149 = vector.extract_strided_slice %147 {offsets = [0, 32], sizes = [8, 32], strides = [1, 1]} : vector<8x128xf32> to vector<8x32xf32>
    %150 = vector.extract_strided_slice %147 {offsets = [0, 64], sizes = [8, 32], strides = [1, 1]} : vector<8x128xf32> to vector<8x32xf32>
    %151 = vector.extract_strided_slice %147 {offsets = [0, 96], sizes = [8, 32], strides = [1, 1]} : vector<8x128xf32> to vector<8x32xf32>
    %152 = arith.mulf %149, %137 : vector<8x32xf32>
    %153 = arith.mulf %148, %150 : vector<8x32xf32>
    %154 = arith.addf %152, %153 : vector<8x32xf32>
    %155 = math.tanh %154 : vector<8x32xf32>
    %156 = arith.mulf %151, %155 : vector<8x32xf32>
    %c56_46 = arith.constant 56 : index
    %c0_47 = arith.constant 0 : index
    %157 = vector.load %arg17[%c56_46, %c0_47] : memref<64x32xf32, #tpu.memory_space<vmem>>, vector<8x32xf32>
    tpu.vector_store %arg17[%c56_46, %c0_47], %156 {strides = array<i32>} : memref<64x32xf32, #tpu.memory_space<vmem>>, vector<8x32xf32>,
    %c0_48 = arith.constant 0 : index
    %c0_49 = arith.constant 0 : index
    %158 = vector.load %arg18[%c0_48, %c0_49] : memref<16x32xf32, #tpu.memory_space<vmem>>, vector<8x32xf32>
    tpu.vector_store %arg18[%c0_48, %c0_49], %156 {strides = array<i32>} : memref<16x32xf32, #tpu.memory_space<vmem>>, vector<8x32xf32>,
    %c0_50 = arith.constant 0 : index
    %c0_51 = arith.constant 0 : index
    %159 = vector.load %arg17[%c0_50, %c0_51] : memref<64x32xf32, #tpu.memory_space<vmem>>, vector<64x32xf32>
    %c0_52 = arith.constant 0 : index
    %c0_53 = arith.constant 0 : index
    %160 = vector.load %arg4[%c0_52, %c0_53] : memref<32x128xf32, #tpu.memory_space<vmem>>, vector<32x128xf32>
    %cst_54 = arith.constant dense<0.000000e+00> : vector<64x128xf32>
    %161 = tpu.matmul %159, %160, %cst_54 {dimension_numbers = #tpu.dot_dimension_numbers<[1], [0], [0], [1], [0, 0, 1, 1], [], []>} : vector<64x32xf32>, vector<32x128xf32>, vector<64x128xf32> -> vector<64x128xf32>
    %c0_55 = arith.constant 0 : index
    %c0_56 = arith.constant 0 : index
    %162 = vector.load %arg6[%c0_55, %c0_56] : memref<1x128xf32, #tpu.memory_space<vmem>>, vector<1x128xf32>
    %163 = vector.broadcast %162 : vector<1x128xf32> to vector<64x128xf32>
    %164 = arith.addf %161, %163 : vector<64x128xf32>
    %c0_57 = arith.constant 0 : index
    %c0_58 = arith.constant 0 : index
    %165 = vector.load %arg16[%c0_57, %c0_58] : memref<64x128xf32, #tpu.memory_space<vmem>>, vector<64x128xf32>
    tpu.vector_store %arg16[%c0_57, %c0_58], %164 {strides = array<i32>} : memref<64x128xf32, #tpu.memory_space<vmem>>, vector<64x128xf32>,
    %c0_59 = arith.constant 0 : index
    %c0_60 = arith.constant 0 : index
    %166 = vector.load %arg5[%c0_59, %c0_60] : memref<32x128xf32, #tpu.memory_space<vmem>>, vector<32x128xf32>
    %cst_61 = arith.constant 0.000000e+00 : f32
    %167 = vector.broadcast %cst_61 : f32 to vector<8x32xf32>
    %cst_62 = arith.constant 0.000000e+00 : f32
    %168 = vector.broadcast %cst_62 : f32 to vector<8x32xf32>
    %c0_63 = arith.constant 0 : index
    %c0_64 = arith.constant 0 : index
    %169 = vector.load %arg16[%c0_63, %c0_64] : memref<64x128xf32, #tpu.memory_space<vmem>>, vector<8x128xf32>
    %cst_65 = arith.constant dense<0.000000e+00> : vector<8x128xf32>
    %170 = tpu.matmul %167, %166, %cst_65 {dimension_numbers = #tpu.dot_dimension_numbers<[1], [0], [0], [1], [0, 0, 1, 1], [], []>} : vector<8x32xf32>, vector<32x128xf32>, vector<8x128xf32> -> vector<8x128xf32>
    %171 = arith.addf %169, %170 : vector<8x128xf32>
    %172 = arith.mulf %171, %8 : vector<8x128xf32>
    %173 = math.tanh %172 : vector<8x128xf32>
    %174 = arith.mulf %173, %8 : vector<8x128xf32>
    %175 = arith.addf %174, %11 : vector<8x128xf32>
    %176 = vector.extract_strided_slice %175 {offsets = [0, 0], sizes = [8, 32], strides = [1, 1]} : vector<8x128xf32> to vector<8x32xf32>
    %177 = vector.extract_strided_slice %175 {offsets = [0, 32], sizes = [8, 32], strides = [1, 1]} : vector<8x128xf32> to vector<8x32xf32>
    %178 = vector.extract_strided_slice %175 {offsets = [0, 64], sizes = [8, 32], strides = [1, 1]} : vector<8x128xf32> to vector<8x32xf32>
    %179 = vector.extract_strided_slice %175 {offsets = [0, 96], sizes = [8, 32], strides = [1, 1]} : vector<8x128xf32> to vector<8x32xf32>
    %180 = arith.mulf %177, %168 : vector<8x32xf32>
    %181 = arith.mulf %176, %178 : vector<8x32xf32>
    %182 = arith.addf %180, %181 : vector<8x32xf32>
    %183 = math.tanh %182 : vector<8x32xf32>
    %184 = arith.mulf %179, %183 : vector<8x32xf32>
    %c8_66 = arith.constant 8 : index
    %c0_67 = arith.constant 0 : index
    %185 = vector.load %arg16[%c8_66, %c0_67] : memref<64x128xf32, #tpu.memory_space<vmem>>, vector<8x128xf32>
    %cst_68 = arith.constant dense<0.000000e+00> : vector<8x128xf32>
    %186 = tpu.matmul %184, %166, %cst_68 {dimension_numbers = #tpu.dot_dimension_numbers<[1], [0], [0], [1], [0, 0, 1, 1], [], []>} : vector<8x32xf32>, vector<32x128xf32>, vector<8x128xf32> -> vector<8x128xf32>
    %187 = arith.addf %185, %186 : vector<8x128xf32>
    %188 = arith.mulf %187, %8 : vector<8x128xf32>
    %189 = math.tanh %188 : vector<8x128xf32>
    %190 = arith.mulf %189, %8 : vector<8x128xf32>
    %191 = arith.addf %190, %11 : vector<8x128xf32>
    %192 = vector.extract_strided_slice %191 {offsets = [0, 0], sizes = [8, 32], strides = [1, 1]} : vector<8x128xf32> to vector<8x32xf32>
    %193 = vector.extract_strided_slice %191 {offsets = [0, 32], sizes = [8, 32], strides = [1, 1]} : vector<8x128xf32> to vector<8x32xf32>
    %194 = vector.extract_strided_slice %191 {offsets = [0, 64], sizes = [8, 32], strides = [1, 1]} : vector<8x128xf32> to vector<8x32xf32>
    %195 = vector.extract_strided_slice %191 {offsets = [0, 96], sizes = [8, 32], strides = [1, 1]} : vector<8x128xf32> to vector<8x32xf32>
    %196 = arith.mulf %193, %182 : vector<8x32xf32>
    %197 = arith.mulf %192, %194 : vector<8x32xf32>
    %198 = arith.addf %196, %197 : vector<8x32xf32>
    %199 = math.tanh %198 : vector<8x32xf32>
    %200 = arith.mulf %195, %199 : vector<8x32xf32>
    %c16_69 = arith.constant 16 : index
    %c0_70 = arith.constant 0 : index
    %201 = vector.load %arg16[%c16_69, %c0_70] : memref<64x128xf32, #tpu.memory_space<vmem>>, vector<8x128xf32>
    %cst_71 = arith.constant dense<0.000000e+00> : vector<8x128xf32>
    %202 = tpu.matmul %200, %166, %cst_71 {dimension_numbers = #tpu.dot_dimension_numbers<[1], [0], [0], [1], [0, 0, 1, 1], [], []>} : vector<8x32xf32>, vector<32x128xf32>, vector<8x128xf32> -> vector<8x128xf32>
    %203 = arith.addf %201, %202 : vector<8x128xf32>
    %204 = arith.mulf %203, %8 : vector<8x128xf32>
    %205 = math.tanh %204 : vector<8x128xf32>
    %206 = arith.mulf %205, %8 : vector<8x128xf32>
    %207 = arith.addf %206, %11 : vector<8x128xf32>
    %208 = vector.extract_strided_slice %207 {offsets = [0, 0], sizes = [8, 32], strides = [1, 1]} : vector<8x128xf32> to vector<8x32xf32>
    %209 = vector.extract_strided_slice %207 {offsets = [0, 32], sizes = [8, 32], strides = [1, 1]} : vector<8x128xf32> to vector<8x32xf32>
    %210 = vector.extract_strided_slice %207 {offsets = [0, 64], sizes = [8, 32], strides = [1, 1]} : vector<8x128xf32> to vector<8x32xf32>
    %211 = vector.extract_strided_slice %207 {offsets = [0, 96], sizes = [8, 32], strides = [1, 1]} : vector<8x128xf32> to vector<8x32xf32>
    %212 = arith.mulf %209, %198 : vector<8x32xf32>
    %213 = arith.mulf %208, %210 : vector<8x32xf32>
    %214 = arith.addf %212, %213 : vector<8x32xf32>
    %215 = math.tanh %214 : vector<8x32xf32>
    %216 = arith.mulf %211, %215 : vector<8x32xf32>
    %c24_72 = arith.constant 24 : index
    %c0_73 = arith.constant 0 : index
    %217 = vector.load %arg16[%c24_72, %c0_73] : memref<64x128xf32, #tpu.memory_space<vmem>>, vector<8x128xf32>
    %cst_74 = arith.constant dense<0.000000e+00> : vector<8x128xf32>
    %218 = tpu.matmul %216, %166, %cst_74 {dimension_numbers = #tpu.dot_dimension_numbers<[1], [0], [0], [1], [0, 0, 1, 1], [], []>} : vector<8x32xf32>, vector<32x128xf32>, vector<8x128xf32> -> vector<8x128xf32>
    %219 = arith.addf %217, %218 : vector<8x128xf32>
    %220 = arith.mulf %219, %8 : vector<8x128xf32>
    %221 = math.tanh %220 : vector<8x128xf32>
    %222 = arith.mulf %221, %8 : vector<8x128xf32>
    %223 = arith.addf %222, %11 : vector<8x128xf32>
    %224 = vector.extract_strided_slice %223 {offsets = [0, 0], sizes = [8, 32], strides = [1, 1]} : vector<8x128xf32> to vector<8x32xf32>
    %225 = vector.extract_strided_slice %223 {offsets = [0, 32], sizes = [8, 32], strides = [1, 1]} : vector<8x128xf32> to vector<8x32xf32>
    %226 = vector.extract_strided_slice %223 {offsets = [0, 64], sizes = [8, 32], strides = [1, 1]} : vector<8x128xf32> to vector<8x32xf32>
    %227 = vector.extract_strided_slice %223 {offsets = [0, 96], sizes = [8, 32], strides = [1, 1]} : vector<8x128xf32> to vector<8x32xf32>
    %228 = arith.mulf %225, %214 : vector<8x32xf32>
    %229 = arith.mulf %224, %226 : vector<8x32xf32>
    %230 = arith.addf %228, %229 : vector<8x32xf32>
    %231 = math.tanh %230 : vector<8x32xf32>
    %232 = arith.mulf %227, %231 : vector<8x32xf32>
    %c32_75 = arith.constant 32 : index
    %c0_76 = arith.constant 0 : index
    %233 = vector.load %arg16[%c32_75, %c0_76] : memref<64x128xf32, #tpu.memory_space<vmem>>, vector<8x128xf32>
    %cst_77 = arith.constant dense<0.000000e+00> : vector<8x128xf32>
    %234 = tpu.matmul %232, %166, %cst_77 {dimension_numbers = #tpu.dot_dimension_numbers<[1], [0], [0], [1], [0, 0, 1, 1], [], []>} : vector<8x32xf32>, vector<32x128xf32>, vector<8x128xf32> -> vector<8x128xf32>
    %235 = arith.addf %233, %234 : vector<8x128xf32>
    %236 = arith.mulf %235, %8 : vector<8x128xf32>
    %237 = math.tanh %236 : vector<8x128xf32>
    %238 = arith.mulf %237, %8 : vector<8x128xf32>
    %239 = arith.addf %238, %11 : vector<8x128xf32>
    %240 = vector.extract_strided_slice %239 {offsets = [0, 0], sizes = [8, 32], strides = [1, 1]} : vector<8x128xf32> to vector<8x32xf32>
    %241 = vector.extract_strided_slice %239 {offsets = [0, 32], sizes = [8, 32], strides = [1, 1]} : vector<8x128xf32> to vector<8x32xf32>
    %242 = vector.extract_strided_slice %239 {offsets = [0, 64], sizes = [8, 32], strides = [1, 1]} : vector<8x128xf32> to vector<8x32xf32>
    %243 = vector.extract_strided_slice %239 {offsets = [0, 96], sizes = [8, 32], strides = [1, 1]} : vector<8x128xf32> to vector<8x32xf32>
    %244 = arith.mulf %241, %230 : vector<8x32xf32>
    %245 = arith.mulf %240, %242 : vector<8x32xf32>
    %246 = arith.addf %244, %245 : vector<8x32xf32>
    %247 = math.tanh %246 : vector<8x32xf32>
    %248 = arith.mulf %243, %247 : vector<8x32xf32>
    %c40_78 = arith.constant 40 : index
    %c0_79 = arith.constant 0 : index
    %249 = vector.load %arg16[%c40_78, %c0_79] : memref<64x128xf32, #tpu.memory_space<vmem>>, vector<8x128xf32>
    %cst_80 = arith.constant dense<0.000000e+00> : vector<8x128xf32>
    %250 = tpu.matmul %248, %166, %cst_80 {dimension_numbers = #tpu.dot_dimension_numbers<[1], [0], [0], [1], [0, 0, 1, 1], [], []>} : vector<8x32xf32>, vector<32x128xf32>, vector<8x128xf32> -> vector<8x128xf32>
    %251 = arith.addf %249, %250 : vector<8x128xf32>
    %252 = arith.mulf %251, %8 : vector<8x128xf32>
    %253 = math.tanh %252 : vector<8x128xf32>
    %254 = arith.mulf %253, %8 : vector<8x128xf32>
    %255 = arith.addf %254, %11 : vector<8x128xf32>
    %256 = vector.extract_strided_slice %255 {offsets = [0, 0], sizes = [8, 32], strides = [1, 1]} : vector<8x128xf32> to vector<8x32xf32>
    %257 = vector.extract_strided_slice %255 {offsets = [0, 32], sizes = [8, 32], strides = [1, 1]} : vector<8x128xf32> to vector<8x32xf32>
    %258 = vector.extract_strided_slice %255 {offsets = [0, 64], sizes = [8, 32], strides = [1, 1]} : vector<8x128xf32> to vector<8x32xf32>
    %259 = vector.extract_strided_slice %255 {offsets = [0, 96], sizes = [8, 32], strides = [1, 1]} : vector<8x128xf32> to vector<8x32xf32>
    %260 = arith.mulf %257, %246 : vector<8x32xf32>
    %261 = arith.mulf %256, %258 : vector<8x32xf32>
    %262 = arith.addf %260, %261 : vector<8x32xf32>
    %263 = math.tanh %262 : vector<8x32xf32>
    %264 = arith.mulf %259, %263 : vector<8x32xf32>
    %c48_81 = arith.constant 48 : index
    %c0_82 = arith.constant 0 : index
    %265 = vector.load %arg16[%c48_81, %c0_82] : memref<64x128xf32, #tpu.memory_space<vmem>>, vector<8x128xf32>
    %cst_83 = arith.constant dense<0.000000e+00> : vector<8x128xf32>
    %266 = tpu.matmul %264, %166, %cst_83 {dimension_numbers = #tpu.dot_dimension_numbers<[1], [0], [0], [1], [0, 0, 1, 1], [], []>} : vector<8x32xf32>, vector<32x128xf32>, vector<8x128xf32> -> vector<8x128xf32>
    %267 = arith.addf %265, %266 : vector<8x128xf32>
    %268 = arith.mulf %267, %8 : vector<8x128xf32>
    %269 = math.tanh %268 : vector<8x128xf32>
    %270 = arith.mulf %269, %8 : vector<8x128xf32>
    %271 = arith.addf %270, %11 : vector<8x128xf32>
    %272 = vector.extract_strided_slice %271 {offsets = [0, 0], sizes = [8, 32], strides = [1, 1]} : vector<8x128xf32> to vector<8x32xf32>
    %273 = vector.extract_strided_slice %271 {offsets = [0, 32], sizes = [8, 32], strides = [1, 1]} : vector<8x128xf32> to vector<8x32xf32>
    %274 = vector.extract_strided_slice %271 {offsets = [0, 64], sizes = [8, 32], strides = [1, 1]} : vector<8x128xf32> to vector<8x32xf32>
    %275 = vector.extract_strided_slice %271 {offsets = [0, 96], sizes = [8, 32], strides = [1, 1]} : vector<8x128xf32> to vector<8x32xf32>
    %276 = arith.mulf %273, %262 : vector<8x32xf32>
    %277 = arith.mulf %272, %274 : vector<8x32xf32>
    %278 = arith.addf %276, %277 : vector<8x32xf32>
    %279 = math.tanh %278 : vector<8x32xf32>
    %280 = arith.mulf %275, %279 : vector<8x32xf32>
    %c56_84 = arith.constant 56 : index
    %c0_85 = arith.constant 0 : index
    %281 = vector.load %arg16[%c56_84, %c0_85] : memref<64x128xf32, #tpu.memory_space<vmem>>, vector<8x128xf32>
    %cst_86 = arith.constant dense<0.000000e+00> : vector<8x128xf32>
    %282 = tpu.matmul %280, %166, %cst_86 {dimension_numbers = #tpu.dot_dimension_numbers<[1], [0], [0], [1], [0, 0, 1, 1], [], []>} : vector<8x32xf32>, vector<32x128xf32>, vector<8x128xf32> -> vector<8x128xf32>
    %283 = arith.addf %281, %282 : vector<8x128xf32>
    %284 = arith.mulf %283, %8 : vector<8x128xf32>
    %285 = math.tanh %284 : vector<8x128xf32>
    %286 = arith.mulf %285, %8 : vector<8x128xf32>
    %287 = arith.addf %286, %11 : vector<8x128xf32>
    %288 = vector.extract_strided_slice %287 {offsets = [0, 0], sizes = [8, 32], strides = [1, 1]} : vector<8x128xf32> to vector<8x32xf32>
    %289 = vector.extract_strided_slice %287 {offsets = [0, 32], sizes = [8, 32], strides = [1, 1]} : vector<8x128xf32> to vector<8x32xf32>
    %290 = vector.extract_strided_slice %287 {offsets = [0, 64], sizes = [8, 32], strides = [1, 1]} : vector<8x128xf32> to vector<8x32xf32>
    %291 = vector.extract_strided_slice %287 {offsets = [0, 96], sizes = [8, 32], strides = [1, 1]} : vector<8x128xf32> to vector<8x32xf32>
    %292 = arith.mulf %289, %278 : vector<8x32xf32>
    %293 = arith.mulf %288, %290 : vector<8x32xf32>
    %294 = arith.addf %292, %293 : vector<8x32xf32>
    %295 = math.tanh %294 : vector<8x32xf32>
    %296 = arith.mulf %291, %295 : vector<8x32xf32>
    %c8_87 = arith.constant 8 : index
    %c0_88 = arith.constant 0 : index
    %297 = vector.load %arg18[%c8_87, %c0_88] : memref<16x32xf32, #tpu.memory_space<vmem>>, vector<8x32xf32>
    tpu.vector_store %arg18[%c8_87, %c0_88], %296 {strides = array<i32>} : memref<16x32xf32, #tpu.memory_space<vmem>>, vector<8x32xf32>,
    %c0_89 = arith.constant 0 : index
    %c0_90 = arith.constant 0 : index
    %298 = vector.load %arg18[%c0_89, %c0_90] : memref<16x32xf32, #tpu.memory_space<vmem>>, vector<16x32xf32>
    %cst_91 = arith.constant 0.000000e+00 : f32
    %299 = vector.broadcast %cst_91 : f32 to vector<16x32xf32>
    %300 = arith.maximumf %298, %299 : vector<16x32xf32>
    %c0_92 = arith.constant 0 : index
    %c0_93 = arith.constant 0 : index
    %301 = vector.load %arg7[%c0_92, %c0_93] : memref<32x256xf32, #tpu.memory_space<vmem>>, vector<32x256xf32>
    %cst_94 = arith.constant dense<0.000000e+00> : vector<16x256xf32>
    %302 = tpu.matmul %300, %301, %cst_94 {dimension_numbers = #tpu.dot_dimension_numbers<[1], [0], [0], [1], [0, 0, 1, 1], [], []>} : vector<16x32xf32>, vector<32x256xf32>, vector<16x256xf32> -> vector<16x256xf32>
    %c0_95 = arith.constant 0 : index
    %c0_96 = arith.constant 0 : index
    %303 = vector.load %arg8[%c0_95, %c0_96] : memref<1x256xf32, #tpu.memory_space<vmem>>, vector<1x256xf32>
    %304 = vector.broadcast %303 : vector<1x256xf32> to vector<16x256xf32>
    %305 = arith.addf %302, %304 : vector<16x256xf32>
    %cst_97 = arith.constant 0.000000e+00 : f32
    %306 = vector.broadcast %cst_97 : f32 to vector<16x256xf32>
    %307 = arith.maximumf %305, %306 : vector<16x256xf32>
    %c0_98 = arith.constant 0 : index
    %c0_99 = arith.constant 0 : index
    %308 = vector.load %arg9[%c0_98, %c0_99] : memref<256x256xf32, #tpu.memory_space<vmem>>, vector<256x256xf32>
    %cst_100 = arith.constant dense<0.000000e+00> : vector<16x256xf32>
    %309 = tpu.matmul %307, %308, %cst_100 {dimension_numbers = #tpu.dot_dimension_numbers<[1], [0], [0], [1], [0, 0, 1, 1], [], []>} : vector<16x256xf32>, vector<256x256xf32>, vector<16x256xf32> -> vector<16x256xf32>
    %c0_101 = arith.constant 0 : index
    %c0_102 = arith.constant 0 : index
    %310 = vector.load %arg10[%c0_101, %c0_102] : memref<1x256xf32, #tpu.memory_space<vmem>>, vector<1x256xf32>
    %311 = vector.broadcast %310 : vector<1x256xf32> to vector<16x256xf32>
    %312 = arith.addf %309, %311 : vector<16x256xf32>
    %cst_103 = arith.constant 0.000000e+00 : f32
    %313 = vector.broadcast %cst_103 : f32 to vector<16x256xf32>
    %314 = arith.maximumf %312, %313 : vector<16x256xf32>
    %c0_104 = arith.constant 0 : index
    %c0_105 = arith.constant 0 : index
    %315 = vector.load %arg11[%c0_104, %c0_105] : memref<256x128xf32, #tpu.memory_space<vmem>>, vector<256x128xf32>
    %cst_106 = arith.constant dense<0.000000e+00> : vector<16x128xf32>
    %316 = tpu.matmul %314, %315, %cst_106 {dimension_numbers = #tpu.dot_dimension_numbers<[1], [0], [0], [1], [0, 0, 1, 1], [], []>} : vector<16x256xf32>, vector<256x128xf32>, vector<16x128xf32> -> vector<16x128xf32>
    %c0_107 = arith.constant 0 : index
    %c0_108 = arith.constant 0 : index
    %317 = vector.load %arg12[%c0_107, %c0_108] : memref<1x128xf32, #tpu.memory_space<vmem>>, vector<1x128xf32>
    %318 = vector.broadcast %317 : vector<1x128xf32> to vector<16x128xf32>
    %319 = arith.addf %316, %318 : vector<16x128xf32>
    %cst_109 = arith.constant 0.000000e+00 : f32
    %320 = vector.broadcast %cst_109 : f32 to vector<16x128xf32>
    %321 = arith.maximumf %319, %320 : vector<16x128xf32>
    %c0_110 = arith.constant 0 : index
    %c0_111 = arith.constant 0 : index
    %322 = vector.load %arg13[%c0_110, %c0_111] : memref<128x128xf32, #tpu.memory_space<vmem>>, vector<128x128xf32>
    %cst_112 = arith.constant dense<0.000000e+00> : vector<16x128xf32>
    %323 = tpu.matmul %321, %322, %cst_112 {dimension_numbers = #tpu.dot_dimension_numbers<[1], [0], [0], [1], [0, 0, 1, 1], [], []>} : vector<16x128xf32>, vector<128x128xf32>, vector<16x128xf32> -> vector<16x128xf32>
    %c0_113 = arith.constant 0 : index
    %c0_114 = arith.constant 0 : index
    %324 = vector.load %arg14[%c0_113, %c0_114] : memref<1x128xf32, #tpu.memory_space<vmem>>, vector<1x128xf32>
    %325 = vector.broadcast %324 : vector<1x128xf32> to vector<16x128xf32>
    %326 = arith.addf %323, %325 : vector<16x128xf32>
    %c0_115 = arith.constant 0 : index
    %c0_116 = arith.constant 0 : index
    %327 = vector.load %arg15[%c0_115, %c0_116] : memref<16x128xf32, #tpu.memory_space<vmem>>, vector<16x128xf32>
    tpu.vector_store %arg15[%c0_115, %c0_116], %326 {strides = array<i32>} : memref<16x128xf32, #tpu.memory_space<vmem>>, vector<16x128xf32>,
    return
  }
}

</mosaic_0001>

<llo_original>
// kernel: tpu_custom_call.1
$region0: #{tpu_custom_call.1}
  #allocation0 [shape = 'u32[]', space=smem, size = 0x4, offset = 0x4, fixed_abs, tag = 'smem constant byte address 0x4 - core index']
  #allocation1 [shape = 'u32[144,128]{1,0:T(1,128)}', space=vmem, size = 0x12000, scoped, tag = 'internal scratch']
  #allocation2 [shape = 'f32[64,128]{1,0:T(8,128)}', space=vmem, size = 0x8000, scoped, tag = 'scratch operand']
  #allocation3 [shape = 'f32[64,32]{1,0:T(8,128)}', space=vmem, size = 0x8000, scoped, tag = 'scratch operand']
  #allocation4 [shape = 'f32[16,32]{1,0:T(8,128)}', space=vmem, size = 0x2000, scoped, tag = 'scratch operand']
  %s0 = inlined_call_operand.vmem [shape: f32[64,16], index: 0, kind: input, shape index: {}]
  %s1 = inlined_call_operand.hbm [shape: f32[16,128], index: 1, kind: input, shape index: {}]
  %s2 = inlined_call_operand.hbm [shape: f32[32,128], index: 2, kind: input, shape index: {}]
  %s3 = inlined_call_operand.vmem [shape: f32[1,128], index: 3, kind: input, shape index: {}]
  %s4 = inlined_call_operand.hbm [shape: f32[32,128], index: 4, kind: input, shape index: {}]
  %s5 = inlined_call_operand.hbm [shape: f32[32,128], index: 5, kind: input, shape index: {}]
  %s6 = inlined_call_operand.hbm [shape: f32[1,128], index: 6, kind: input, shape index: {}]
  %s7 = inlined_call_operand.hbm [shape: f32[32,256], index: 7, kind: input, shape index: {}]
  %s8 = inlined_call_operand.hbm [shape: f32[1,256], index: 8, kind: input, shape index: {}]
  %s9 = inlined_call_operand.hbm [shape: f32[256,256], index: 9, kind: input, shape index: {}]
  %s10 = inlined_call_operand.hbm [shape: f32[1,256], index: 10, kind: input, shape index: {}]
  %s11 = inlined_call_operand.hbm [shape: f32[256,128], index: 11, kind: input, shape index: {}]
  %s12 = inlined_call_operand.hbm [shape: f32[1,128], index: 12, kind: input, shape index: {}]
  %s13 = inlined_call_operand.vmem [shape: f32[128,128], index: 13, kind: input, shape index: {}]
  %s14 = inlined_call_operand.vmem [shape: f32[1,128], index: 14, kind: input, shape index: {}]
  %s15 = inlined_call_operand.hbm [shape: f32[16,128], index: 15, kind: output, shape index: {}]
  %s16 = sld [smem:[#allocation0]]
  $region114: #{tpu_custom_call.1} parent=0
    _
  %s18 = ssub.s32 1, %s16
  %s19 = scalar_select 0, %s18, %s16
  $region1: #{tpu_custom_call.1} parent=0
    #allocation5 [shape = 'u8[8192]{0}', space=vmem, size = 0x2000, scoped, tag = 'input window, operand 1, single buffered']
    #allocation6 [shape = 's32[1]{0}', space=sflag, size = 0x4, scoped, tag = 'scoped memory for tpu_custom_call.1']
    #allocation7 [shape = 's32[1]{0}', space=sflag, size = 0x4, scoped, tag = 'scoped memory for tpu_custom_call.1']
    #allocation8 [shape = 'u8[16384]{0}', space=vmem, size = 0x4000, scoped, tag = 'input window, operand 2, single buffered']
    #allocation9 [shape = 's32[1]{0}', space=sflag, size = 0x4, scoped, tag = 'scoped memory for tpu_custom_call.1']
    #allocation10 [shape = 'u8[16384]{0}', space=vmem, size = 0x4000, scoped, tag = 'input window, operand 4, single buffered']
    #allocation11 [shape = 'u8[16384]{0}', space=vmem, size = 0x4000, scoped, tag = 'input window, operand 5, single buffered']
    #allocation12 [shape = 's32[1]{0}', space=sflag, size = 0x4, scoped, tag = 'scoped memory for tpu_custom_call.1']
    #allocation13 [shape = 'u8[512]{0}', space=vmem, size = 0x400, scoped, tag = 'input window, operand 6, single buffered']
    #allocation14 [shape = 'u8[32768]{0}', space=vmem, size = 0x8000, scoped, tag = 'input window, operand 7, single buffered']
    #allocation15 [shape = 's32[1]{0}', space=sflag, size = 0x4, scoped, tag = 'scoped memory for tpu_custom_call.1']
    #allocation16 [shape = 'u8[1024]{0}', space=vmem, size = 0x400, scoped, tag = 'input window, operand 8, single buffered']
    #allocation17 [shape = 'u8[262144]{0}', space=vmem, size = 0x40000, scoped, tag = 'input window, operand 9, single buffered']
    #allocation18 [shape = 's32[1]{0}', space=sflag, size = 0x4, scoped, tag = 'scoped memory for tpu_custom_call.1']
    #allocation19 [shape = 'u8[1024]{0}', space=vmem, size = 0x400, scoped, tag = 'input window, operand 10, single buffered']
    #allocation20 [shape = 'u8[131072]{0}', space=vmem, size = 0x20000, scoped, tag = 'input window, operand 11, single buffered']
    #allocation21 [shape = 's32[1]{0}', space=sflag, size = 0x4, scoped, tag = 'scoped memory for tpu_custom_call.1']
    #allocation22 [shape = 'u8[512]{0}', space=vmem, size = 0x400, scoped, tag = 'input window, operand 12, single buffered']
    #allocation23 [shape = 'u8[8192]{0}', space=vmem, size = 0x2000, scoped, tag = 'output window, operand 0, single buffered']
    %20 = vsyncpa [#allocation6], 0
    %21 = vsyncpa [#allocation9], 0
    %22 = vsyncpa [#allocation12], 0
    %23 = vsyncpa [#allocation15], 0
    %24 = vsyncpa [#allocation18], 0
    %25 = vsyncpa [#allocation21], 0
    %26 = vsyncpa [#allocation7], 0
    // Predicated region
    $region2: #{tpu_custom_call.1} parent=1 // pred_check
      _
    $region3: #{tpu_custom_call.1} parent=1 // pred_check_branch
      %28 = sbr.rel (0) target = $region5
    $region4: #{tpu_custom_call.1} parent=1 // pred_region
      _
    $region5: #{tpu_custom_call.1} parent=1 // pred_fallthru
      _
    // Predicated region
    $region6: #{tpu_custom_call.1} parent=1 // pred_check
      _
    $region7: #{tpu_custom_call.1} parent=1 // pred_check_branch
      %30 = sbr.rel (0) target = $region9
    $region8: #{tpu_custom_call.1} parent=1 // pred_region
      %s32 = ssub.s32 256, 256
      %33 = vsyncadd [#allocation6], %s32
      %s34 = sshll.u32 [#allocation5], 4
      %s35 = int_to_ptr.vmem [resolvable:$true] %s34
      %40 = dma.hbm_to_vmem [thread:$0]  %s1, 256, %s35, [#allocation6], 128, 128, 8
    $region9: #{tpu_custom_call.1} parent=1 // pred_fallthru
      _
    // Predicated region
    $region10: #{tpu_custom_call.1} parent=1 // pred_check
      _
    $region11: #{tpu_custom_call.1} parent=1 // pred_check_branch
      %42 = sbr.rel (0) target = $region13
    $region12: #{tpu_custom_call.1} parent=1 // pred_region
      %s44 = ssub.s32 512, 512
      %45 = vsyncadd [#allocation9], %s44
      %s46 = sshll.u32 [#allocation8], 4
      %s47 = int_to_ptr.vmem [resolvable:$true] %s46
      %52 = dma.hbm_to_vmem [thread:$0]  %s2, 512, %s47, [#allocation9], 128, 128, 8
    $region13: #{tpu_custom_call.1} parent=1 // pred_fallthru
      _
    // Predicated region
    $region14: #{tpu_custom_call.1} parent=1 // pred_check
      _
    $region15: #{tpu_custom_call.1} parent=1 // pred_check_branch
      %54 = sbr.rel (0) target = $region17
    $region16: #{tpu_custom_call.1} parent=1 // pred_region
      _
    $region17: #{tpu_custom_call.1} parent=1 // pred_fallthru
      _
    // Predicated region
    $region18: #{tpu_custom_call.1} parent=1 // pred_check
      _
    $region19: #{tpu_custom_call.1} parent=1 // pred_check_branch
      %56 = sbr.rel (0) target = $region21
    $region20: #{tpu_custom_call.1} parent=1 // pred_region
      %s58 = ssub.s32 512, 512
      %59 = vsyncadd [#allocation9], %s58
      %s60 = sshll.u32 [#allocation10], 4
      %s61 = int_to_ptr.vmem [resolvable:$true] %s60
      %66 = dma.hbm_to_vmem [thread:$0]  %s4, 512, %s61, [#allocation9], 128, 128, 8
    $region21: #{tpu_custom_call.1} parent=1 // pred_fallthru
      _
    // Predicated region
    $region22: #{tpu_custom_call.1} parent=1 // pred_check
      _
    $region23: #{tpu_custom_call.1} parent=1 // pred_check_branch
      %68 = sbr.rel (0) target = $region25
    $region24: #{tpu_custom_call.1} parent=1 // pred_region
      %s70 = ssub.s32 512, 512
      %71 = vsyncadd [#allocation12], %s70
      %s72 = sshll.u32 [#allocation11], 4
      %s73 = int_to_ptr.vmem [resolvable:$true] %s72
      %78 = dma.hbm_to_vmem [thread:$0]  %s5, 512, %s73, [#allocation12], 128, 128, 8
    $region25: #{tpu_custom_call.1} parent=1 // pred_fallthru
      _
    // Predicated region
    $region26: #{tpu_custom_call.1} parent=1 // pred_check
      _
    $region27: #{tpu_custom_call.1} parent=1 // pred_check_branch
      %80 = sbr.rel (0) target = $region29
    $region28: #{tpu_custom_call.1} parent=1 // pred_region
      %s82 = ssub.s32 16, 16
      %83 = vsyncadd [#allocation12], %s82
      %s85 = sshll.u32 [#allocation13], 4
      %s86 = int_to_ptr.vmem [resolvable:$true] %s85
      %88 = dma.hbm_to_vmem [thread:$0]  %s6, 16, %s86, [#allocation12]
    $region29: #{tpu_custom_call.1} parent=1 // pred_fallthru
      _
    // Predicated region
    $region30: #{tpu_custom_call.1} parent=1 // pred_check
      _
    $region31: #{tpu_custom_call.1} parent=1 // pred_check_branch
      %90 = sbr.rel (0) target = $region33
    $region32: #{tpu_custom_call.1} parent=1 // pred_region
      %s92 = ssub.s32 1024, 1024
      %93 = vsyncadd [#allocation15], %s92
      %s94 = sshll.u32 [#allocation14], 4
      %s95 = int_to_ptr.vmem [resolvable:$true] %s94
      %100 = dma.hbm_to_vmem [thread:$0]  %s7, 1024, %s95, [#allocation15], 256, 256, 16
    $region33: #{tpu_custom_call.1} parent=1 // pred_fallthru
      _
    // Predicated region
    $region34: #{tpu_custom_call.1} parent=1 // pred_check
      _
    $region35: #{tpu_custom_call.1} parent=1 // pred_check_branch
      %102 = sbr.rel (0) target = $region37
    $region36: #{tpu_custom_call.1} parent=1 // pred_region
      %s104 = ssub.s32 32, 32
      %105 = vsyncadd [#allocation15], %s104
      %s107 = sshll.u32 [#allocation16], 4
      %s108 = int_to_ptr.vmem [resolvable:$true] %s107
      %110 = dma.hbm_to_vmem [thread:$0]  %s8, 32, %s108, [#allocation15]
    $region37: #{tpu_custom_call.1} parent=1 // pred_fallthru
      _
    // Predicated region
    $region38: #{tpu_custom_call.1} parent=1 // pred_check
      _
    $region39: #{tpu_custom_call.1} parent=1 // pred_check_branch
      %112 = sbr.rel (0) target = $region41
    $region40: #{tpu_custom_call.1} parent=1 // pred_region
      %s114 = ssub.s32 8192, 8192
      %115 = vsyncadd [#allocation18], %s114
      %s116 = sshll.u32 [#allocation17], 4
      %s117 = int_to_ptr.vmem [resolvable:$true] %s116
      %122 = dma.hbm_to_vmem [thread:$0]  %s9, 8192, %s117, [#allocation18], 256, 256, 16
    $region41: #{tpu_custom_call.1} parent=1 // pred_fallthru
      _
    // Predicated region
    $region42: #{tpu_custom_call.1} parent=1 // pred_check
      _
    $region43: #{tpu_custom_call.1} parent=1 // pred_check_branch
      %124 = sbr.rel (0) target = $region45
    $region44: #{tpu_custom_call.1} parent=1 // pred_region
      %s126 = ssub.s32 32, 32
      %127 = vsyncadd [#allocation18], %s126
      %s129 = sshll.u32 [#allocation19], 4
      %s130 = int_to_ptr.vmem [resolvable:$true] %s129
      %132 = dma.hbm_to_vmem [thread:$0]  %s10, 32, %s130, [#allocation18]
    $region45: #{tpu_custom_call.1} parent=1 // pred_fallthru
      _
    // Predicated region
    $region46: #{tpu_custom_call.1} parent=1 // pred_check
      _
    $region47: #{tpu_custom_call.1} parent=1 // pred_check_branch
      %134 = sbr.rel (0) target = $region49
    $region48: #{tpu_custom_call.1} parent=1 // pred_region
      %s136 = ssub.s32 4096, 4096
      %137 = vsyncadd [#allocation21], %s136
      %s138 = sshll.u32 [#allocation20], 4
      %s139 = int_to_ptr.vmem [resolvable:$true] %s138
      %144 = dma.hbm_to_vmem [thread:$0]  %s11, 4096, %s139, [#allocation21], 128, 128, 8
    $region49: #{tpu_custom_call.1} parent=1 // pred_fallthru
      _
    // Predicated region
    $region50: #{tpu_custom_call.1} parent=1 // pred_check
      _
    $region51: #{tpu_custom_call.1} parent=1 // pred_check_branch
      %146 = sbr.rel (0) target = $region53
    $region52: #{tpu_custom_call.1} parent=1 // pred_region
      %s148 = ssub.s32 16, 16
      %149 = vsyncadd [#allocation21], %s148
      %s151 = sshll.u32 [#allocation22], 4
      %s152 = int_to_ptr.vmem [resolvable:$true] %s151
      %154 = dma.hbm_to_vmem [thread:$0]  %s12, 16, %s152, [#allocation21]
    $region53: #{tpu_custom_call.1} parent=1 // pred_fallthru
      _
    // Predicated region
    $region54: #{tpu_custom_call.1} parent=1 // pred_check
      _
    $region55: #{tpu_custom_call.1} parent=1 // pred_check_branch
      %156 = sbr.rel (0) target = $region57
    $region56: #{tpu_custom_call.1} parent=1 // pred_region
      _
    $region57: #{tpu_custom_call.1} parent=1 // pred_fallthru
      _
    // Predicated region
    $region58: #{tpu_custom_call.1} parent=1 // pred_check
      _
    $region59: #{tpu_custom_call.1} parent=1 // pred_check_branch
      %158 = sbr.rel (0) target = $region61
    $region60: #{tpu_custom_call.1} parent=1 // pred_region
      _
    $region61: #{tpu_custom_call.1} parent=1 // pred_fallthru
      _
    // Predicated region
    $region62: #{tpu_custom_call.1} parent=1 // pred_check
      _
    $region63: #{tpu_custom_call.1} parent=1 // pred_check_branch
      %160 = sbr.rel (0) target = $region65
    $region64: #{tpu_custom_call.1} parent=1 // pred_region
      %161 = dma.done [#allocation6], 256
    $region65: #{tpu_custom_call.1} parent=1 // pred_fallthru
      _
    // Predicated region
    $region66: #{tpu_custom_call.1} parent=1 // pred_check
      _
    $region67: #{tpu_custom_call.1} parent=1 // pred_check_branch
      %163 = sbr.rel (0) target = $region69
    $region68: #{tpu_custom_call.1} parent=1 // pred_region
      %164 = dma.done [#allocation9], 512
    $region69: #{tpu_custom_call.1} parent=1 // pred_fallthru
      _
    // Predicated region
    $region70: #{tpu_custom_call.1} parent=1 // pred_check
      _
    $region71: #{tpu_custom_call.1} parent=1 // pred_check_branch
      %166 = sbr.rel (0) target = $region73
    $region72: #{tpu_custom_call.1} parent=1 // pred_region
      %167 = dma.done [#allocation9], 512
    $region73: #{tpu_custom_call.1} parent=1 // pred_fallthru
      _
    // Predicated region
    $region74: #{tpu_custom_call.1} parent=1 // pred_check
      _
    $region75: #{tpu_custom_call.1} parent=1 // pred_check_branch
      %169 = sbr.rel (0) target = $region77
    $region76: #{tpu_custom_call.1} parent=1 // pred_region
      %170 = dma.done [#allocation12], 512
    $region77: #{tpu_custom_call.1} parent=1 // pred_fallthru
      _
    // Predicated region
    $region78: #{tpu_custom_call.1} parent=1 // pred_check
      _
    $region79: #{tpu_custom_call.1} parent=1 // pred_check_branch
      %172 = sbr.rel (0) target = $region81
    $region80: #{tpu_custom_call.1} parent=1 // pred_region
      %173 = dma.done [#allocation12], 16
    $region81: #{tpu_custom_call.1} parent=1 // pred_fallthru
      _
    // Predicated region
    $region82: #{tpu_custom_call.1} parent=1 // pred_check
      _
    $region83: #{tpu_custom_call.1} parent=1 // pred_check_branch
      %175 = sbr.rel (0) target = $region85
    $region84: #{tpu_custom_call.1} parent=1 // pred_region
      %176 = dma.done [#allocation15], 1024
    $region85: #{tpu_custom_call.1} parent=1 // pred_fallthru
      _
    // Predicated region
    $region86: #{tpu_custom_call.1} parent=1 // pred_check
      _
    $region87: #{tpu_custom_call.1} parent=1 // pred_check_branch
      %178 = sbr.rel (0) target = $region89
    $region88: #{tpu_custom_call.1} parent=1 // pred_region
      %179 = dma.done [#allocation15], 32
    $region89: #{tpu_custom_call.1} parent=1 // pred_fallthru
      _
    // Predicated region
    $region90: #{tpu_custom_call.1} parent=1 // pred_check
      _
    $region91: #{tpu_custom_call.1} parent=1 // pred_check_branch
      %181 = sbr.rel (0) target = $region93
    $region92: #{tpu_custom_call.1} parent=1 // pred_region
      %182 = dma.done [#allocation18], 8192
    $region93: #{tpu_custom_call.1} parent=1 // pred_fallthru
      _
    // Predicated region
    $region94: #{tpu_custom_call.1} parent=1 // pred_check
      _
    $region95: #{tpu_custom_call.1} parent=1 // pred_check_branch
      %184 = sbr.rel (0) target = $region97
    $region96: #{tpu_custom_call.1} parent=1 // pred_region
      %185 = dma.done [#allocation18], 32
    $region97: #{tpu_custom_call.1} parent=1 // pred_fallthru
      _
    // Predicated region
    $region98: #{tpu_custom_call.1} parent=1 // pred_check
      _
    $region99: #{tpu_custom_call.1} parent=1 // pred_check_branch
      %187 = sbr.rel (0) target = $region101
    $region100: #{tpu_custom_call.1} parent=1 // pred_region
      %188 = dma.done [#allocation21], 4096
    $region101: #{tpu_custom_call.1} parent=1 // pred_fallthru
      _
    // Predicated region
    $region102: #{tpu_custom_call.1} parent=1 // pred_check
      _
    $region103: #{tpu_custom_call.1} parent=1 // pred_check_branch
      %190 = sbr.rel (0) target = $region105
    $region104: #{tpu_custom_call.1} parent=1 // pred_region
      %191 = dma.done [#allocation21], 16
    $region105: #{tpu_custom_call.1} parent=1 // pred_fallthru
      _
    %v192 = vlaneseq
    %v193 = vand.u32 %v192, 127
    %vm194 = vcmp.ge.s32.totalorder %v193, 64
    %vm195 = vcmp.lt.s32.totalorder %v193, 96
    %vm196 = vmand %vm194, %vm195
    %v197 = vsel %vm196, 1.0, 0.5
    %v198 = vsel %vm196, 0.0, 0.5
    %v199 = vld [vmem:[%s0] sm:$0xff]
    %v200 = vld [vmem:[%s0 + $0x8] sm:$0xff]
    %v201 = vld [vmem:[%s0 + $0x10] sm:$0xff]
    %v202 = vld [vmem:[%s0 + $0x18] sm:$0xff]
    %v203 = vld [vmem:[%s0 + $0x20] sm:$0xff]
    %v204 = vld [vmem:[%s0 + $0x28] sm:$0xff]
    %v205 = vld [vmem:[%s0 + $0x30] sm:$0xff]
    %v206 = vld [vmem:[%s0 + $0x38] sm:$0xff]
    %v207 = vld [vmem:[#allocation5] sm:$0xff]
    %v208 = vld [vmem:[#allocation5 + $0x8] sm:$0xff]
    %v209 = vld [vmem:[%s3] sm:$0x1]
    %v211 = vlaneseq
    %v212 = vshrl.u32 %v211, 7
    %v213 = vsub.s32 0, %v212
    %v214 = vrot.slane %v209, %v213
    %vm216 = vcmask 130048
    %v218 = vsel %vm216, %v199, 0
    %v221 = vsel %vm216, %v200, 0
    %v224 = vsel %vm216, %v201, 0
    %v227 = vsel %vm216, %v202, 0
    %v230 = vsel %vm216, %v203, 0
    %v233 = vsel %vm216, %v204, 0
    %v236 = vsel %vm216, %v205, 0
    %v239 = vsel %vm216, %v206, 0
    %241 = vmatprep.subr.mxu0 0.0
    %242 = vmatpush1.msra.mxu0 %v207
    %243 = vmatprep.subr.mxu0 0.0
    %244 = vmatpush1.msra.mxu0 %v208
    %245 = vmatprep.subr.mxu0 0.0
    %246 = vmatpush1.msra.mxu0 0.0
    %247 = vmatprep.subr.mxu0 0.0
    %248 = vmatpush1.msra.mxu0 0.0
    %249 = vmatprep.subr.mxu0 0.0
    %250 = vmatpush1.msra.mxu0 0.0
    %251 = vmatprep.subr.mxu0 0.0
    %252 = vmatpush1.msra.mxu0 0.0
    %253 = vmatprep.subr.mxu0 0.0
    %254 = vmatpush1.msra.mxu0 0.0
    %255 = vmatprep.subr.mxu0 0.0
    %256 = vmatpush1.msra.mxu0 0.0
    %257 = vmatprep.subr.mxu0 0.0
    %258 = vmatpush1.msra.mxu0 0.0
    %259 = vmatprep.subr.mxu0 0.0
    %260 = vmatpush1.msra.mxu0 0.0
    %261 = vmatprep.subr.mxu0 0.0
    %262 = vmatpush1.msra.mxu0 0.0
    %263 = vmatprep.subr.mxu0 0.0
    %264 = vmatpush1.msra.mxu0 0.0
    %265 = vmatprep.subr.mxu0 0.0
    %266 = vmatpush1.msra.mxu0 0.0
    %267 = vmatprep.subr.mxu0 0.0
    %268 = vmatpush1.msra.mxu0 0.0
    %269 = vmatprep.subr.mxu0 0.0
    %270 = vmatpush1.msra.mxu0 0.0
    %271 = vmatprep.subr.mxu0 0.0
    %272 = vmatpush1.msra.mxu0 0.0
    %273 = vmatprep.subr.mxu0 0.0
    %274 = vmatpush1.msra.mxu0 0.0
    %275 = vmatprep.subr.mxu0 0.0
    %276 = vmatpush1.msra.mxu0 0.0
    %277 = vmatprep.subr.mxu0 0.0
    %278 = vmatpush1.msra.mxu0 0.0
    %279 = vmatprep.subr.mxu0 0.0
    %280 = vmatpush1.msra.mxu0 0.0
    %281 = vmatprep.subr.mxu0 0.0
    %282 = vmatpush1.msra.mxu0 0.0
    %283 = vmatprep.subr.mxu0 0.0
    %284 = vmatpush1.msra.mxu0 0.0
    %285 = vmatprep.subr.mxu0 0.0
    %286 = vmatpush1.msra.mxu0 0.0
    %287 = vmatprep.subr.mxu0 0.0
    %288 = vmatpush1.msra.mxu0 0.0
    %289 = vmatprep.subr.mxu0 0.0
    %290 = vmatpush1.msra.mxu0 0.0
    %291 = vmatprep.subr.mxu0 0.0
    %292 = vmatpush1.msra.mxu0 0.0
    %293 = vmatprep.subr.mxu0 0.0
    %294 = vmatpush1.msra.mxu0 0.0
    %295 = vmatprep.subr.mxu0 0.0
    %296 = vmatpush1.msra.mxu0 0.0
    %297 = vmatprep.subr.mxu0 0.0
    %298 = vmatpush1.msra.mxu0 0.0
    %299 = vmatprep.subr.mxu0 0.0
    %300 = vmatpush1.msra.mxu0 0.0
    %301 = vmatprep.subr.mxu0 0.0
    %302 = vmatpush1.msra.mxu0 0.0
    %303 = vmatprep.subr.mxu0 0.0
    %304 = vmatpush1.msra.mxu0 0.0
    %305 = vmatprep.mubr.f32.mxu0 0.0
    %306 = vmatmul.mubr.f32.gmra.mrb[0].mxu0 %v218
    %v307 = vpop.f32.mrb[0].mxu0
    %v308 = vadd.f32 %v214, %v307
    %v309 = vpop.f32.mrb[0].mxu0
    %310 = vmatprep.mubr.f32.mxu0 0.0
    %311 = vmatmul.mubr.f32.gmra.mrb[0].mxu0 %v221
    %v312 = vpop.f32.mrb[0].mxu0
    %v313 = vadd.f32 %v214, %v312
    %v314 = vpop.f32.mrb[0].mxu0
    %315 = vmatprep.mubr.f32.mxu0 0.0
    %316 = vmatmul.mubr.f32.gmra.mrb[0].mxu0 %v224
    %v317 = vpop.f32.mrb[0].mxu0
    %v318 = vadd.f32 %v214, %v317
    %v319 = vpop.f32.mrb[0].mxu0
    %320 = vmatprep.mubr.f32.mxu0 0.0
    %321 = vmatmul.mubr.f32.gmra.mrb[0].mxu0 %v227
    %v322 = vpop.f32.mrb[0].mxu0
    %v323 = vadd.f32 %v214, %v322
    %v324 = vpop.f32.mrb[0].mxu0
    %325 = vmatprep.mubr.f32.mxu0 0.0
    %326 = vmatmul.mubr.f32.gmra.mrb[0].mxu0 %v230
    %v327 = vpop.f32.mrb[0].mxu0
    %v328 = vadd.f32 %v214, %v327
    %v329 = vpop.f32.mrb[0].mxu0
    %330 = vmatprep.mubr.f32.mxu0 0.0
    %331 = vmatmul.mubr.f32.gmra.mrb[0].mxu0 %v233
    %v332 = vpop.f32.mrb[0].mxu0
    %v333 = vadd.f32 %v214, %v332
    %v334 = vpop.f32.mrb[0].mxu0
    %335 = vmatprep.mubr.f32.mxu0 0.0
    %336 = vmatmul.mubr.f32.gmra.mrb[0].mxu0 %v236
    %v337 = vpop.f32.mrb[0].mxu0
    %v338 = vadd.f32 %v214, %v337
    %v339 = vpop.f32.mrb[0].mxu0
    %340 = vmatprep.mubr.f32.mxu0 0.0
    %341 = vmatmul.mubr.f32.gmra.mrb[0].mxu0 %v239
    %v342 = vpop.f32.mrb[0].mxu0
    %v343 = vadd.f32 %v214, %v342
    %v344 = vpop.f32.mrb[0].mxu0
    %345 = vdwg.mxu0
    %346 = vst [vmem:[#allocation2] sm:$0xff] %v308
    %347 = vst [vmem:[#allocation2 + $0x8] sm:$0xff] %v313
    %348 = vst [vmem:[#allocation2 + $0x10] sm:$0xff] %v318
    %349 = vst [vmem:[#allocation2 + $0x18] sm:$0xff] %v323
    %350 = vst [vmem:[#allocation2 + $0x20] sm:$0xff] %v328
    %351 = vst [vmem:[#allocation2 + $0x28] sm:$0xff] %v333
    %352 = vst [vmem:[#allocation2 + $0x30] sm:$0xff] %v338
    %353 = vst [vmem:[#allocation2 + $0x38] sm:$0xff] %v343
    %v354 = vld [vmem:[#allocation8] sm:$0xff]
    %v355 = vld [vmem:[#allocation8 + $0x8] sm:$0xff]
    %v356 = vld [vmem:[#allocation8 + $0x10] sm:$0xff]
    %v357 = vld [vmem:[#allocation8 + $0x18] sm:$0xff]
    %v358 = vld [vmem:[#allocation2] sm:$0xff]
    %vm359 = vcmask 261120
    %v361 = vsel %vm359, 0.0, 0
    %363 = vmatprep.subr.mxu0 0.0
    %364 = vmatpush1.msra.mxu0 %v354
    %365 = vmatprep.subr.mxu0 0.0
    %366 = vmatpush1.msra.mxu0 %v355
    %367 = vmatprep.subr.mxu0 0.0
    %368 = vmatpush1.msra.mxu0 %v356
    %369 = vmatprep.subr.mxu0 0.0
    %370 = vmatpush1.msra.mxu0 %v357
    %371 = vmatprep.subr.mxu0 0.0
    %372 = vmatpush1.msra.mxu0 0.0
    %373 = vmatprep.subr.mxu0 0.0
    %374 = vmatpush1.msra.mxu0 0.0
    %375 = vmatprep.subr.mxu0 0.0
    %376 = vmatpush1.msra.mxu0 0.0
    %377 = vmatprep.subr.mxu0 0.0
    %378 = vmatpush1.msra.mxu0 0.0
    %379 = vmatprep.subr.mxu0 0.0
    %380 = vmatpush1.msra.mxu0 0.0
    %381 = vmatprep.subr.mxu0 0.0
    %382 = vmatpush1.msra.mxu0 0.0
    %383 = vmatprep.subr.mxu0 0.0
    %384 = vmatpush1.msra.mxu0 0.0
    %385 = vmatprep.subr.mxu0 0.0
    %386 = vmatpush1.msra.mxu0 0.0
    %387 = vmatprep.subr.mxu0 0.0
    %388 = vmatpush1.msra.mxu0 0.0
    %389 = vmatprep.subr.mxu0 0.0
    %390 = vmatpush1.msra.mxu0 0.0
    %391 = vmatprep.subr.mxu0 0.0
    %392 = vmatpush1.msra.mxu0 0.0
    %393 = vmatprep.subr.mxu0 0.0
    %394 = vmatpush1.msra.mxu0 0.0
    %395 = vmatprep.subr.mxu0 0.0
    %396 = vmatpush1.msra.mxu0 0.0
    %397 = vmatprep.subr.mxu0 0.0
    %398 = vmatpush1.msra.mxu0 0.0
    %399 = vmatprep.subr.mxu0 0.0
    %400 = vmatpush1.msra.mxu0 0.0
    %401 = vmatprep.subr.mxu0 0.0
    %402 = vmatpush1.msra.mxu0 0.0
    %403 = vmatprep.subr.mxu0 0.0
    %404 = vmatpush1.msra.mxu0 0.0
    %405 = vmatprep.subr.mxu0 0.0
    %406 = vmatpush1.msra.mxu0 0.0
    %407 = vmatprep.subr.mxu0 0.0
    %408 = vmatpush1.msra.mxu0 0.0
    %409 = vmatprep.subr.mxu0 0.0
    %410 = vmatpush1.msra.mxu0 0.0
    %411 = vmatprep.subr.mxu0 0.0
    %412 = vmatpush1.msra.mxu0 0.0
    %413 = vmatprep.subr.mxu0 0.0
    %414 = vmatpush1.msra.mxu0 0.0
    %415 = vmatprep.subr.mxu0 0.0
    %416 = vmatpush1.msra.mxu0 0.0
    %417 = vmatprep.subr.mxu0 0.0
    %418 = vmatpush1.msra.mxu0 0.0
    %419 = vmatprep.subr.mxu0 0.0
    %420 = vmatpush1.msra.mxu0 0.0
    %421 = vmatprep.subr.mxu0 0.0
    %422 = vmatpush1.msra.mxu0 0.0
    %423 = vmatprep.subr.mxu0 0.0
    %424 = vmatpush1.msra.mxu0 0.0
    %425 = vmatprep.subr.mxu0 0.0
    %426 = vmatpush1.msra.mxu0 0.0
    %427 = vmatprep.mubr.f32.mxu0 0.0
    %428 = vmatmul.mubr.f32.gmra.mrb[0].mxu0 %v361
    %v429 = vpop.f32.mrb[0].mxu0
    %v430 = vadd.f32 0.0, %v429
    %v431 = vpop.f32.mrb[0].mxu0
    %432 = vdwg.mxu0
    %v433 = vadd.f32 %v358, %v430
    %v434 = vmul.f32 %v433, %v197
    %v435 = vtanh.pop %v434
    %v436 = vmul.f32 %v435, %v197
    %v437 = vadd.f32 %v436, %v198
    %v438 = vmul.f32 %v437, 0.0
    %440 = vrot.lane.b32.xlu0 %v437, 64
    %v441 = vpop.permute.xlu0 %440
    %v443 = vmul.f32 %v437, %v441
    %445 = vrot.lane.b32.xlu0 %v443, 32
    %v446 = vpop.permute.xlu0 %445
    %v448 = vadd.f32 %v438, %v446
    %v449 = vtanh.pop %v448
    %451 = vrot.lane.b32.xlu0 %v449, 64
    %v452 = vpop.permute.xlu0 %451
    %v454 = vmul.f32 %v437, %v452
    %456 = vrot.lane.b32.xlu0 %v454, 32
    %v457 = vpop.permute.xlu0 %456
    %459 = vst.msk [vmem:[#allocation3] sm:$0xff] %vm359, %v457
    %v460 = vld [vmem:[#allocation2 + $0x8] sm:$0xff]
    %v461 = vsel %vm359, %v457, 0
    %463 = vmatprep.subr.mxu0 0.0
    %464 = vmatpush1.msra.mxu0 %v354
    %465 = vmatprep.subr.mxu0 0.0
    %466 = vmatpush1.msra.mxu0 %v355
    %467 = vmatprep.subr.mxu0 0.0
    %468 = vmatpush1.msra.mxu0 %v356
    %469 = vmatprep.subr.mxu0 0.0
    %470 = vmatpush1.msra.mxu0 %v357
    %471 = vmatprep.subr.mxu0 0.0
    %472 = vmatpush1.msra.mxu0 0.0
    %473 = vmatprep.subr.mxu0 0.0
    %474 = vmatpush1.msra.mxu0 0.0
    %475 = vmatprep.subr.mxu0 0.0
    %476 = vmatpush1.msra.mxu0 0.0
    %477 = vmatprep.subr.mxu0 0.0
    %478 = vmatpush1.msra.mxu0 0.0
    %479 = vmatprep.subr.mxu0 0.0
    %480 = vmatpush1.msra.mxu0 0.0
    %481 = vmatprep.subr.mxu0 0.0
    %482 = vmatpush1.msra.mxu0 0.0
    %483 = vmatprep.subr.mxu0 0.0
    %484 = vmatpush1.msra.mxu0 0.0
    %485 = vmatprep.subr.mxu0 0.0
    %486 = vmatpush1.msra.mxu0 0.0
    %487 = vmatprep.subr.mxu0 0.0
    %488 = vmatpush1.msra.mxu0 0.0
    %489 = vmatprep.subr.mxu0 0.0
    %490 = vmatpush1.msra.mxu0 0.0
    %491 = vmatprep.subr.mxu0 0.0
    %492 = vmatpush1.msra.mxu0 0.0
    %493 = vmatprep.subr.mxu0 0.0
    %494 = vmatpush1.msra.mxu0 0.0
    %495 = vmatprep.subr.mxu0 0.0
    %496 = vmatpush1.msra.mxu0 0.0
    %497 = vmatprep.subr.mxu0 0.0
    %498 = vmatpush1.msra.mxu0 0.0
    %499 = vmatprep.subr.mxu0 0.0
    %500 = vmatpush1.msra.mxu0 0.0
    %501 = vmatprep.subr.mxu0 0.0
    %502 = vmatpush1.msra.mxu0 0.0
    %503 = vmatprep.subr.mxu0 0.0
    %504 = vmatpush1.msra.mxu0 0.0
    %505 = vmatprep.subr.mxu0 0.0
    %506 = vmatpush1.msra.mxu0 0.0
    %507 = vmatprep.subr.mxu0 0.0
    %508 = vmatpush1.msra.mxu0 0.0
    %509 = vmatprep.subr.mxu0 0.0
    %510 = vmatpush1.msra.mxu0 0.0
    %511 = vmatprep.subr.mxu0 0.0
    %512 = vmatpush1.msra.mxu0 0.0
    %513 = vmatprep.subr.mxu0 0.0
    %514 = vmatpush1.msra.mxu0 0.0
    %515 = vmatprep.subr.mxu0 0.0
    %516 = vmatpush1.msra.mxu0 0.0
    %517 = vmatprep.subr.mxu0 0.0
    %518 = vmatpush1.msra.mxu0 0.0
    %519 = vmatprep.subr.mxu0 0.0
    %520 = vmatpush1.msra.mxu0 0.0
    %521 = vmatprep.subr.mxu0 0.0
    %522 = vmatpush1.msra.mxu0 0.0
    %523 = vmatprep.subr.mxu0 0.0
    %524 = vmatpush1.msra.mxu0 0.0
    %525 = vmatprep.subr.mxu0 0.0
    %526 = vmatpush1.msra.mxu0 0.0
    %527 = vmatprep.mubr.f32.mxu0 0.0
    %528 = vmatmul.mubr.f32.gmra.mrb[0].mxu0 %v461
    %v529 = vpop.f32.mrb[0].mxu0
    %v530 = vadd.f32 0.0, %v529
    %v531 = vpop.f32.mrb[0].mxu0
    %532 = vdwg.mxu0
    %v533 = vadd.f32 %v460, %v530
    %v534 = vmul.f32 %v533, %v197
    %v535 = vtanh.pop %v534
    %v536 = vmul.f32 %v535, %v197
    %v537 = vadd.f32 %v536, %v198
    %v538 = vmul.f32 %v537, %v448
    %540 = vrot.lane.b32.xlu0 %v537, 64
    %v541 = vpop.permute.xlu0 %540
    %v543 = vmul.f32 %v537, %v541
    %545 = vrot.lane.b32.xlu0 %v543, 32
    %v546 = vpop.permute.xlu0 %545
    %v548 = vadd.f32 %v538, %v546
    %v549 = vtanh.pop %v548
    %551 = vrot.lane.b32.xlu0 %v549, 64
    %v552 = vpop.permute.xlu0 %551
    %v554 = vmul.f32 %v537, %v552
    %556 = vrot.lane.b32.xlu0 %v554, 32
    %v557 = vpop.permute.xlu0 %556
    %559 = vst.msk [vmem:[#allocation3 + $0x8] sm:$0xff] %vm359, %v557
    %v560 = vld [vmem:[#allocation2 + $0x10] sm:$0xff]
    %v561 = vsel %vm359, %v557, 0
    %563 = vmatprep.subr.mxu0 0.0
    %564 = vmatpush1.msra.mxu0 %v354
    %565 = vmatprep.subr.mxu0 0.0
    %566 = vmatpush1.msra.mxu0 %v355
    %567 = vmatprep.subr.mxu0 0.0
    %568 = vmatpush1.msra.mxu0 %v356
    %569 = vmatprep.subr.mxu0 0.0
    %570 = vmatpush1.msra.mxu0 %v357
    %571 = vmatprep.subr.mxu0 0.0
    %572 = vmatpush1.msra.mxu0 0.0
    %573 = vmatprep.subr.mxu0 0.0
    %574 = vmatpush1.msra.mxu0 0.0
    %575 = vmatprep.subr.mxu0 0.0
    %576 = vmatpush1.msra.mxu0 0.0
    %577 = vmatprep.subr.mxu0 0.0
    %578 = vmatpush1.msra.mxu0 0.0
    %579 = vmatprep.subr.mxu0 0.0
    %580 = vmatpush1.msra.mxu0 0.0
    %581 = vmatprep.subr.mxu0 0.0
    %582 = vmatpush1.msra.mxu0 0.0
    %583 = vmatprep.subr.mxu0 0.0
    %584 = vmatpush1.msra.mxu0 0.0
    %585 = vmatprep.subr.mxu0 0.0
    %586 = vmatpush1.msra.mxu0 0.0
    %587 = vmatprep.subr.mxu0 0.0
    %588 = vmatpush1.msra.mxu0 0.0
    %589 = vmatprep.subr.mxu0 0.0
    %590 = vmatpush1.msra.mxu0 0.0
    %591 = vmatprep.subr.mxu0 0.0
    %592 = vmatpush1.msra.mxu0 0.0
    %593 = vmatprep.subr.mxu0 0.0
    %594 = vmatpush1.msra.mxu0 0.0
    %595 = vmatprep.subr.mxu0 0.0
    %596 = vmatpush1.msra.mxu0 0.0
    %597 = vmatprep.subr.mxu0 0.0
    %598 = vmatpush1.msra.mxu0 0.0
    %599 = vmatprep.subr.mxu0 0.0
    %600 = vmatpush1.msra.mxu0 0.0
    %601 = vmatprep.subr.mxu0 0.0
    %602 = vmatpush1.msra.mxu0 0.0
    %603 = vmatprep.subr.mxu0 0.0
    %604 = vmatpush1.msra.mxu0 0.0
    %605 = vmatprep.subr.mxu0 0.0
    %606 = vmatpush1.msra.mxu0 0.0
    %607 = vmatprep.subr.mxu0 0.0
    %608 = vmatpush1.msra.mxu0 0.0
    %609 = vmatprep.subr.mxu0 0.0
    %610 = vmatpush1.msra.mxu0 0.0
    %611 = vmatprep.subr.mxu0 0.0
    %612 = vmatpush1.msra.mxu0 0.0
    %613 = vmatprep.subr.mxu0 0.0
    %614 = vmatpush1.msra.mxu0 0.0
    %615 = vmatprep.subr.mxu0 0.0
    %616 = vmatpush1.msra.mxu0 0.0
    %617 = vmatprep.subr.mxu0 0.0
    %618 = vmatpush1.msra.mxu0 0.0
    %619 = vmatprep.subr.mxu0 0.0
    %620 = vmatpush1.msra.mxu0 0.0
    %621 = vmatprep.subr.mxu0 0.0
    %622 = vmatpush1.msra.mxu0 0.0
    %623 = vmatprep.subr.mxu0 0.0
    %624 = vmatpush1.msra.mxu0 0.0
    %625 = vmatprep.subr.mxu0 0.0
    %626 = vmatpush1.msra.mxu0 0.0
    %627 = vmatprep.mubr.f32.mxu0 0.0
    %628 = vmatmul.mubr.f32.gmra.mrb[0].mxu0 %v561
    %v629 = vpop.f32.mrb[0].mxu0
    %v630 = vadd.f32 0.0, %v629
    %v631 = vpop.f32.mrb[0].mxu0
    %632 = vdwg.mxu0
    %v633 = vadd.f32 %v560, %v630
    %v634 = vmul.f32 %v633, %v197
    %v635 = vtanh.pop %v634
    %v636 = vmul.f32 %v635, %v197
    %v637 = vadd.f32 %v636, %v198
    %v638 = vmul.f32 %v637, %v548
    %640 = vrot.lane.b32.xlu0 %v637, 64
    %v641 = vpop.permute.xlu0 %640
    %v643 = vmul.f32 %v637, %v641
    %645 = vrot.lane.b32.xlu0 %v643, 32
    %v646 = vpop.permute.xlu0 %645
    %v648 = vadd.f32 %v638, %v646
    %v649 = vtanh.pop %v648
    %651 = vrot.lane.b32.xlu0 %v649, 64
    %v652 = vpop.permute.xlu0 %651
    %v654 = vmul.f32 %v637, %v652
    %656 = vrot.lane.b32.xlu0 %v654, 32
    %v657 = vpop.permute.xlu0 %656
    %659 = vst.msk [vmem:[#allocation3 + $0x10] sm:$0xff] %vm359, %v657
    %v660 = vld [vmem:[#allocation2 + $0x18] sm:$0xff]
    %v661 = vsel %vm359, %v657, 0
    %663 = vmatprep.subr.mxu0 0.0
    %664 = vmatpush1.msra.mxu0 %v354
    %665 = vmatprep.subr.mxu0 0.0
    %666 = vmatpush1.msra.mxu0 %v355
    %667 = vmatprep.subr.mxu0 0.0
    %668 = vmatpush1.msra.mxu0 %v356
    %669 = vmatprep.subr.mxu0 0.0
    %670 = vmatpush1.msra.mxu0 %v357
    %671 = vmatprep.subr.mxu0 0.0
    %672 = vmatpush1.msra.mxu0 0.0
    %673 = vmatprep.subr.mxu0 0.0
    %674 = vmatpush1.msra.mxu0 0.0
    %675 = vmatprep.subr.mxu0 0.0
    %676 = vmatpush1.msra.mxu0 0.0
    %677 = vmatprep.subr.mxu0 0.0
    %678 = vmatpush1.msra.mxu0 0.0
    %679 = vmatprep.subr.mxu0 0.0
    %680 = vmatpush1.msra.mxu0 0.0
    %681 = vmatprep.subr.mxu0 0.0
    %682 = vmatpush1.msra.mxu0 0.0
    %683 = vmatprep.subr.mxu0 0.0
    %684 = vmatpush1.msra.mxu0 0.0
    %685 = vmatprep.subr.mxu0 0.0
    %686 = vmatpush1.msra.mxu0 0.0
    %687 = vmatprep.subr.mxu0 0.0
    %688 = vmatpush1.msra.mxu0 0.0
    %689 = vmatprep.subr.mxu0 0.0
    %690 = vmatpush1.msra.mxu0 0.0
    %691 = vmatprep.subr.mxu0 0.0
    %692 = vmatpush1.msra.mxu0 0.0
    %693 = vmatprep.subr.mxu0 0.0
    %694 = vmatpush1.msra.mxu0 0.0
    %695 = vmatprep.subr.mxu0 0.0
    %696 = vmatpush1.msra.mxu0 0.0
    %697 = vmatprep.subr.mxu0 0.0
    %698 = vmatpush1.msra.mxu0 0.0
    %699 = vmatprep.subr.mxu0 0.0
    %700 = vmatpush1.msra.mxu0 0.0
    %701 = vmatprep.subr.mxu0 0.0
    %702 = vmatpush1.msra.mxu0 0.0
    %703 = vmatprep.subr.mxu0 0.0
    %704 = vmatpush1.msra.mxu0 0.0
    %705 = vmatprep.subr.mxu0 0.0
    %706 = vmatpush1.msra.mxu0 0.0
    %707 = vmatprep.subr.mxu0 0.0
    %708 = vmatpush1.msra.mxu0 0.0
    %709 = vmatprep.subr.mxu0 0.0
    %710 = vmatpush1.msra.mxu0 0.0
    %711 = vmatprep.subr.mxu0 0.0
    %712 = vmatpush1.msra.mxu0 0.0
    %713 = vmatprep.subr.mxu0 0.0
    %714 = vmatpush1.msra.mxu0 0.0
    %715 = vmatprep.subr.mxu0 0.0
    %716 = vmatpush1.msra.mxu0 0.0
    %717 = vmatprep.subr.mxu0 0.0
    %718 = vmatpush1.msra.mxu0 0.0
    %719 = vmatprep.subr.mxu0 0.0
    %720 = vmatpush1.msra.mxu0 0.0
    %721 = vmatprep.subr.mxu0 0.0
    %722 = vmatpush1.msra.mxu0 0.0
    %723 = vmatprep.subr.mxu0 0.0
    %724 = vmatpush1.msra.mxu0 0.0
    %725 = vmatprep.subr.mxu0 0.0
    %726 = vmatpush1.msra.mxu0 0.0
    %727 = vmatprep.mubr.f32.mxu0 0.0
    %728 = vmatmul.mubr.f32.gmra.mrb[0].mxu0 %v661
    %v729 = vpop.f32.mrb[0].mxu0
    %v730 = vadd.f32 0.0, %v729
    %v731 = vpop.f32.mrb[0].mxu0
    %732 = vdwg.mxu0
    %v733 = vadd.f32 %v660, %v730
    %v734 = vmul.f32 %v733, %v197
    %v735 = vtanh.pop %v734
    %v736 = vmul.f32 %v735, %v197
    %v737 = vadd.f32 %v736, %v198
    %v738 = vmul.f32 %v737, %v648
    %740 = vrot.lane.b32.xlu0 %v737, 64
    %v741 = vpop.permute.xlu0 %740
    %v743 = vmul.f32 %v737, %v741
    %745 = vrot.lane.b32.xlu0 %v743, 32
    %v746 = vpop.permute.xlu0 %745
    %v748 = vadd.f32 %v738, %v746
    %v749 = vtanh.pop %v748
    %751 = vrot.lane.b32.xlu0 %v749, 64
    %v752 = vpop.permute.xlu0 %751
    %v754 = vmul.f32 %v737, %v752
    %756 = vrot.lane.b32.xlu0 %v754, 32
    %v757 = vpop.permute.xlu0 %756
    %759 = vst.msk [vmem:[#allocation3 + $0x18] sm:$0xff] %vm359, %v757
    %v760 = vld [vmem:[#allocation2 + $0x20] sm:$0xff]
    %v761 = vsel %vm359, %v757, 0
    %763 = vmatprep.subr.mxu0 0.0
    %764 = vmatpush1.msra.mxu0 %v354
    %765 = vmatprep.subr.mxu0 0.0
    %766 = vmatpush1.msra.mxu0 %v355
    %767 = vmatprep.subr.mxu0 0.0
    %768 = vmatpush1.msra.mxu0 %v356
    %769 = vmatprep.subr.mxu0 0.0
    %770 = vmatpush1.msra.mxu0 %v357
    %771 = vmatprep.subr.mxu0 0.0
    %772 = vmatpush1.msra.mxu0 0.0
    %773 = vmatprep.subr.mxu0 0.0
    %774 = vmatpush1.msra.mxu0 0.0
    %775 = vmatprep.subr.mxu0 0.0
    %776 = vmatpush1.msra.mxu0 0.0
    %777 = vmatprep.subr.mxu0 0.0
    %778 = vmatpush1.msra.mxu0 0.0
    %779 = vmatprep.subr.mxu0 0.0
    %780 = vmatpush1.msra.mxu0 0.0
    %781 = vmatprep.subr.mxu0 0.0
    %782 = vmatpush1.msra.mxu0 0.0
    %783 = vmatprep.subr.mxu0 0.0
    %784 = vmatpush1.msra.mxu0 0.0
    %785 = vmatprep.subr.mxu0 0.0
    %786 = vmatpush1.msra.mxu0 0.0
    %787 = vmatprep.subr.mxu0 0.0
    %788 = vmatpush1.msra.mxu0 0.0
    %789 = vmatprep.subr.mxu0 0.0
    %790 = vmatpush1.msra.mxu0 0.0
    %791 = vmatprep.subr.mxu0 0.0
    %792 = vmatpush1.msra.mxu0 0.0
    %793 = vmatprep.subr.mxu0 0.0
    %794 = vmatpush1.msra.mxu0 0.0
    %795 = vmatprep.subr.mxu0 0.0
    %796 = vmatpush1.msra.mxu0 0.0
    %797 = vmatprep.subr.mxu0 0.0
    %798 = vmatpush1.msra.mxu0 0.0
    %799 = vmatprep.subr.mxu0 0.0
    %800 = vmatpush1.msra.mxu0 0.0
    %801 = vmatprep.subr.mxu0 0.0
    %802 = vmatpush1.msra.mxu0 0.0
    %803 = vmatprep.subr.mxu0 0.0
    %804 = vmatpush1.msra.mxu0 0.0
    %805 = vmatprep.subr.mxu0 0.0
    %806 = vmatpush1.msra.mxu0 0.0
    %807 = vmatprep.subr.mxu0 0.0
    %808 = vmatpush1.msra.mxu0 0.0
    %809 = vmatprep.subr.mxu0 0.0
    %810 = vmatpush1.msra.mxu0 0.0
    %811 = vmatprep.subr.mxu0 0.0
    %812 = vmatpush1.msra.mxu0 0.0
    %813 = vmatprep.subr.mxu0 0.0
    %814 = vmatpush1.msra.mxu0 0.0
    %815 = vmatprep.subr.mxu0 0.0
    %816 = vmatpush1.msra.mxu0 0.0
    %817 = vmatprep.subr.mxu0 0.0
    %818 = vmatpush1.msra.mxu0 0.0
    %819 = vmatprep.subr.mxu0 0.0
    %820 = vmatpush1.msra.mxu0 0.0
    %821 = vmatprep.subr.mxu0 0.0
    %822 = vmatpush1.msra.mxu0 0.0
    %823 = vmatprep.subr.mxu0 0.0
    %824 = vmatpush1.msra.mxu0 0.0
    %825 = vmatprep.subr.mxu0 0.0
    %826 = vmatpush1.msra.mxu0 0.0
    %827 = vmatprep.mubr.f32.mxu0 0.0
    %828 = vmatmul.mubr.f32.gmra.mrb[0].mxu0 %v761
    %v829 = vpop.f32.mrb[0].mxu0
    %v830 = vadd.f32 0.0, %v829
    %v831 = vpop.f32.mrb[0].mxu0
    %832 = vdwg.mxu0
    %v833 = vadd.f32 %v760, %v830
    %v834 = vmul.f32 %v833, %v197
    %v835 = vtanh.pop %v834
    %v836 = vmul.f32 %v835, %v197
    %v837 = vadd.f32 %v836, %v198
    %v838 = vmul.f32 %v837, %v748
    %840 = vrot.lane.b32.xlu0 %v837, 64
    %v841 = vpop.permute.xlu0 %840
    %v843 = vmul.f32 %v837, %v841
    %845 = vrot.lane.b32.xlu0 %v843, 32
    %v846 = vpop.permute.xlu0 %845
    %v848 = vadd.f32 %v838, %v846
    %v849 = vtanh.pop %v848
    %851 = vrot.lane.b32.xlu0 %v849, 64
    %v852 = vpop.permute.xlu0 %851
    %v854 = vmul.f32 %v837, %v852
    %856 = vrot.lane.b32.xlu0 %v854, 32
    %v857 = vpop.permute.xlu0 %856
    %859 = vst.msk [vmem:[#allocation3 + $0x20] sm:$0xff] %vm359, %v857
    %v860 = vld [vmem:[#allocation2 + $0x28] sm:$0xff]
    %v861 = vsel %vm359, %v857, 0
    %863 = vmatprep.subr.mxu0 0.0
    %864 = vmatpush1.msra.mxu0 %v354
    %865 = vmatprep.subr.mxu0 0.0
    %866 = vmatpush1.msra.mxu0 %v355
    %867 = vmatprep.subr.mxu0 0.0
    %868 = vmatpush1.msra.mxu0 %v356
    %869 = vmatprep.subr.mxu0 0.0
    %870 = vmatpush1.msra.mxu0 %v357
    %871 = vmatprep.subr.mxu0 0.0
    %872 = vmatpush1.msra.mxu0 0.0
    %873 = vmatprep.subr.mxu0 0.0
    %874 = vmatpush1.msra.mxu0 0.0
    %875 = vmatprep.subr.mxu0 0.0
    %876 = vmatpush1.msra.mxu0 0.0
    %877 = vmatprep.subr.mxu0 0.0
    %878 = vmatpush1.msra.mxu0 0.0
    %879 = vmatprep.subr.mxu0 0.0
    %880 = vmatpush1.msra.mxu0 0.0
    %881 = vmatprep.subr.mxu0 0.0
    %882 = vmatpush1.msra.mxu0 0.0
    %883 = vmatprep.subr.mxu0 0.0
    %884 = vmatpush1.msra.mxu0 0.0
    %885 = vmatprep.subr.mxu0 0.0
    %886 = vmatpush1.msra.mxu0 0.0
    %887 = vmatprep.subr.mxu0 0.0
    %888 = vmatpush1.msra.mxu0 0.0
    %889 = vmatprep.subr.mxu0 0.0
    %890 = vmatpush1.msra.mxu0 0.0
    %891 = vmatprep.subr.mxu0 0.0
    %892 = vmatpush1.msra.mxu0 0.0
    %893 = vmatprep.subr.mxu0 0.0
    %894 = vmatpush1.msra.mxu0 0.0
    %895 = vmatprep.subr.mxu0 0.0
    %896 = vmatpush1.msra.mxu0 0.0
    %897 = vmatprep.subr.mxu0 0.0
    %898 = vmatpush1.msra.mxu0 0.0
    %899 = vmatprep.subr.mxu0 0.0
    %900 = vmatpush1.msra.mxu0 0.0
    %901 = vmatprep.subr.mxu0 0.0
    %902 = vmatpush1.msra.mxu0 0.0
    %903 = vmatprep.subr.mxu0 0.0
    %904 = vmatpush1.msra.mxu0 0.0
    %905 = vmatprep.subr.mxu0 0.0
    %906 = vmatpush1.msra.mxu0 0.0
    %907 = vmatprep.subr.mxu0 0.0
    %908 = vmatpush1.msra.mxu0 0.0
    %909 = vmatprep.subr.mxu0 0.0
    %910 = vmatpush1.msra.mxu0 0.0
    %911 = vmatprep.subr.mxu0 0.0
    %912 = vmatpush1.msra.mxu0 0.0
    %913 = vmatprep.subr.mxu0 0.0
    %914 = vmatpush1.msra.mxu0 0.0
    %915 = vmatprep.subr.mxu0 0.0
    %916 = vmatpush1.msra.mxu0 0.0
    %917 = vmatprep.subr.mxu0 0.0
    %918 = vmatpush1.msra.mxu0 0.0
    %919 = vmatprep.subr.mxu0 0.0
    %920 = vmatpush1.msra.mxu0 0.0
    %921 = vmatprep.subr.mxu0 0.0
    %922 = vmatpush1.msra.mxu0 0.0
    %923 = vmatprep.subr.mxu0 0.0
    %924 = vmatpush1.msra.mxu0 0.0
    %925 = vmatprep.subr.mxu0 0.0
    %926 = vmatpush1.msra.mxu0 0.0
    %927 = vmatprep.mubr.f32.mxu0 0.0
    %928 = vmatmul.mubr.f32.gmra.mrb[0].mxu0 %v861
    %v929 = vpop.f32.mrb[0].mxu0
    %v930 = vadd.f32 0.0, %v929
    %v931 = vpop.f32.mrb[0].mxu0
    %932 = vdwg.mxu0
    %v933 = vadd.f32 %v860, %v930
    %v934 = vmul.f32 %v933, %v197
    %v935 = vtanh.pop %v934
    %v936 = vmul.f32 %v935, %v197
    %v937 = vadd.f32 %v936, %v198
    %v938 = vmul.f32 %v937, %v848
    %940 = vrot.lane.b32.xlu0 %v937, 64
    %v941 = vpop.permute.xlu0 %940
    %v943 = vmul.f32 %v937, %v941
    %945 = vrot.lane.b32.xlu0 %v943, 32
    %v946 = vpop.permute.xlu0 %945
    %v948 = vadd.f32 %v938, %v946
    %v949 = vtanh.pop %v948
    %951 = vrot.lane.b32.xlu0 %v949, 64
    %v952 = vpop.permute.xlu0 %951
    %v954 = vmul.f32 %v937, %v952
    %956 = vrot.lane.b32.xlu0 %v954, 32
    %v957 = vpop.permute.xlu0 %956
    %959 = vst.msk [vmem:[#allocation3 + $0x28] sm:$0xff] %vm359, %v957
    %v960 = vld [vmem:[#allocation2 + $0x30] sm:$0xff]
    %v961 = vsel %vm359, %v957, 0
    %963 = vmatprep.subr.mxu0 0.0
    %964 = vmatpush1.msra.mxu0 %v354
    %965 = vmatprep.subr.mxu0 0.0
    %966 = vmatpush1.msra.mxu0 %v355
    %967 = vmatprep.subr.mxu0 0.0
    %968 = vmatpush1.msra.mxu0 %v356
    %969 = vmatprep.subr.mxu0 0.0
    %970 = vmatpush1.msra.mxu0 %v357
    %971 = vmatprep.subr.mxu0 0.0
    %972 = vmatpush1.msra.mxu0 0.0
    %973 = vmatprep.subr.mxu0 0.0
    %974 = vmatpush1.msra.mxu0 0.0
    %975 = vmatprep.subr.mxu0 0.0
    %976 = vmatpush1.msra.mxu0 0.0
    %977 = vmatprep.subr.mxu0 0.0
    %978 = vmatpush1.msra.mxu0 0.0
    %979 = vmatprep.subr.mxu0 0.0
    %980 = vmatpush1.msra.mxu0 0.0
    %981 = vmatprep.subr.mxu0 0.0
    %982 = vmatpush1.msra.mxu0 0.0
    %983 = vmatprep.subr.mxu0 0.0
    %984 = vmatpush1.msra.mxu0 0.0
    %985 = vmatprep.subr.mxu0 0.0
    %986 = vmatpush1.msra.mxu0 0.0
    %987 = vmatprep.subr.mxu0 0.0
    %988 = vmatpush1.msra.mxu0 0.0
    %989 = vmatprep.subr.mxu0 0.0
    %990 = vmatpush1.msra.mxu0 0.0
    %991 = vmatprep.subr.mxu0 0.0
    %992 = vmatpush1.msra.mxu0 0.0
    %993 = vmatprep.subr.mxu0 0.0
    %994 = vmatpush1.msra.mxu0 0.0
    %995 = vmatprep.subr.mxu0 0.0
    %996 = vmatpush1.msra.mxu0 0.0
    %997 = vmatprep.subr.mxu0 0.0
    %998 = vmatpush1.msra.mxu0 0.0
    %999 = vmatprep.subr.mxu0 0.0
    %1000 = vmatpush1.msra.mxu0 0.0
    %1001 = vmatprep.subr.mxu0 0.0
    %1002 = vmatpush1.msra.mxu0 0.0
    %1003 = vmatprep.subr.mxu0 0.0
    %1004 = vmatpush1.msra.mxu0 0.0
    %1005 = vmatprep.subr.mxu0 0.0
    %1006 = vmatpush1.msra.mxu0 0.0
    %1007 = vmatprep.subr.mxu0 0.0
    %1008 = vmatpush1.msra.mxu0 0.0
    %1009 = vmatprep.subr.mxu0 0.0
    %1010 = vmatpush1.msra.mxu0 0.0
    %1011 = vmatprep.subr.mxu0 0.0
    %1012 = vmatpush1.msra.mxu0 0.0
    %1013 = vmatprep.subr.mxu0 0.0
    %1014 = vmatpush1.msra.mxu0 0.0
    %1015 = vmatprep.subr.mxu0 0.0
    %1016 = vmatpush1.msra.mxu0 0.0
    %1017 = vmatprep.subr.mxu0 0.0
    %1018 = vmatpush1.msra.mxu0 0.0
    %1019 = vmatprep.subr.mxu0 0.0
    %1020 = vmatpush1.msra.mxu0 0.0
    %1021 = vmatprep.subr.mxu0 0.0
    %1022 = vmatpush1.msra.mxu0 0.0
    %1023 = vmatprep.subr.mxu0 0.0
    %1024 = vmatpush1.msra.mxu0 0.0
    %1025 = vmatprep.subr.mxu0 0.0
    %1026 = vmatpush1.msra.mxu0 0.0
    %1027 = vmatprep.mubr.f32.mxu0 0.0
    %1028 = vmatmul.mubr.f32.gmra.mrb[0].mxu0 %v961
    %v1029 = vpop.f32.mrb[0].mxu0
    %v1030 = vadd.f32 0.0, %v1029
    %v1031 = vpop.f32.mrb[0].mxu0
    %1032 = vdwg.mxu0
    %v1033 = vadd.f32 %v960, %v1030
    %v1034 = vmul.f32 %v1033, %v197
    %v1035 = vtanh.pop %v1034
    %v1036 = vmul.f32 %v1035, %v197
    %v1037 = vadd.f32 %v1036, %v198
    %v1038 = vmul.f32 %v1037, %v948
    %1040 = vrot.lane.b32.xlu0 %v1037, 64
    %v1041 = vpop.permute.xlu0 %1040
    %v1043 = vmul.f32 %v1037, %v1041
    %1045 = vrot.lane.b32.xlu0 %v1043, 32
    %v1046 = vpop.permute.xlu0 %1045
    %v1048 = vadd.f32 %v1038, %v1046
    %v1049 = vtanh.pop %v1048
    %1051 = vrot.lane.b32.xlu0 %v1049, 64
    %v1052 = vpop.permute.xlu0 %1051
    %v1054 = vmul.f32 %v1037, %v1052
    %1056 = vrot.lane.b32.xlu0 %v1054, 32
    %v1057 = vpop.permute.xlu0 %1056
    %1059 = vst.msk [vmem:[#allocation3 + $0x30] sm:$0xff] %vm359, %v1057
    %v1060 = vld [vmem:[#allocation2 + $0x38] sm:$0xff]
    %v1061 = vsel %vm359, %v1057, 0
    %1063 = vmatprep.subr.mxu0 0.0
    %1064 = vmatpush1.msra.mxu0 %v354
    %1065 = vmatprep.subr.mxu0 0.0
    %1066 = vmatpush1.msra.mxu0 %v355
    %1067 = vmatprep.subr.mxu0 0.0
    %1068 = vmatpush1.msra.mxu0 %v356
    %1069 = vmatprep.subr.mxu0 0.0
    %1070 = vmatpush1.msra.mxu0 %v357
    %1071 = vmatprep.subr.mxu0 0.0
    %1072 = vmatpush1.msra.mxu0 0.0
    %1073 = vmatprep.subr.mxu0 0.0
    %1074 = vmatpush1.msra.mxu0 0.0
    %1075 = vmatprep.subr.mxu0 0.0
    %1076 = vmatpush1.msra.mxu0 0.0
    %1077 = vmatprep.subr.mxu0 0.0
    %1078 = vmatpush1.msra.mxu0 0.0
    %1079 = vmatprep.subr.mxu0 0.0
    %1080 = vmatpush1.msra.mxu0 0.0
    %1081 = vmatprep.subr.mxu0 0.0
    %1082 = vmatpush1.msra.mxu0 0.0
    %1083 = vmatprep.subr.mxu0 0.0
    %1084 = vmatpush1.msra.mxu0 0.0
    %1085 = vmatprep.subr.mxu0 0.0
    %1086 = vmatpush1.msra.mxu0 0.0
    %1087 = vmatprep.subr.mxu0 0.0
    %1088 = vmatpush1.msra.mxu0 0.0
    %1089 = vmatprep.subr.mxu0 0.0
    %1090 = vmatpush1.msra.mxu0 0.0
    %1091 = vmatprep.subr.mxu0 0.0
    %1092 = vmatpush1.msra.mxu0 0.0
    %1093 = vmatprep.subr.mxu0 0.0
    %1094 = vmatpush1.msra.mxu0 0.0
    %1095 = vmatprep.subr.mxu0 0.0
    %1096 = vmatpush1.msra.mxu0 0.0
    %1097 = vmatprep.subr.mxu0 0.0
    %1098 = vmatpush1.msra.mxu0 0.0
    %1099 = vmatprep.subr.mxu0 0.0
    %1100 = vmatpush1.msra.mxu0 0.0
    %1101 = vmatprep.subr.mxu0 0.0
    %1102 = vmatpush1.msra.mxu0 0.0
    %1103 = vmatprep.subr.mxu0 0.0
    %1104 = vmatpush1.msra.mxu0 0.0
    %1105 = vmatprep.subr.mxu0 0.0
    %1106 = vmatpush1.msra.mxu0 0.0
    %1107 = vmatprep.subr.mxu0 0.0
    %1108 = vmatpush1.msra.mxu0 0.0
    %1109 = vmatprep.subr.mxu0 0.0
    %1110 = vmatpush1.msra.mxu0 0.0
    %1111 = vmatprep.subr.mxu0 0.0
    %1112 = vmatpush1.msra.mxu0 0.0
    %1113 = vmatprep.subr.mxu0 0.0
    %1114 = vmatpush1.msra.mxu0 0.0
    %1115 = vmatprep.subr.mxu0 0.0
    %1116 = vmatpush1.msra.mxu0 0.0
    %1117 = vmatprep.subr.mxu0 0.0
    %1118 = vmatpush1.msra.mxu0 0.0
    %1119 = vmatprep.subr.mxu0 0.0
    %1120 = vmatpush1.msra.mxu0 0.0
    %1121 = vmatprep.subr.mxu0 0.0
    %1122 = vmatpush1.msra.mxu0 0.0
    %1123 = vmatprep.subr.mxu0 0.0
    %1124 = vmatpush1.msra.mxu0 0.0
    %1125 = vmatprep.subr.mxu0 0.0
    %1126 = vmatpush1.msra.mxu0 0.0
    %1127 = vmatprep.mubr.f32.mxu0 0.0
    %1128 = vmatmul.mubr.f32.gmra.mrb[0].mxu0 %v1061
    %v1129 = vpop.f32.mrb[0].mxu0
    %v1130 = vadd.f32 0.0, %v1129
    %v1131 = vpop.f32.mrb[0].mxu0
    %1132 = vdwg.mxu0
    %v1133 = vadd.f32 %v1060, %v1130
    %v1134 = vmul.f32 %v1133, %v197
    %v1135 = vtanh.pop %v1134
    %v1136 = vmul.f32 %v1135, %v197
    %v1137 = vadd.f32 %v1136, %v198
    %v1138 = vmul.f32 %v1137, %v1048
    %1140 = vrot.lane.b32.xlu0 %v1137, 64
    %v1141 = vpop.permute.xlu0 %1140
    %v1143 = vmul.f32 %v1137, %v1141
    %1145 = vrot.lane.b32.xlu0 %v1143, 32
    %v1146 = vpop.permute.xlu0 %1145
    %v1148 = vadd.f32 %v1138, %v1146
    %v1149 = vtanh.pop %v1148
    %1151 = vrot.lane.b32.xlu0 %v1149, 64
    %v1152 = vpop.permute.xlu0 %1151
    %v1154 = vmul.f32 %v1137, %v1152
    %1156 = vrot.lane.b32.xlu0 %v1154, 32
    %v1157 = vpop.permute.xlu0 %1156
    %1159 = vst.msk [vmem:[#allocation3 + $0x38] sm:$0xff] %vm359, %v1157
    %1160 = vst.msk [vmem:[#allocation4] sm:$0xff] %vm359, %v1157
    %v1161 = vld [vmem:[#allocation3] sm:$0xff]
    %v1162 = vld [vmem:[#allocation3 + $0x8] sm:$0xff]
    %v1163 = vld [vmem:[#allocation3 + $0x10] sm:$0xff]
    %v1164 = vld [vmem:[#allocation3 + $0x18] sm:$0xff]
    %v1165 = vld [vmem:[#allocation3 + $0x20] sm:$0xff]
    %v1166 = vld [vmem:[#allocation3 + $0x28] sm:$0xff]
    %v1167 = vld [vmem:[#allocation3 + $0x30] sm:$0xff]
    %v1168 = vld [vmem:[#allocation3 + $0x38] sm:$0xff]
    %v1169 = vld [vmem:[#allocation10] sm:$0xff]
    %v1170 = vld [vmem:[#allocation10 + $0x8] sm:$0xff]
    %v1171 = vld [vmem:[#allocation10 + $0x10] sm:$0xff]
    %v1172 = vld [vmem:[#allocation10 + $0x18] sm:$0xff]
    %v1173 = vld [vmem:[#allocation13] sm:$0x1]
    %v1175 = vlaneseq
    %v1176 = vshrl.u32 %v1175, 7
    %v1177 = vsub.s32 0, %v1176
    %v1178 = vrot.slane %v1173, %v1177
    %v1181 = vsel %vm359, %v1161, 0
    %v1184 = vsel %vm359, %v1162, 0
    %v1187 = vsel %vm359, %v1163, 0
    %v1190 = vsel %vm359, %v1164, 0
    %v1193 = vsel %vm359, %v1165, 0
    %v1196 = vsel %vm359, %v1166, 0
    %v1199 = vsel %vm359, %v1167, 0
    %v1202 = vsel %vm359, %v1168, 0
    %1204 = vmatprep.subr.mxu0 0.0
    %1205 = vmatpush1.msra.mxu0 %v1169
    %1206 = vmatprep.subr.mxu0 0.0
    %1207 = vmatpush1.msra.mxu0 %v1170
    %1208 = vmatprep.subr.mxu0 0.0
    %1209 = vmatpush1.msra.mxu0 %v1171
    %1210 = vmatprep.subr.mxu0 0.0
    %1211 = vmatpush1.msra.mxu0 %v1172
    %1212 = vmatprep.subr.mxu0 0.0
    %1213 = vmatpush1.msra.mxu0 0.0
    %1214 = vmatprep.subr.mxu0 0.0
    %1215 = vmatpush1.msra.mxu0 0.0
    %1216 = vmatprep.subr.mxu0 0.0
    %1217 = vmatpush1.msra.mxu0 0.0
    %1218 = vmatprep.subr.mxu0 0.0
    %1219 = vmatpush1.msra.mxu0 0.0
    %1220 = vmatprep.subr.mxu0 0.0
    %1221 = vmatpush1.msra.mxu0 0.0
    %1222 = vmatprep.subr.mxu0 0.0
    %1223 = vmatpush1.msra.mxu0 0.0
    %1224 = vmatprep.subr.mxu0 0.0
    %1225 = vmatpush1.msra.mxu0 0.0
    %1226 = vmatprep.subr.mxu0 0.0
    %1227 = vmatpush1.msra.mxu0 0.0
    %1228 = vmatprep.subr.mxu0 0.0
    %1229 = vmatpush1.msra.mxu0 0.0
    %1230 = vmatprep.subr.mxu0 0.0
    %1231 = vmatpush1.msra.mxu0 0.0
    %1232 = vmatprep.subr.mxu0 0.0
    %1233 = vmatpush1.msra.mxu0 0.0
    %1234 = vmatprep.subr.mxu0 0.0
    %1235 = vmatpush1.msra.mxu0 0.0
    %1236 = vmatprep.subr.mxu0 0.0
    %1237 = vmatpush1.msra.mxu0 0.0
    %1238 = vmatprep.subr.mxu0 0.0
    %1239 = vmatpush1.msra.mxu0 0.0
    %1240 = vmatprep.subr.mxu0 0.0
    %1241 = vmatpush1.msra.mxu0 0.0
    %1242 = vmatprep.subr.mxu0 0.0
    %1243 = vmatpush1.msra.mxu0 0.0
    %1244 = vmatprep.subr.mxu0 0.0
    %1245 = vmatpush1.msra.mxu0 0.0
    %1246 = vmatprep.subr.mxu0 0.0
    %1247 = vmatpush1.msra.mxu0 0.0
    %1248 = vmatprep.subr.mxu0 0.0
    %1249 = vmatpush1.msra.mxu0 0.0
    %1250 = vmatprep.subr.mxu0 0.0
    %1251 = vmatpush1.msra.mxu0 0.0
    %1252 = vmatprep.subr.mxu0 0.0
    %1253 = vmatpush1.msra.mxu0 0.0
    %1254 = vmatprep.subr.mxu0 0.0
    %1255 = vmatpush1.msra.mxu0 0.0
    %1256 = vmatprep.subr.mxu0 0.0
    %1257 = vmatpush1.msra.mxu0 0.0
    %1258 = vmatprep.subr.mxu0 0.0
    %1259 = vmatpush1.msra.mxu0 0.0
    %1260 = vmatprep.subr.mxu0 0.0
    %1261 = vmatpush1.msra.mxu0 0.0
    %1262 = vmatprep.subr.mxu0 0.0
    %1263 = vmatpush1.msra.mxu0 0.0
    %1264 = vmatprep.subr.mxu0 0.0
    %1265 = vmatpush1.msra.mxu0 0.0
    %1266 = vmatprep.subr.mxu0 0.0
    %1267 = vmatpush1.msra.mxu0 0.0
    %1268 = vmatprep.mubr.f32.mxu0 0.0
    %1269 = vmatmul.mubr.f32.gmra.mrb[0].mxu0 %v1181
    %v1270 = vpop.f32.mrb[0].mxu0
    %v1271 = vadd.f32 %v1178, %v1270
    %v1272 = vpop.f32.mrb[0].mxu0
    %1273 = vmatprep.mubr.f32.mxu0 0.0
    %1274 = vmatmul.mubr.f32.gmra.mrb[0].mxu0 %v1184
    %v1275 = vpop.f32.mrb[0].mxu0
    %v1276 = vadd.f32 %v1178, %v1275
    %v1277 = vpop.f32.mrb[0].mxu0
    %1278 = vmatprep.mubr.f32.mxu0 0.0
    %1279 = vmatmul.mubr.f32.gmra.mrb[0].mxu0 %v1187
    %v1280 = vpop.f32.mrb[0].mxu0
    %v1281 = vadd.f32 %v1178, %v1280
    %v1282 = vpop.f32.mrb[0].mxu0
    %1283 = vmatprep.mubr.f32.mxu0 0.0
    %1284 = vmatmul.mubr.f32.gmra.mrb[0].mxu0 %v1190
    %v1285 = vpop.f32.mrb[0].mxu0
    %v1286 = vadd.f32 %v1178, %v1285
    %v1287 = vpop.f32.mrb[0].mxu0
    %1288 = vmatprep.mubr.f32.mxu0 0.0
    %1289 = vmatmul.mubr.f32.gmra.mrb[0].mxu0 %v1193
    %v1290 = vpop.f32.mrb[0].mxu0
    %v1291 = vadd.f32 %v1178, %v1290
    %v1292 = vpop.f32.mrb[0].mxu0
    %1293 = vmatprep.mubr.f32.mxu0 0.0
    %1294 = vmatmul.mubr.f32.gmra.mrb[0].mxu0 %v1196
    %v1295 = vpop.f32.mrb[0].mxu0
    %v1296 = vadd.f32 %v1178, %v1295
    %v1297 = vpop.f32.mrb[0].mxu0
    %1298 = vmatprep.mubr.f32.mxu0 0.0
    %1299 = vmatmul.mubr.f32.gmra.mrb[0].mxu0 %v1199
    %v1300 = vpop.f32.mrb[0].mxu0
    %v1301 = vadd.f32 %v1178, %v1300
    %v1302 = vpop.f32.mrb[0].mxu0
    %1303 = vmatprep.mubr.f32.mxu0 0.0
    %1304 = vmatmul.mubr.f32.gmra.mrb[0].mxu0 %v1202
    %v1305 = vpop.f32.mrb[0].mxu0
    %v1306 = vadd.f32 %v1178, %v1305
    %v1307 = vpop.f32.mrb[0].mxu0
    %1308 = vdwg.mxu0
    %1309 = vst [vmem:[#allocation2] sm:$0xff] %v1271
    %1310 = vst [vmem:[#allocation2 + $0x8] sm:$0xff] %v1276
    %1311 = vst [vmem:[#allocation2 + $0x10] sm:$0xff] %v1281
    %1312 = vst [vmem:[#allocation2 + $0x18] sm:$0xff] %v1286
    %1313 = vst [vmem:[#allocation2 + $0x20] sm:$0xff] %v1291
    %1314 = vst [vmem:[#allocation2 + $0x28] sm:$0xff] %v1296
    %1315 = vst [vmem:[#allocation2 + $0x30] sm:$0xff] %v1301
    %1316 = vst [vmem:[#allocation2 + $0x38] sm:$0xff] %v1306
    %v1317 = vld [vmem:[#allocation11] sm:$0xff]
    %v1318 = vld [vmem:[#allocation11 + $0x8] sm:$0xff]
    %v1319 = vld [vmem:[#allocation11 + $0x10] sm:$0xff]
    %v1320 = vld [vmem:[#allocation11 + $0x18] sm:$0xff]
    %v1321 = vld [vmem:[#allocation2] sm:$0xff]
    %1322 = vmatprep.subr.mxu0 0.0
    %1323 = vmatpush1.msra.mxu0 %v1317
    %1324 = vmatprep.subr.mxu0 0.0
    %1325 = vmatpush1.msra.mxu0 %v1318
    %1326 = vmatprep.subr.mxu0 0.0
    %1327 = vmatpush1.msra.mxu0 %v1319
    %1328 = vmatprep.subr.mxu0 0.0
    %1329 = vmatpush1.msra.mxu0 %v1320
    %1330 = vmatprep.subr.mxu0 0.0
    %1331 = vmatpush1.msra.mxu0 0.0
    %1332 = vmatprep.subr.mxu0 0.0
    %1333 = vmatpush1.msra.mxu0 0.0
    %1334 = vmatprep.subr.mxu0 0.0
    %1335 = vmatpush1.msra.mxu0 0.0
    %1336 = vmatprep.subr.mxu0 0.0
    %1337 = vmatpush1.msra.mxu0 0.0
    %1338 = vmatprep.subr.mxu0 0.0
    %1339 = vmatpush1.msra.mxu0 0.0
    %1340 = vmatprep.subr.mxu0 0.0
    %1341 = vmatpush1.msra.mxu0 0.0
    %1342 = vmatprep.subr.mxu0 0.0
    %1343 = vmatpush1.msra.mxu0 0.0
    %1344 = vmatprep.subr.mxu0 0.0
    %1345 = vmatpush1.msra.mxu0 0.0
    %1346 = vmatprep.subr.mxu0 0.0
    %1347 = vmatpush1.msra.mxu0 0.0
    %1348 = vmatprep.subr.mxu0 0.0
    %1349 = vmatpush1.msra.mxu0 0.0
    %1350 = vmatprep.subr.mxu0 0.0
    %1351 = vmatpush1.msra.mxu0 0.0
    %1352 = vmatprep.subr.mxu0 0.0
    %1353 = vmatpush1.msra.mxu0 0.0
    %1354 = vmatprep.subr.mxu0 0.0
    %1355 = vmatpush1.msra.mxu0 0.0
    %1356 = vmatprep.subr.mxu0 0.0
    %1357 = vmatpush1.msra.mxu0 0.0
    %1358 = vmatprep.subr.mxu0 0.0
    %1359 = vmatpush1.msra.mxu0 0.0
    %1360 = vmatprep.subr.mxu0 0.0
    %1361 = vmatpush1.msra.mxu0 0.0
    %1362 = vmatprep.subr.mxu0 0.0
    %1363 = vmatpush1.msra.mxu0 0.0
    %1364 = vmatprep.subr.mxu0 0.0
    %1365 = vmatpush1.msra.mxu0 0.0
    %1366 = vmatprep.subr.mxu0 0.0
    %1367 = vmatpush1.msra.mxu0 0.0
    %1368 = vmatprep.subr.mxu0 0.0
    %1369 = vmatpush1.msra.mxu0 0.0
    %1370 = vmatprep.subr.mxu0 0.0
    %1371 = vmatpush1.msra.mxu0 0.0
    %1372 = vmatprep.subr.mxu0 0.0
    %1373 = vmatpush1.msra.mxu0 0.0
    %1374 = vmatprep.subr.mxu0 0.0
    %1375 = vmatpush1.msra.mxu0 0.0
    %1376 = vmatprep.subr.mxu0 0.0
    %1377 = vmatpush1.msra.mxu0 0.0
    %1378 = vmatprep.subr.mxu0 0.0
    %1379 = vmatpush1.msra.mxu0 0.0
    %1380 = vmatprep.subr.mxu0 0.0
    %1381 = vmatpush1.msra.mxu0 0.0
    %1382 = vmatprep.subr.mxu0 0.0
    %1383 = vmatpush1.msra.mxu0 0.0
    %1384 = vmatprep.subr.mxu0 0.0
    %1385 = vmatpush1.msra.mxu0 0.0
    %1386 = vmatprep.mubr.f32.mxu0 0.0
    %1387 = vmatmul.mubr.f32.gmra.mrb[0].mxu0 %v361
    %v1388 = vpop.f32.mrb[0].mxu0
    %v1389 = vadd.f32 0.0, %v1388
    %v1390 = vpop.f32.mrb[0].mxu0
    %1391 = vdwg.mxu0
    %v1392 = vadd.f32 %v1321, %v1389
    %v1393 = vmul.f32 %v1392, %v197
    %v1394 = vtanh.pop %v1393
    %v1395 = vmul.f32 %v1394, %v197
    %v1396 = vadd.f32 %v1395, %v198
    %v1397 = vmul.f32 %v1396, 0.0
    %1399 = vrot.lane.b32.xlu0 %v1396, 64
    %v1400 = vpop.permute.xlu0 %1399
    %v1402 = vmul.f32 %v1396, %v1400
    %1404 = vrot.lane.b32.xlu0 %v1402, 32
    %v1405 = vpop.permute.xlu0 %1404
    %v1407 = vadd.f32 %v1397, %v1405
    %v1408 = vtanh.pop %v1407
    %1410 = vrot.lane.b32.xlu0 %v1408, 64
    %v1411 = vpop.permute.xlu0 %1410
    %v1413 = vmul.f32 %v1396, %v1411
    %v1414 = vld [vmem:[#allocation2 + $0x8] sm:$0xff]
    %1416 = vrot.lane.b32.xlu0 %v1413, 32
    %v1417 = vpop.permute.xlu0 %1416
    %v1418 = vsel %vm359, %v1417, 0
    %1420 = vmatprep.subr.mxu0 0.0
    %1421 = vmatpush1.msra.mxu0 %v1317
    %1422 = vmatprep.subr.mxu0 0.0
    %1423 = vmatpush1.msra.mxu0 %v1318
    %1424 = vmatprep.subr.mxu0 0.0
    %1425 = vmatpush1.msra.mxu0 %v1319
    %1426 = vmatprep.subr.mxu0 0.0
    %1427 = vmatpush1.msra.mxu0 %v1320
    %1428 = vmatprep.subr.mxu0 0.0
    %1429 = vmatpush1.msra.mxu0 0.0
    %1430 = vmatprep.subr.mxu0 0.0
    %1431 = vmatpush1.msra.mxu0 0.0
    %1432 = vmatprep.subr.mxu0 0.0
    %1433 = vmatpush1.msra.mxu0 0.0
    %1434 = vmatprep.subr.mxu0 0.0
    %1435 = vmatpush1.msra.mxu0 0.0
    %1436 = vmatprep.subr.mxu0 0.0
    %1437 = vmatpush1.msra.mxu0 0.0
    %1438 = vmatprep.subr.mxu0 0.0
    %1439 = vmatpush1.msra.mxu0 0.0
    %1440 = vmatprep.subr.mxu0 0.0
    %1441 = vmatpush1.msra.mxu0 0.0
    %1442 = vmatprep.subr.mxu0 0.0
    %1443 = vmatpush1.msra.mxu0 0.0
    %1444 = vmatprep.subr.mxu0 0.0
    %1445 = vmatpush1.msra.mxu0 0.0
    %1446 = vmatprep.subr.mxu0 0.0
    %1447 = vmatpush1.msra.mxu0 0.0
    %1448 = vmatprep.subr.mxu0 0.0
    %1449 = vmatpush1.msra.mxu0 0.0
    %1450 = vmatprep.subr.mxu0 0.0
    %1451 = vmatpush1.msra.mxu0 0.0
    %1452 = vmatprep.subr.mxu0 0.0
    %1453 = vmatpush1.msra.mxu0 0.0
    %1454 = vmatprep.subr.mxu0 0.0
    %1455 = vmatpush1.msra.mxu0 0.0
    %1456 = vmatprep.subr.mxu0 0.0
    %1457 = vmatpush1.msra.mxu0 0.0
    %1458 = vmatprep.subr.mxu0 0.0
    %1459 = vmatpush1.msra.mxu0 0.0
    %1460 = vmatprep.subr.mxu0 0.0
    %1461 = vmatpush1.msra.mxu0 0.0
    %1462 = vmatprep.subr.mxu0 0.0
    %1463 = vmatpush1.msra.mxu0 0.0
    %1464 = vmatprep.subr.mxu0 0.0
    %1465 = vmatpush1.msra.mxu0 0.0
    %1466 = vmatprep.subr.mxu0 0.0
    %1467 = vmatpush1.msra.mxu0 0.0
    %1468 = vmatprep.subr.mxu0 0.0
    %1469 = vmatpush1.msra.mxu0 0.0
    %1470 = vmatprep.subr.mxu0 0.0
    %1471 = vmatpush1.msra.mxu0 0.0
    %1472 = vmatprep.subr.mxu0 0.0
    %1473 = vmatpush1.msra.mxu0 0.0
    %1474 = vmatprep.subr.mxu0 0.0
    %1475 = vmatpush1.msra.mxu0 0.0
    %1476 = vmatprep.subr.mxu0 0.0
    %1477 = vmatpush1.msra.mxu0 0.0
    %1478 = vmatprep.subr.mxu0 0.0
    %1479 = vmatpush1.msra.mxu0 0.0
    %1480 = vmatprep.subr.mxu0 0.0
    %1481 = vmatpush1.msra.mxu0 0.0
    %1482 = vmatprep.subr.mxu0 0.0
    %1483 = vmatpush1.msra.mxu0 0.0
    %1484 = vmatprep.mubr.f32.mxu0 0.0
    %1485 = vmatmul.mubr.f32.gmra.mrb[0].mxu0 %v1418
    %v1486 = vpop.f32.mrb[0].mxu0
    %v1487 = vadd.f32 0.0, %v1486
    %v1488 = vpop.f32.mrb[0].mxu0
    %1489 = vdwg.mxu0
    %v1490 = vadd.f32 %v1414, %v1487
    %v1491 = vmul.f32 %v1490, %v197
    %v1492 = vtanh.pop %v1491
    %v1493 = vmul.f32 %v1492, %v197
    %v1494 = vadd.f32 %v1493, %v198
    %v1495 = vmul.f32 %v1494, %v1407
    %1497 = vrot.lane.b32.xlu0 %v1494, 64
    %v1498 = vpop.permute.xlu0 %1497
    %v1500 = vmul.f32 %v1494, %v1498
    %1502 = vrot.lane.b32.xlu0 %v1500, 32
    %v1503 = vpop.permute.xlu0 %1502
    %v1505 = vadd.f32 %v1495, %v1503
    %v1506 = vtanh.pop %v1505
    %1508 = vrot.lane.b32.xlu0 %v1506, 64
    %v1509 = vpop.permute.xlu0 %1508
    %v1511 = vmul.f32 %v1494, %v1509
    %v1512 = vld [vmem:[#allocation2 + $0x10] sm:$0xff]
    %1514 = vrot.lane.b32.xlu0 %v1511, 32
    %v1515 = vpop.permute.xlu0 %1514
    %v1516 = vsel %vm359, %v1515, 0
    %1518 = vmatprep.subr.mxu0 0.0
    %1519 = vmatpush1.msra.mxu0 %v1317
    %1520 = vmatprep.subr.mxu0 0.0
    %1521 = vmatpush1.msra.mxu0 %v1318
    %1522 = vmatprep.subr.mxu0 0.0
    %1523 = vmatpush1.msra.mxu0 %v1319
    %1524 = vmatprep.subr.mxu0 0.0
    %1525 = vmatpush1.msra.mxu0 %v1320
    %1526 = vmatprep.subr.mxu0 0.0
    %1527 = vmatpush1.msra.mxu0 0.0
    %1528 = vmatprep.subr.mxu0 0.0
    %1529 = vmatpush1.msra.mxu0 0.0
    %1530 = vmatprep.subr.mxu0 0.0
    %1531 = vmatpush1.msra.mxu0 0.0
    %1532 = vmatprep.subr.mxu0 0.0
    %1533 = vmatpush1.msra.mxu0 0.0
    %1534 = vmatprep.subr.mxu0 0.0
    %1535 = vmatpush1.msra.mxu0 0.0
    %1536 = vmatprep.subr.mxu0 0.0
    %1537 = vmatpush1.msra.mxu0 0.0
    %1538 = vmatprep.subr.mxu0 0.0
    %1539 = vmatpush1.msra.mxu0 0.0
    %1540 = vmatprep.subr.mxu0 0.0
    %1541 = vmatpush1.msra.mxu0 0.0
    %1542 = vmatprep.subr.mxu0 0.0
    %1543 = vmatpush1.msra.mxu0 0.0
    %1544 = vmatprep.subr.mxu0 0.0
    %1545 = vmatpush1.msra.mxu0 0.0
    %1546 = vmatprep.subr.mxu0 0.0
    %1547 = vmatpush1.msra.mxu0 0.0
    %1548 = vmatprep.subr.mxu0 0.0
    %1549 = vmatpush1.msra.mxu0 0.0
    %1550 = vmatprep.subr.mxu0 0.0
    %1551 = vmatpush1.msra.mxu0 0.0
    %1552 = vmatprep.subr.mxu0 0.0
    %1553 = vmatpush1.msra.mxu0 0.0
    %1554 = vmatprep.subr.mxu0 0.0
    %1555 = vmatpush1.msra.mxu0 0.0
    %1556 = vmatprep.subr.mxu0 0.0
    %1557 = vmatpush1.msra.mxu0 0.0
    %1558 = vmatprep.subr.mxu0 0.0
    %1559 = vmatpush1.msra.mxu0 0.0
    %1560 = vmatprep.subr.mxu0 0.0
    %1561 = vmatpush1.msra.mxu0 0.0
    %1562 = vmatprep.subr.mxu0 0.0
    %1563 = vmatpush1.msra.mxu0 0.0
    %1564 = vmatprep.subr.mxu0 0.0
    %1565 = vmatpush1.msra.mxu0 0.0
    %1566 = vmatprep.subr.mxu0 0.0
    %1567 = vmatpush1.msra.mxu0 0.0
    %1568 = vmatprep.subr.mxu0 0.0
    %1569 = vmatpush1.msra.mxu0 0.0
    %1570 = vmatprep.subr.mxu0 0.0
    %1571 = vmatpush1.msra.mxu0 0.0
    %1572 = vmatprep.subr.mxu0 0.0
    %1573 = vmatpush1.msra.mxu0 0.0
    %1574 = vmatprep.subr.mxu0 0.0
    %1575 = vmatpush1.msra.mxu0 0.0
    %1576 = vmatprep.subr.mxu0 0.0
    %1577 = vmatpush1.msra.mxu0 0.0
    %1578 = vmatprep.subr.mxu0 0.0
    %1579 = vmatpush1.msra.mxu0 0.0
    %1580 = vmatprep.subr.mxu0 0.0
    %1581 = vmatpush1.msra.mxu0 0.0
    %1582 = vmatprep.mubr.f32.mxu0 0.0
    %1583 = vmatmul.mubr.f32.gmra.mrb[0].mxu0 %v1516
    %v1584 = vpop.f32.mrb[0].mxu0
    %v1585 = vadd.f32 0.0, %v1584
    %v1586 = vpop.f32.mrb[0].mxu0
    %1587 = vdwg.mxu0
    %v1588 = vadd.f32 %v1512, %v1585
    %v1589 = vmul.f32 %v1588, %v197
    %v1590 = vtanh.pop %v1589
    %v1591 = vmul.f32 %v1590, %v197
    %v1592 = vadd.f32 %v1591, %v198
    %v1593 = vmul.f32 %v1592, %v1505
    %1595 = vrot.lane.b32.xlu0 %v1592, 64
    %v1596 = vpop.permute.xlu0 %1595
    %v1598 = vmul.f32 %v1592, %v1596
    %1600 = vrot.lane.b32.xlu0 %v1598, 32
    %v1601 = vpop.permute.xlu0 %1600
    %v1603 = vadd.f32 %v1593, %v1601
    %v1604 = vtanh.pop %v1603
    %1606 = vrot.lane.b32.xlu0 %v1604, 64
    %v1607 = vpop.permute.xlu0 %1606
    %v1609 = vmul.f32 %v1592, %v1607
    %v1610 = vld [vmem:[#allocation2 + $0x18] sm:$0xff]
    %1612 = vrot.lane.b32.xlu0 %v1609, 32
    %v1613 = vpop.permute.xlu0 %1612
    %v1614 = vsel %vm359, %v1613, 0
    %1616 = vmatprep.subr.mxu0 0.0
    %1617 = vmatpush1.msra.mxu0 %v1317
    %1618 = vmatprep.subr.mxu0 0.0
    %1619 = vmatpush1.msra.mxu0 %v1318
    %1620 = vmatprep.subr.mxu0 0.0
    %1621 = vmatpush1.msra.mxu0 %v1319
    %1622 = vmatprep.subr.mxu0 0.0
    %1623 = vmatpush1.msra.mxu0 %v1320
    %1624 = vmatprep.subr.mxu0 0.0
    %1625 = vmatpush1.msra.mxu0 0.0
    %1626 = vmatprep.subr.mxu0 0.0
    %1627 = vmatpush1.msra.mxu0 0.0
    %1628 = vmatprep.subr.mxu0 0.0
    %1629 = vmatpush1.msra.mxu0 0.0
    %1630 = vmatprep.subr.mxu0 0.0
    %1631 = vmatpush1.msra.mxu0 0.0
    %1632 = vmatprep.subr.mxu0 0.0
    %1633 = vmatpush1.msra.mxu0 0.0
    %1634 = vmatprep.subr.mxu0 0.0
    %1635 = vmatpush1.msra.mxu0 0.0
    %1636 = vmatprep.subr.mxu0 0.0
    %1637 = vmatpush1.msra.mxu0 0.0
    %1638 = vmatprep.subr.mxu0 0.0
    %1639 = vmatpush1.msra.mxu0 0.0
    %1640 = vmatprep.subr.mxu0 0.0
    %1641 = vmatpush1.msra.mxu0 0.0
    %1642 = vmatprep.subr.mxu0 0.0
    %1643 = vmatpush1.msra.mxu0 0.0
    %1644 = vmatprep.subr.mxu0 0.0
    %1645 = vmatpush1.msra.mxu0 0.0
    %1646 = vmatprep.subr.mxu0 0.0
    %1647 = vmatpush1.msra.mxu0 0.0
    %1648 = vmatprep.subr.mxu0 0.0
    %1649 = vmatpush1.msra.mxu0 0.0
    %1650 = vmatprep.subr.mxu0 0.0
    %1651 = vmatpush1.msra.mxu0 0.0
    %1652 = vmatprep.subr.mxu0 0.0
    %1653 = vmatpush1.msra.mxu0 0.0
    %1654 = vmatprep.subr.mxu0 0.0
    %1655 = vmatpush1.msra.mxu0 0.0
    %1656 = vmatprep.subr.mxu0 0.0
    %1657 = vmatpush1.msra.mxu0 0.0
    %1658 = vmatprep.subr.mxu0 0.0
    %1659 = vmatpush1.msra.mxu0 0.0
    %1660 = vmatprep.subr.mxu0 0.0
    %1661 = vmatpush1.msra.mxu0 0.0
    %1662 = vmatprep.subr.mxu0 0.0
    %1663 = vmatpush1.msra.mxu0 0.0
    %1664 = vmatprep.subr.mxu0 0.0
    %1665 = vmatpush1.msra.mxu0 0.0
    %1666 = vmatprep.subr.mxu0 0.0
    %1667 = vmatpush1.msra.mxu0 0.0
    %1668 = vmatprep.subr.mxu0 0.0
    %1669 = vmatpush1.msra.mxu0 0.0
    %1670 = vmatprep.subr.mxu0 0.0
    %1671 = vmatpush1.msra.mxu0 0.0
    %1672 = vmatprep.subr.mxu0 0.0
    %1673 = vmatpush1.msra.mxu0 0.0
    %1674 = vmatprep.subr.mxu0 0.0
    %1675 = vmatpush1.msra.mxu0 0.0
    %1676 = vmatprep.subr.mxu0 0.0
    %1677 = vmatpush1.msra.mxu0 0.0
    %1678 = vmatprep.subr.mxu0 0.0
    %1679 = vmatpush1.msra.mxu0 0.0
    %1680 = vmatprep.mubr.f32.mxu0 0.0
    %1681 = vmatmul.mubr.f32.gmra.mrb[0].mxu0 %v1614
    %v1682 = vpop.f32.mrb[0].mxu0
    %v1683 = vadd.f32 0.0, %v1682
    %v1684 = vpop.f32.mrb[0].mxu0
    %1685 = vdwg.mxu0
    %v1686 = vadd.f32 %v1610, %v1683
    %v1687 = vmul.f32 %v1686, %v197
    %v1688 = vtanh.pop %v1687
    %v1689 = vmul.f32 %v1688, %v197
    %v1690 = vadd.f32 %v1689, %v198
    %v1691 = vmul.f32 %v1690, %v1603
    %1693 = vrot.lane.b32.xlu0 %v1690, 64
    %v1694 = vpop.permute.xlu0 %1693
    %v1696 = vmul.f32 %v1690, %v1694
    %1698 = vrot.lane.b32.xlu0 %v1696, 32
    %v1699 = vpop.permute.xlu0 %1698
    %v1701 = vadd.f32 %v1691, %v1699
    %v1702 = vtanh.pop %v1701
    %1704 = vrot.lane.b32.xlu0 %v1702, 64
    %v1705 = vpop.permute.xlu0 %1704
    %v1707 = vmul.f32 %v1690, %v1705
    %v1708 = vld [vmem:[#allocation2 + $0x20] sm:$0xff]
    %1710 = vrot.lane.b32.xlu0 %v1707, 32
    %v1711 = vpop.permute.xlu0 %1710
    %v1712 = vsel %vm359, %v1711, 0
    %1714 = vmatprep.subr.mxu0 0.0
    %1715 = vmatpush1.msra.mxu0 %v1317
    %1716 = vmatprep.subr.mxu0 0.0
    %1717 = vmatpush1.msra.mxu0 %v1318
    %1718 = vmatprep.subr.mxu0 0.0
    %1719 = vmatpush1.msra.mxu0 %v1319
    %1720 = vmatprep.subr.mxu0 0.0
    %1721 = vmatpush1.msra.mxu0 %v1320
    %1722 = vmatprep.subr.mxu0 0.0
    %1723 = vmatpush1.msra.mxu0 0.0
    %1724 = vmatprep.subr.mxu0 0.0
    %1725 = vmatpush1.msra.mxu0 0.0
    %1726 = vmatprep.subr.mxu0 0.0
    %1727 = vmatpush1.msra.mxu0 0.0
    %1728 = vmatprep.subr.mxu0 0.0
    %1729 = vmatpush1.msra.mxu0 0.0
    %1730 = vmatprep.subr.mxu0 0.0
    %1731 = vmatpush1.msra.mxu0 0.0
    %1732 = vmatprep.subr.mxu0 0.0
    %1733 = vmatpush1.msra.mxu0 0.0
    %1734 = vmatprep.subr.mxu0 0.0
    %1735 = vmatpush1.msra.mxu0 0.0
    %1736 = vmatprep.subr.mxu0 0.0
    %1737 = vmatpush1.msra.mxu0 0.0
    %1738 = vmatprep.subr.mxu0 0.0
    %1739 = vmatpush1.msra.mxu0 0.0
    %1740 = vmatprep.subr.mxu0 0.0
    %1741 = vmatpush1.msra.mxu0 0.0
    %1742 = vmatprep.subr.mxu0 0.0
    %1743 = vmatpush1.msra.mxu0 0.0
    %1744 = vmatprep.subr.mxu0 0.0
    %1745 = vmatpush1.msra.mxu0 0.0
    %1746 = vmatprep.subr.mxu0 0.0
    %1747 = vmatpush1.msra.mxu0 0.0
    %1748 = vmatprep.subr.mxu0 0.0
    %1749 = vmatpush1.msra.mxu0 0.0
    %1750 = vmatprep.subr.mxu0 0.0
    %1751 = vmatpush1.msra.mxu0 0.0
    %1752 = vmatprep.subr.mxu0 0.0
    %1753 = vmatpush1.msra.mxu0 0.0
    %1754 = vmatprep.subr.mxu0 0.0
    %1755 = vmatpush1.msra.mxu0 0.0
    %1756 = vmatprep.subr.mxu0 0.0
    %1757 = vmatpush1.msra.mxu0 0.0
    %1758 = vmatprep.subr.mxu0 0.0
    %1759 = vmatpush1.msra.mxu0 0.0
    %1760 = vmatprep.subr.mxu0 0.0
    %1761 = vmatpush1.msra.mxu0 0.0
    %1762 = vmatprep.subr.mxu0 0.0
    %1763 = vmatpush1.msra.mxu0 0.0
    %1764 = vmatprep.subr.mxu0 0.0
    %1765 = vmatpush1.msra.mxu0 0.0
    %1766 = vmatprep.subr.mxu0 0.0
    %1767 = vmatpush1.msra.mxu0 0.0
    %1768 = vmatprep.subr.mxu0 0.0
    %1769 = vmatpush1.msra.mxu0 0.0
    %1770 = vmatprep.subr.mxu0 0.0
    %1771 = vmatpush1.msra.mxu0 0.0
    %1772 = vmatprep.subr.mxu0 0.0
    %1773 = vmatpush1.msra.mxu0 0.0
    %1774 = vmatprep.subr.mxu0 0.0
    %1775 = vmatpush1.msra.mxu0 0.0
    %1776 = vmatprep.subr.mxu0 0.0
    %1777 = vmatpush1.msra.mxu0 0.0
    %1778 = vmatprep.mubr.f32.mxu0 0.0
    %1779 = vmatmul.mubr.f32.gmra.mrb[0].mxu0 %v1712
    %v1780 = vpop.f32.mrb[0].mxu0
    %v1781 = vadd.f32 0.0, %v1780
    %v1782 = vpop.f32.mrb[0].mxu0
    %1783 = vdwg.mxu0
    %v1784 = vadd.f32 %v1708, %v1781
    %v1785 = vmul.f32 %v1784, %v197
    %v1786 = vtanh.pop %v1785
    %v1787 = vmul.f32 %v1786, %v197
    %v1788 = vadd.f32 %v1787, %v198
    %v1789 = vmul.f32 %v1788, %v1701
    %1791 = vrot.lane.b32.xlu0 %v1788, 64
    %v1792 = vpop.permute.xlu0 %1791
    %v1794 = vmul.f32 %v1788, %v1792
    %1796 = vrot.lane.b32.xlu0 %v1794, 32
    %v1797 = vpop.permute.xlu0 %1796
    %v1799 = vadd.f32 %v1789, %v1797
    %v1800 = vtanh.pop %v1799
    %1802 = vrot.lane.b32.xlu0 %v1800, 64
    %v1803 = vpop.permute.xlu0 %1802
    %v1805 = vmul.f32 %v1788, %v1803
    %v1806 = vld [vmem:[#allocation2 + $0x28] sm:$0xff]
    %1808 = vrot.lane.b32.xlu0 %v1805, 32
    %v1809 = vpop.permute.xlu0 %1808
    %v1810 = vsel %vm359, %v1809, 0
    %1812 = vmatprep.subr.mxu0 0.0
    %1813 = vmatpush1.msra.mxu0 %v1317
    %1814 = vmatprep.subr.mxu0 0.0
    %1815 = vmatpush1.msra.mxu0 %v1318
    %1816 = vmatprep.subr.mxu0 0.0
    %1817 = vmatpush1.msra.mxu0 %v1319
    %1818 = vmatprep.subr.mxu0 0.0
    %1819 = vmatpush1.msra.mxu0 %v1320
    %1820 = vmatprep.subr.mxu0 0.0
    %1821 = vmatpush1.msra.mxu0 0.0
    %1822 = vmatprep.subr.mxu0 0.0
    %1823 = vmatpush1.msra.mxu0 0.0
    %1824 = vmatprep.subr.mxu0 0.0
    %1825 = vmatpush1.msra.mxu0 0.0
    %1826 = vmatprep.subr.mxu0 0.0
    %1827 = vmatpush1.msra.mxu0 0.0
    %1828 = vmatprep.subr.mxu0 0.0
    %1829 = vmatpush1.msra.mxu0 0.0
    %1830 = vmatprep.subr.mxu0 0.0
    %1831 = vmatpush1.msra.mxu0 0.0
    %1832 = vmatprep.subr.mxu0 0.0
    %1833 = vmatpush1.msra.mxu0 0.0
    %1834 = vmatprep.subr.mxu0 0.0
    %1835 = vmatpush1.msra.mxu0 0.0
    %1836 = vmatprep.subr.mxu0 0.0
    %1837 = vmatpush1.msra.mxu0 0.0
    %1838 = vmatprep.subr.mxu0 0.0
    %1839 = vmatpush1.msra.mxu0 0.0
    %1840 = vmatprep.subr.mxu0 0.0
    %1841 = vmatpush1.msra.mxu0 0.0
    %1842 = vmatprep.subr.mxu0 0.0
    %1843 = vmatpush1.msra.mxu0 0.0
    %1844 = vmatprep.subr.mxu0 0.0
    %1845 = vmatpush1.msra.mxu0 0.0
    %1846 = vmatprep.subr.mxu0 0.0
    %1847 = vmatpush1.msra.mxu0 0.0
    %1848 = vmatprep.subr.mxu0 0.0
    %1849 = vmatpush1.msra.mxu0 0.0
    %1850 = vmatprep.subr.mxu0 0.0
    %1851 = vmatpush1.msra.mxu0 0.0
    %1852 = vmatprep.subr.mxu0 0.0
    %1853 = vmatpush1.msra.mxu0 0.0
    %1854 = vmatprep.subr.mxu0 0.0
    %1855 = vmatpush1.msra.mxu0 0.0
    %1856 = vmatprep.subr.mxu0 0.0
    %1857 = vmatpush1.msra.mxu0 0.0
    %1858 = vmatprep.subr.mxu0 0.0
    %1859 = vmatpush1.msra.mxu0 0.0
    %1860 = vmatprep.subr.mxu0 0.0
    %1861 = vmatpush1.msra.mxu0 0.0
    %1862 = vmatprep.subr.mxu0 0.0
    %1863 = vmatpush1.msra.mxu0 0.0
    %1864 = vmatprep.subr.mxu0 0.0
    %1865 = vmatpush1.msra.mxu0 0.0
    %1866 = vmatprep.subr.mxu0 0.0
    %1867 = vmatpush1.msra.mxu0 0.0
    %1868 = vmatprep.subr.mxu0 0.0
    %1869 = vmatpush1.msra.mxu0 0.0
    %1870 = vmatprep.subr.mxu0 0.0
    %1871 = vmatpush1.msra.mxu0 0.0
    %1872 = vmatprep.subr.mxu0 0.0
    %1873 = vmatpush1.msra.mxu0 0.0
    %1874 = vmatprep.subr.mxu0 0.0
    %1875 = vmatpush1.msra.mxu0 0.0
    %1876 = vmatprep.mubr.f32.mxu0 0.0
    %1877 = vmatmul.mubr.f32.gmra.mrb[0].mxu0 %v1810
    %v1878 = vpop.f32.mrb[0].mxu0
    %v1879 = vadd.f32 0.0, %v1878
    %v1880 = vpop.f32.mrb[0].mxu0
    %1881 = vdwg.mxu0
    %v1882 = vadd.f32 %v1806, %v1879
    %v1883 = vmul.f32 %v1882, %v197
    %v1884 = vtanh.pop %v1883
    %v1885 = vmul.f32 %v1884, %v197
    %v1886 = vadd.f32 %v1885, %v198
    %v1887 = vmul.f32 %v1886, %v1799
    %1889 = vrot.lane.b32.xlu0 %v1886, 64
    %v1890 = vpop.permute.xlu0 %1889
    %v1892 = vmul.f32 %v1886, %v1890
    %1894 = vrot.lane.b32.xlu0 %v1892, 32
    %v1895 = vpop.permute.xlu0 %1894
    %v1897 = vadd.f32 %v1887, %v1895
    %v1898 = vtanh.pop %v1897
    %1900 = vrot.lane.b32.xlu0 %v1898, 64
    %v1901 = vpop.permute.xlu0 %1900
    %v1903 = vmul.f32 %v1886, %v1901
    %v1904 = vld [vmem:[#allocation2 + $0x30] sm:$0xff]
    %1906 = vrot.lane.b32.xlu0 %v1903, 32
    %v1907 = vpop.permute.xlu0 %1906
    %v1908 = vsel %vm359, %v1907, 0
    %1910 = vmatprep.subr.mxu0 0.0
    %1911 = vmatpush1.msra.mxu0 %v1317
    %1912 = vmatprep.subr.mxu0 0.0
    %1913 = vmatpush1.msra.mxu0 %v1318
    %1914 = vmatprep.subr.mxu0 0.0
    %1915 = vmatpush1.msra.mxu0 %v1319
    %1916 = vmatprep.subr.mxu0 0.0
    %1917 = vmatpush1.msra.mxu0 %v1320
    %1918 = vmatprep.subr.mxu0 0.0
    %1919 = vmatpush1.msra.mxu0 0.0
    %1920 = vmatprep.subr.mxu0 0.0
    %1921 = vmatpush1.msra.mxu0 0.0
    %1922 = vmatprep.subr.mxu0 0.0
    %1923 = vmatpush1.msra.mxu0 0.0
    %1924 = vmatprep.subr.mxu0 0.0
    %1925 = vmatpush1.msra.mxu0 0.0
    %1926 = vmatprep.subr.mxu0 0.0
    %1927 = vmatpush1.msra.mxu0 0.0
    %1928 = vmatprep.subr.mxu0 0.0
    %1929 = vmatpush1.msra.mxu0 0.0
    %1930 = vmatprep.subr.mxu0 0.0
    %1931 = vmatpush1.msra.mxu0 0.0
    %1932 = vmatprep.subr.mxu0 0.0
    %1933 = vmatpush1.msra.mxu0 0.0
    %1934 = vmatprep.subr.mxu0 0.0
    %1935 = vmatpush1.msra.mxu0 0.0
    %1936 = vmatprep.subr.mxu0 0.0
    %1937 = vmatpush1.msra.mxu0 0.0
    %1938 = vmatprep.subr.mxu0 0.0
    %1939 = vmatpush1.msra.mxu0 0.0
    %1940 = vmatprep.subr.mxu0 0.0
    %1941 = vmatpush1.msra.mxu0 0.0
    %1942 = vmatprep.subr.mxu0 0.0
    %1943 = vmatpush1.msra.mxu0 0.0
    %1944 = vmatprep.subr.mxu0 0.0
    %1945 = vmatpush1.msra.mxu0 0.0
    %1946 = vmatprep.subr.mxu0 0.0
    %1947 = vmatpush1.msra.mxu0 0.0
    %1948 = vmatprep.subr.mxu0 0.0
    %1949 = vmatpush1.msra.mxu0 0.0
    %1950 = vmatprep.subr.mxu0 0.0
    %1951 = vmatpush1.msra.mxu0 0.0
    %1952 = vmatprep.subr.mxu0 0.0
    %1953 = vmatpush1.msra.mxu0 0.0
    %1954 = vmatprep.subr.mxu0 0.0
    %1955 = vmatpush1.msra.mxu0 0.0
    %1956 = vmatprep.subr.mxu0 0.0
    %1957 = vmatpush1.msra.mxu0 0.0
    %1958 = vmatprep.subr.mxu0 0.0
    %1959 = vmatpush1.msra.mxu0 0.0
    %1960 = vmatprep.subr.mxu0 0.0
    %1961 = vmatpush1.msra.mxu0 0.0
    %1962 = vmatprep.subr.mxu0 0.0
    %1963 = vmatpush1.msra.mxu0 0.0
    %1964 = vmatprep.subr.mxu0 0.0
    %1965 = vmatpush1.msra.mxu0 0.0
    %1966 = vmatprep.subr.mxu0 0.0
    %1967 = vmatpush1.msra.mxu0 0.0
    %1968 = vmatprep.subr.mxu0 0.0
    %1969 = vmatpush1.msra.mxu0 0.0
    %1970 = vmatprep.subr.mxu0 0.0
    %1971 = vmatpush1.msra.mxu0 0.0
    %1972 = vmatprep.subr.mxu0 0.0
    %1973 = vmatpush1.msra.mxu0 0.0
    %1974 = vmatprep.mubr.f32.mxu0 0.0
    %1975 = vmatmul.mubr.f32.gmra.mrb[0].mxu0 %v1908
    %v1976 = vpop.f32.mrb[0].mxu0
    %v1977 = vadd.f32 0.0, %v1976
    %v1978 = vpop.f32.mrb[0].mxu0
    %1979 = vdwg.mxu0
    %v1980 = vadd.f32 %v1904, %v1977
    %v1981 = vmul.f32 %v1980, %v197
    %v1982 = vtanh.pop %v1981
    %v1983 = vmul.f32 %v1982, %v197
    %v1984 = vadd.f32 %v1983, %v198
    %v1985 = vmul.f32 %v1984, %v1897
    %1987 = vrot.lane.b32.xlu0 %v1984, 64
    %v1988 = vpop.permute.xlu0 %1987
    %v1990 = vmul.f32 %v1984, %v1988
    %1992 = vrot.lane.b32.xlu0 %v1990, 32
    %v1993 = vpop.permute.xlu0 %1992
    %v1995 = vadd.f32 %v1985, %v1993
    %v1996 = vtanh.pop %v1995
    %1998 = vrot.lane.b32.xlu0 %v1996, 64
    %v1999 = vpop.permute.xlu0 %1998
    %v2001 = vmul.f32 %v1984, %v1999
    %v2002 = vld [vmem:[#allocation2 + $0x38] sm:$0xff]
    %2004 = vrot.lane.b32.xlu0 %v2001, 32
    %v2005 = vpop.permute.xlu0 %2004
    %v2006 = vsel %vm359, %v2005, 0
    %2008 = vmatprep.subr.mxu0 0.0
    %2009 = vmatpush1.msra.mxu0 %v1317
    %2010 = vmatprep.subr.mxu0 0.0
    %2011 = vmatpush1.msra.mxu0 %v1318
    %2012 = vmatprep.subr.mxu0 0.0
    %2013 = vmatpush1.msra.mxu0 %v1319
    %2014 = vmatprep.subr.mxu0 0.0
    %2015 = vmatpush1.msra.mxu0 %v1320
    %2016 = vmatprep.subr.mxu0 0.0
    %2017 = vmatpush1.msra.mxu0 0.0
    %2018 = vmatprep.subr.mxu0 0.0
    %2019 = vmatpush1.msra.mxu0 0.0
    %2020 = vmatprep.subr.mxu0 0.0
    %2021 = vmatpush1.msra.mxu0 0.0
    %2022 = vmatprep.subr.mxu0 0.0
    %2023 = vmatpush1.msra.mxu0 0.0
    %2024 = vmatprep.subr.mxu0 0.0
    %2025 = vmatpush1.msra.mxu0 0.0
    %2026 = vmatprep.subr.mxu0 0.0
    %2027 = vmatpush1.msra.mxu0 0.0
    %2028 = vmatprep.subr.mxu0 0.0
    %2029 = vmatpush1.msra.mxu0 0.0
    %2030 = vmatprep.subr.mxu0 0.0
    %2031 = vmatpush1.msra.mxu0 0.0
    %2032 = vmatprep.subr.mxu0 0.0
    %2033 = vmatpush1.msra.mxu0 0.0
    %2034 = vmatprep.subr.mxu0 0.0
    %2035 = vmatpush1.msra.mxu0 0.0
    %2036 = vmatprep.subr.mxu0 0.0
    %2037 = vmatpush1.msra.mxu0 0.0
    %2038 = vmatprep.subr.mxu0 0.0
    %2039 = vmatpush1.msra.mxu0 0.0
    %2040 = vmatprep.subr.mxu0 0.0
    %2041 = vmatpush1.msra.mxu0 0.0
    %2042 = vmatprep.subr.mxu0 0.0
    %2043 = vmatpush1.msra.mxu0 0.0
    %2044 = vmatprep.subr.mxu0 0.0
    %2045 = vmatpush1.msra.mxu0 0.0
    %2046 = vmatprep.subr.mxu0 0.0
    %2047 = vmatpush1.msra.mxu0 0.0
    %2048 = vmatprep.subr.mxu0 0.0
    %2049 = vmatpush1.msra.mxu0 0.0
    %2050 = vmatprep.subr.mxu0 0.0
    %2051 = vmatpush1.msra.mxu0 0.0
    %2052 = vmatprep.subr.mxu0 0.0
    %2053 = vmatpush1.msra.mxu0 0.0
    %2054 = vmatprep.subr.mxu0 0.0
    %2055 = vmatpush1.msra.mxu0 0.0
    %2056 = vmatprep.subr.mxu0 0.0
    %2057 = vmatpush1.msra.mxu0 0.0
    %2058 = vmatprep.subr.mxu0 0.0
    %2059 = vmatpush1.msra.mxu0 0.0
    %2060 = vmatprep.subr.mxu0 0.0
    %2061 = vmatpush1.msra.mxu0 0.0
    %2062 = vmatprep.subr.mxu0 0.0
    %2063 = vmatpush1.msra.mxu0 0.0
    %2064 = vmatprep.subr.mxu0 0.0
    %2065 = vmatpush1.msra.mxu0 0.0
    %2066 = vmatprep.subr.mxu0 0.0
    %2067 = vmatpush1.msra.mxu0 0.0
    %2068 = vmatprep.subr.mxu0 0.0
    %2069 = vmatpush1.msra.mxu0 0.0
    %2070 = vmatprep.subr.mxu0 0.0
    %2071 = vmatpush1.msra.mxu0 0.0
    %2072 = vmatprep.mubr.f32.mxu0 0.0
    %2073 = vmatmul.mubr.f32.gmra.mrb[0].mxu0 %v2006
    %v2074 = vpop.f32.mrb[0].mxu0
    %v2075 = vadd.f32 0.0, %v2074
    %v2076 = vpop.f32.mrb[0].mxu0
    %2077 = vdwg.mxu0
    %v2078 = vadd.f32 %v2002, %v2075
    %v2079 = vmul.f32 %v2078, %v197
    %v2080 = vtanh.pop %v2079
    %v2081 = vmul.f32 %v2080, %v197
    %v2082 = vadd.f32 %v2081, %v198
    %v2083 = vmul.f32 %v2082, %v1995
    %2085 = vrot.lane.b32.xlu0 %v2082, 64
    %v2086 = vpop.permute.xlu0 %2085
    %v2088 = vmul.f32 %v2082, %v2086
    %2090 = vrot.lane.b32.xlu0 %v2088, 32
    %v2091 = vpop.permute.xlu0 %2090
    %v2093 = vadd.f32 %v2083, %v2091
    %v2094 = vtanh.pop %v2093
    %2096 = vrot.lane.b32.xlu0 %v2094, 64
    %v2097 = vpop.permute.xlu0 %2096
    %v2099 = vmul.f32 %v2082, %v2097
    %2101 = vrot.lane.b32.xlu0 %v2099, 32
    %v2102 = vpop.permute.xlu0 %2101
    %2104 = vst.msk [vmem:[#allocation4 + $0x8] sm:$0xff] %vm359, %v2102
    %v2105 = vld [vmem:[#allocation4] sm:$0xff]
    %v2106 = vld [vmem:[#allocation4 + $0x8] sm:$0xff]
    %v2107 = vmax.f32 %v2105, 0.0
    %v2108 = vmax.f32 %v2106, 0.0
    %v2109 = vld [vmem:[#allocation14] sm:$0xff]
    %v2110 = vld [vmem:[#allocation14 + $0x8] sm:$0xff]
    %v2111 = vld [vmem:[#allocation14 + $0x10] sm:$0xff]
    %v2112 = vld [vmem:[#allocation14 + $0x18] sm:$0xff]
    %v2113 = vld [vmem:[#allocation14 + $0x20] sm:$0xff]
    %v2114 = vld [vmem:[#allocation14 + $0x28] sm:$0xff]
    %v2115 = vld [vmem:[#allocation14 + $0x30] sm:$0xff]
    %v2116 = vld [vmem:[#allocation14 + $0x38] sm:$0xff]
    %v2117 = vld [vmem:[#allocation16] sm:$0x3]
    %v2119 = vlaneseq
    %v2120 = vshrl.u32 %v2119, 7
    %v2121 = vsub.s32 0, %v2120
    %v2122 = vrot.slane %v2117, %v2121
    %v2123 = vlaneseq
    %v2124 = vshrl.u32 %v2123, 7
    %v2125 = vsub.s32 1, %v2124
    %v2126 = vrot.slane %v2117, %v2125
    %v2130 = vsel %vm359, %v2107, 0
    %v2133 = vsel %vm359, %v2108, 0
    %2135 = vmatprep.subr.mxu0 %v2110
    %2136 = vmatpush1.msra.mxu0 %v2109
    %2137 = vmatprep.subr.mxu0 %v2112
    %2138 = vmatpush1.msra.mxu0 %v2111
    %2139 = vmatprep.subr.mxu0 %v2114
    %2140 = vmatpush1.msra.mxu0 %v2113
    %2141 = vmatprep.subr.mxu0 %v2116
    %2142 = vmatpush1.msra.mxu0 %v2115
    %2143 = vmatprep.subr.mxu0 0.0
    %2144 = vmatpush1.msra.mxu0 0.0
    %2145 = vmatprep.subr.mxu0 0.0
    %2146 = vmatpush1.msra.mxu0 0.0
    %2147 = vmatprep.subr.mxu0 0.0
    %2148 = vmatpush1.msra.mxu0 0.0
    %2149 = vmatprep.subr.mxu0 0.0
    %2150 = vmatpush1.msra.mxu0 0.0
    %2151 = vmatprep.subr.mxu0 0.0
    %2152 = vmatpush1.msra.mxu0 0.0
    %2153 = vmatprep.subr.mxu0 0.0
    %2154 = vmatpush1.msra.mxu0 0.0
    %2155 = vmatprep.subr.mxu0 0.0
    %2156 = vmatpush1.msra.mxu0 0.0
    %2157 = vmatprep.subr.mxu0 0.0
    %2158 = vmatpush1.msra.mxu0 0.0
    %2159 = vmatprep.subr.mxu0 0.0
    %2160 = vmatpush1.msra.mxu0 0.0
    %2161 = vmatprep.subr.mxu0 0.0
    %2162 = vmatpush1.msra.mxu0 0.0
    %2163 = vmatprep.subr.mxu0 0.0
    %2164 = vmatpush1.msra.mxu0 0.0
    %2165 = vmatprep.subr.mxu0 0.0
    %2166 = vmatpush1.msra.mxu0 0.0
    %2167 = vmatprep.subr.mxu0 0.0
    %2168 = vmatpush1.msra.mxu0 0.0
    %2169 = vmatprep.subr.mxu0 0.0
    %2170 = vmatpush1.msra.mxu0 0.0
    %2171 = vmatprep.subr.mxu0 0.0
    %2172 = vmatpush1.msra.mxu0 0.0
    %2173 = vmatprep.subr.mxu0 0.0
    %2174 = vmatpush1.msra.mxu0 0.0
    %2175 = vmatprep.subr.mxu0 0.0
    %2176 = vmatpush1.msra.mxu0 0.0
    %2177 = vmatprep.subr.mxu0 0.0
    %2178 = vmatpush1.msra.mxu0 0.0
    %2179 = vmatprep.subr.mxu0 0.0
    %2180 = vmatpush1.msra.mxu0 0.0
    %2181 = vmatprep.subr.mxu0 0.0
    %2182 = vmatpush1.msra.mxu0 0.0
    %2183 = vmatprep.subr.mxu0 0.0
    %2184 = vmatpush1.msra.mxu0 0.0
    %2185 = vmatprep.subr.mxu0 0.0
    %2186 = vmatpush1.msra.mxu0 0.0
    %2187 = vmatprep.subr.mxu0 0.0
    %2188 = vmatpush1.msra.mxu0 0.0
    %2189 = vmatprep.subr.mxu0 0.0
    %2190 = vmatpush1.msra.mxu0 0.0
    %2191 = vmatprep.subr.mxu0 0.0
    %2192 = vmatpush1.msra.mxu0 0.0
    %2193 = vmatprep.subr.mxu0 0.0
    %2194 = vmatpush1.msra.mxu0 0.0
    %2195 = vmatprep.subr.mxu0 0.0
    %2196 = vmatpush1.msra.mxu0 0.0
    %2197 = vmatprep.subr.mxu0 0.0
    %2198 = vmatpush1.msra.mxu0 0.0
    %2199 = vmatprep.mubr.f32.mxu0 0.0
    %2200 = vmatmul.mubr.f32.gmra.mrb[0].mxu0 %v2130
    %v2201 = vpop.f32.mrb[0].mxu0
    %v2202 = vadd.f32 %v2122, %v2201
    %v2203 = vpop.f32.mrb[0].mxu0
    %v2204 = vadd.f32 %v2126, %v2203
    %2205 = vmatprep.mubr.f32.mxu0 0.0
    %2206 = vmatmul.mubr.f32.gmra.mrb[0].mxu0 %v2133
    %v2207 = vpop.f32.mrb[0].mxu0
    %v2208 = vadd.f32 %v2122, %v2207
    %v2209 = vpop.f32.mrb[0].mxu0
    %v2210 = vadd.f32 %v2126, %v2209
    %2211 = vdwg.mxu0
    %v2212 = vmax.f32 %v2202, 0.0
    %v2213 = vmax.f32 %v2204, 0.0
    %v2214 = vmax.f32 %v2208, 0.0
    %v2215 = vmax.f32 %v2210, 0.0
    %v2216 = vld [vmem:[#allocation17] sm:$0xff]
    %v2217 = vld [vmem:[#allocation17 + $0x8] sm:$0xff]
    %v2218 = vld [vmem:[#allocation17 + $0x10] sm:$0xff]
    %v2219 = vld [vmem:[#allocation17 + $0x18] sm:$0xff]
    %v2220 = vld [vmem:[#allocation17 + $0x20] sm:$0xff]
    %v2221 = vld [vmem:[#allocation17 + $0x28] sm:$0xff]
    %v2222 = vld [vmem:[#allocation17 + $0x30] sm:$0xff]
    %v2223 = vld [vmem:[#allocation17 + $0x38] sm:$0xff]
    %v2224 = vld [vmem:[#allocation17 + $0x40] sm:$0xff]
    %v2225 = vld [vmem:[#allocation17 + $0x48] sm:$0xff]
    %v2226 = vld [vmem:[#allocation17 + $0x50] sm:$0xff]
    %v2227 = vld [vmem:[#allocation17 + $0x58] sm:$0xff]
    %v2228 = vld [vmem:[#allocation17 + $0x60] sm:$0xff]
    %v2229 = vld [vmem:[#allocation17 + $0x68] sm:$0xff]
    %v2230 = vld [vmem:[#allocation17 + $0x70] sm:$0xff]
    %v2231 = vld [vmem:[#allocation17 + $0x78] sm:$0xff]
    %v2232 = vld [vmem:[#allocation17 + $0x80] sm:$0xff]
    %v2233 = vld [vmem:[#allocation17 + $0x88] sm:$0xff]
    %v2234 = vld [vmem:[#allocation17 + $0x90] sm:$0xff]
    %v2235 = vld [vmem:[#allocation17 + $0x98] sm:$0xff]
    %v2236 = vld [vmem:[#allocation17 + $0xa0] sm:$0xff]
    %v2237 = vld [vmem:[#allocation17 + $0xa8] sm:$0xff]
    %v2238 = vld [vmem:[#allocation17 + $0xb0] sm:$0xff]
    %v2239 = vld [vmem:[#allocation17 + $0xb8] sm:$0xff]
    %v2240 = vld [vmem:[#allocation17 + $0xc0] sm:$0xff]
    %v2241 = vld [vmem:[#allocation17 + $0xc8] sm:$0xff]
    %v2242 = vld [vmem:[#allocation17 + $0xd0] sm:$0xff]
    %v2243 = vld [vmem:[#allocation17 + $0xd8] sm:$0xff]
    %v2244 = vld [vmem:[#allocation17 + $0xe0] sm:$0xff]
    %v2245 = vld [vmem:[#allocation17 + $0xe8] sm:$0xff]
    %v2246 = vld [vmem:[#allocation17 + $0xf0] sm:$0xff]
    %v2247 = vld [vmem:[#allocation17 + $0xf8] sm:$0xff]
    %v2248 = vld [vmem:[#allocation17 + $0x100] sm:$0xff]
    %v2249 = vld [vmem:[#allocation17 + $0x108] sm:$0xff]
    %v2250 = vld [vmem:[#allocation17 + $0x110] sm:$0xff]
    %v2251 = vld [vmem:[#allocation17 + $0x118] sm:$0xff]
    %v2252 = vld [vmem:[#allocation17 + $0x120] sm:$0xff]
    %v2253 = vld [vmem:[#allocation17 + $0x128] sm:$0xff]
    %v2254 = vld [vmem:[#allocation17 + $0x130] sm:$0xff]
    %v2255 = vld [vmem:[#allocation17 + $0x138] sm:$0xff]
    %v2256 = vld [vmem:[#allocation17 + $0x140] sm:$0xff]
    %v2257 = vld [vmem:[#allocation17 + $0x148] sm:$0xff]
    %v2258 = vld [vmem:[#allocation17 + $0x150] sm:$0xff]
    %v2259 = vld [vmem:[#allocation17 + $0x158] sm:$0xff]
    %v2260 = vld [vmem:[#allocation17 + $0x160] sm:$0xff]
    %v2261 = vld [vmem:[#allocation17 + $0x168] sm:$0xff]
    %v2262 = vld [vmem:[#allocation17 + $0x170] sm:$0xff]
    %v2263 = vld [vmem:[#allocation17 + $0x178] sm:$0xff]
    %v2264 = vld [vmem:[#allocation17 + $0x180] sm:$0xff]
    %v2265 = vld [vmem:[#allocation17 + $0x188] sm:$0xff]
    %v2266 = vld [vmem:[#allocation17 + $0x190] sm:$0xff]
    %v2267 = vld [vmem:[#allocation17 + $0x198] sm:$0xff]
    %v2268 = vld [vmem:[#allocation17 + $0x1a0] sm:$0xff]
    %v2269 = vld [vmem:[#allocation17 + $0x1a8] sm:$0xff]
    %v2270 = vld [vmem:[#allocation17 + $0x1b0] sm:$0xff]
    %v2271 = vld [vmem:[#allocation17 + $0x1b8] sm:$0xff]
    %v2272 = vld [vmem:[#allocation17 + $0x1c0] sm:$0xff]
    %v2273 = vld [vmem:[#allocation17 + $0x1c8] sm:$0xff]
    %v2274 = vld [vmem:[#allocation17 + $0x1d0] sm:$0xff]
    %v2275 = vld [vmem:[#allocation17 + $0x1d8] sm:$0xff]
    %v2276 = vld [vmem:[#allocation17 + $0x1e0] sm:$0xff]
    %v2277 = vld [vmem:[#allocation17 + $0x1e8] sm:$0xff]
    %v2278 = vld [vmem:[#allocation17 + $0x1f0] sm:$0xff]
    %v2279 = vld [vmem:[#allocation17 + $0x1f8] sm:$0xff]
    %v2280 = vld [vmem:[#allocation19] sm:$0x3]
    %v2282 = vlaneseq
    %v2283 = vshrl.u32 %v2282, 7
    %v2284 = vsub.s32 0, %v2283
    %v2285 = vrot.slane %v2280, %v2284
    %v2286 = vlaneseq
    %v2287 = vshrl.u32 %v2286, 7
    %v2288 = vsub.s32 1, %v2287
    %v2289 = vrot.slane %v2280, %v2288
    %2292 = vmatprep.subr.mxu0 %v2217
    %2293 = vmatpush1.msra.mxu0 %v2216
    %2294 = vmatprep.subr.mxu0 %v2219
    %2295 = vmatpush1.msra.mxu0 %v2218
    %2296 = vmatprep.subr.mxu0 %v2221
    %2297 = vmatpush1.msra.mxu0 %v2220
    %2298 = vmatprep.subr.mxu0 %v2223
    %2299 = vmatpush1.msra.mxu0 %v2222
    %2300 = vmatprep.subr.mxu0 %v2225
    %2301 = vmatpush1.msra.mxu0 %v2224
    %2302 = vmatprep.subr.mxu0 %v2227
    %2303 = vmatpush1.msra.mxu0 %v2226
    %2304 = vmatprep.subr.mxu0 %v2229
    %2305 = vmatpush1.msra.mxu0 %v2228
    %2306 = vmatprep.subr.mxu0 %v2231
    %2307 = vmatpush1.msra.mxu0 %v2230
    %2308 = vmatprep.subr.mxu0 %v2233
    %2309 = vmatpush1.msra.mxu0 %v2232
    %2310 = vmatprep.subr.mxu0 %v2235
    %2311 = vmatpush1.msra.mxu0 %v2234
    %2312 = vmatprep.subr.mxu0 %v2237
    %2313 = vmatpush1.msra.mxu0 %v2236
    %2314 = vmatprep.subr.mxu0 %v2239
    %2315 = vmatpush1.msra.mxu0 %v2238
    %2316 = vmatprep.subr.mxu0 %v2241
    %2317 = vmatpush1.msra.mxu0 %v2240
    %2318 = vmatprep.subr.mxu0 %v2243
    %2319 = vmatpush1.msra.mxu0 %v2242
    %2320 = vmatprep.subr.mxu0 %v2245
    %2321 = vmatpush1.msra.mxu0 %v2244
    %2322 = vmatprep.subr.mxu0 %v2247
    %2323 = vmatpush1.msra.mxu0 %v2246
    %2324 = vmatprep.subr.mxu0 %v2249
    %2325 = vmatpush1.msra.mxu0 %v2248
    %2326 = vmatprep.subr.mxu0 %v2251
    %2327 = vmatpush1.msra.mxu0 %v2250
    %2328 = vmatprep.subr.mxu0 %v2253
    %2329 = vmatpush1.msra.mxu0 %v2252
    %2330 = vmatprep.subr.mxu0 %v2255
    %2331 = vmatpush1.msra.mxu0 %v2254
    %2332 = vmatprep.subr.mxu0 %v2257
    %2333 = vmatpush1.msra.mxu0 %v2256
    %2334 = vmatprep.subr.mxu0 %v2259
    %2335 = vmatpush1.msra.mxu0 %v2258
    %2336 = vmatprep.subr.mxu0 %v2261
    %2337 = vmatpush1.msra.mxu0 %v2260
    %2338 = vmatprep.subr.mxu0 %v2263
    %2339 = vmatpush1.msra.mxu0 %v2262
    %2340 = vmatprep.subr.mxu0 %v2265
    %2341 = vmatpush1.msra.mxu0 %v2264
    %2342 = vmatprep.subr.mxu0 %v2267
    %2343 = vmatpush1.msra.mxu0 %v2266
    %2344 = vmatprep.subr.mxu0 %v2269
    %2345 = vmatpush1.msra.mxu0 %v2268
    %2346 = vmatprep.subr.mxu0 %v2271
    %2347 = vmatpush1.msra.mxu0 %v2270
    %2348 = vmatprep.subr.mxu0 %v2273
    %2349 = vmatpush1.msra.mxu0 %v2272
    %2350 = vmatprep.subr.mxu0 %v2275
    %2351 = vmatpush1.msra.mxu0 %v2274
    %2352 = vmatprep.subr.mxu0 %v2277
    %2353 = vmatpush1.msra.mxu0 %v2276
    %2354 = vmatprep.subr.mxu0 %v2279
    %2355 = vmatpush1.msra.mxu0 %v2278
    %2356 = vmatprep.mubr.f32.mxu0 %v2213
    %2357 = vmatmul.mubr.f32.gmra.mrb[0].mxu0 %v2212
    %v2358 = vpop.f32.mrb[0].mxu0
    %v2359 = vadd.f32 %v2285, %v2358
    %v2360 = vpop.f32.mrb[0].mxu0
    %v2361 = vadd.f32 %v2289, %v2360
    %2362 = vmatprep.mubr.f32.mxu0 %v2215
    %2363 = vmatmul.mubr.f32.gmra.mrb[0].mxu0 %v2214
    %v2364 = vpop.f32.mrb[0].mxu0
    %v2365 = vadd.f32 %v2285, %v2364
    %v2366 = vpop.f32.mrb[0].mxu0
    %v2367 = vadd.f32 %v2289, %v2366
    %2368 = vdwg.mxu0
    %v2369 = vmax.f32 %v2359, 0.0
    %v2370 = vmax.f32 %v2361, 0.0
    %v2371 = vmax.f32 %v2365, 0.0
    %v2372 = vmax.f32 %v2367, 0.0
    %v2373 = vld [vmem:[#allocation20] sm:$0xff]
    %v2374 = vld [vmem:[#allocation20 + $0x8] sm:$0xff]
    %v2375 = vld [vmem:[#allocation20 + $0x10] sm:$0xff]
    %v2376 = vld [vmem:[#allocation20 + $0x18] sm:$0xff]
    %v2377 = vld [vmem:[#allocation20 + $0x20] sm:$0xff]
    %v2378 = vld [vmem:[#allocation20 + $0x28] sm:$0xff]
    %v2379 = vld [vmem:[#allocation20 + $0x30] sm:$0xff]
    %v2380 = vld [vmem:[#allocation20 + $0x38] sm:$0xff]
    %v2381 = vld [vmem:[#allocation20 + $0x40] sm:$0xff]
    %v2382 = vld [vmem:[#allocation20 + $0x48] sm:$0xff]
    %v2383 = vld [vmem:[#allocation20 + $0x50] sm:$0xff]
    %v2384 = vld [vmem:[#allocation20 + $0x58] sm:$0xff]
    %v2385 = vld [vmem:[#allocation20 + $0x60] sm:$0xff]
    %v2386 = vld [vmem:[#allocation20 + $0x68] sm:$0xff]
    %v2387 = vld [vmem:[#allocation20 + $0x70] sm:$0xff]
    %v2388 = vld [vmem:[#allocation20 + $0x78] sm:$0xff]
    %v2389 = vld [vmem:[#allocation20 + $0x80] sm:$0xff]
    %v2390 = vld [vmem:[#allocation20 + $0x88] sm:$0xff]
    %v2391 = vld [vmem:[#allocation20 + $0x90] sm:$0xff]
    %v2392 = vld [vmem:[#allocation20 + $0x98] sm:$0xff]
    %v2393 = vld [vmem:[#allocation20 + $0xa0] sm:$0xff]
    %v2394 = vld [vmem:[#allocation20 + $0xa8] sm:$0xff]
    %v2395 = vld [vmem:[#allocation20 + $0xb0] sm:$0xff]
    %v2396 = vld [vmem:[#allocation20 + $0xb8] sm:$0xff]
    %v2397 = vld [vmem:[#allocation20 + $0xc0] sm:$0xff]
    %v2398 = vld [vmem:[#allocation20 + $0xc8] sm:$0xff]
    %v2399 = vld [vmem:[#allocation20 + $0xd0] sm:$0xff]
    %v2400 = vld [vmem:[#allocation20 + $0xd8] sm:$0xff]
    %v2401 = vld [vmem:[#allocation20 + $0xe0] sm:$0xff]
    %v2402 = vld [vmem:[#allocation20 + $0xe8] sm:$0xff]
    %v2403 = vld [vmem:[#allocation20 + $0xf0] sm:$0xff]
    %v2404 = vld [vmem:[#allocation20 + $0xf8] sm:$0xff]
    %v2405 = vld [vmem:[#allocation22] sm:$0x1]
    %v2407 = vlaneseq
    %v2408 = vshrl.u32 %v2407, 7
    %v2409 = vsub.s32 0, %v2408
    %v2410 = vrot.slane %v2405, %v2409
    %2412 = vmatprep.subr.mxu0 0.0
    %2413 = vmatpush1.msra.mxu0 %v2373
    %2414 = vmatprep.subr.mxu0 0.0
    %2415 = vmatpush1.msra.mxu0 %v2374
    %2416 = vmatprep.subr.mxu0 0.0
    %2417 = vmatpush1.msra.mxu0 %v2375
    %2418 = vmatprep.subr.mxu0 0.0
    %2419 = vmatpush1.msra.mxu0 %v2376
    %2420 = vmatprep.subr.mxu0 0.0
    %2421 = vmatpush1.msra.mxu0 %v2377
    %2422 = vmatprep.subr.mxu0 0.0
    %2423 = vmatpush1.msra.mxu0 %v2378
    %2424 = vmatprep.subr.mxu0 0.0
    %2425 = vmatpush1.msra.mxu0 %v2379
    %2426 = vmatprep.subr.mxu0 0.0
    %2427 = vmatpush1.msra.mxu0 %v2380
    %2428 = vmatprep.subr.mxu0 0.0
    %2429 = vmatpush1.msra.mxu0 %v2381
    %2430 = vmatprep.subr.mxu0 0.0
    %2431 = vmatpush1.msra.mxu0 %v2382
    %2432 = vmatprep.subr.mxu0 0.0
    %2433 = vmatpush1.msra.mxu0 %v2383
    %2434 = vmatprep.subr.mxu0 0.0
    %2435 = vmatpush1.msra.mxu0 %v2384
    %2436 = vmatprep.subr.mxu0 0.0
    %2437 = vmatpush1.msra.mxu0 %v2385
    %2438 = vmatprep.subr.mxu0 0.0
    %2439 = vmatpush1.msra.mxu0 %v2386
    %2440 = vmatprep.subr.mxu0 0.0
    %2441 = vmatpush1.msra.mxu0 %v2387
    %2442 = vmatprep.subr.mxu0 0.0
    %2443 = vmatpush1.msra.mxu0 %v2388
    %2444 = vmatprep.subr.mxu0 0.0
    %2445 = vmatpush1.msra.mxu0 %v2389
    %2446 = vmatprep.subr.mxu0 0.0
    %2447 = vmatpush1.msra.mxu0 %v2390
    %2448 = vmatprep.subr.mxu0 0.0
    %2449 = vmatpush1.msra.mxu0 %v2391
    %2450 = vmatprep.subr.mxu0 0.0
    %2451 = vmatpush1.msra.mxu0 %v2392
    %2452 = vmatprep.subr.mxu0 0.0
    %2453 = vmatpush1.msra.mxu0 %v2393
    %2454 = vmatprep.subr.mxu0 0.0
    %2455 = vmatpush1.msra.mxu0 %v2394
    %2456 = vmatprep.subr.mxu0 0.0
    %2457 = vmatpush1.msra.mxu0 %v2395
    %2458 = vmatprep.subr.mxu0 0.0
    %2459 = vmatpush1.msra.mxu0 %v2396
    %2460 = vmatprep.subr.mxu0 0.0
    %2461 = vmatpush1.msra.mxu0 %v2397
    %2462 = vmatprep.subr.mxu0 0.0
    %2463 = vmatpush1.msra.mxu0 %v2398
    %2464 = vmatprep.subr.mxu0 0.0
    %2465 = vmatpush1.msra.mxu0 %v2399
    %2466 = vmatprep.subr.mxu0 0.0
    %2467 = vmatpush1.msra.mxu0 %v2400
    %2468 = vmatprep.subr.mxu0 0.0
    %2469 = vmatpush1.msra.mxu0 %v2401
    %2470 = vmatprep.subr.mxu0 0.0
    %2471 = vmatpush1.msra.mxu0 %v2402
    %2472 = vmatprep.subr.mxu0 0.0
    %2473 = vmatpush1.msra.mxu0 %v2403
    %2474 = vmatprep.subr.mxu0 0.0
    %2475 = vmatpush1.msra.mxu0 %v2404
    %2476 = vmatprep.mubr.f32.mxu0 %v2370
    %2477 = vmatmul.mubr.f32.gmra.mrb[0].mxu0 %v2369
    %v2478 = vpop.f32.mrb[0].mxu0
    %v2479 = vadd.f32 %v2410, %v2478
    %v2480 = vpop.f32.mrb[0].mxu0
    %2481 = vmatprep.mubr.f32.mxu0 %v2372
    %2482 = vmatmul.mubr.f32.gmra.mrb[0].mxu0 %v2371
    %v2483 = vpop.f32.mrb[0].mxu0
    %v2484 = vadd.f32 %v2410, %v2483
    %v2485 = vpop.f32.mrb[0].mxu0
    %2486 = vdwg.mxu0
    %v2487 = vmax.f32 %v2479, 0.0
    %v2488 = vmax.f32 %v2484, 0.0
    %v2489 = vld [vmem:[%s13] sm:$0xff]
    %v2490 = vld [vmem:[%s13 + $0x8] sm:$0xff]
    %v2491 = vld [vmem:[%s13 + $0x10] sm:$0xff]
    %v2492 = vld [vmem:[%s13 + $0x18] sm:$0xff]
    %v2493 = vld [vmem:[%s13 + $0x20] sm:$0xff]
    %v2494 = vld [vmem:[%s13 + $0x28] sm:$0xff]
    %v2495 = vld [vmem:[%s13 + $0x30] sm:$0xff]
    %v2496 = vld [vmem:[%s13 + $0x38] sm:$0xff]
    %v2497 = vld [vmem:[%s13 + $0x40] sm:$0xff]
    %v2498 = vld [vmem:[%s13 + $0x48] sm:$0xff]
    %v2499 = vld [vmem:[%s13 + $0x50] sm:$0xff]
    %v2500 = vld [vmem:[%s13 + $0x58] sm:$0xff]
    %v2501 = vld [vmem:[%s13 + $0x60] sm:$0xff]
    %v2502 = vld [vmem:[%s13 + $0x68] sm:$0xff]
    %v2503 = vld [vmem:[%s13 + $0x70] sm:$0xff]
    %v2504 = vld [vmem:[%s13 + $0x78] sm:$0xff]
    %v2505 = vld [vmem:[%s14] sm:$0x1]
    %v2507 = vlaneseq
    %v2508 = vshrl.u32 %v2507, 7
    %v2509 = vsub.s32 0, %v2508
    %v2510 = vrot.slane %v2505, %v2509
    %2512 = vmatprep.subr.mxu0 0.0
    %2513 = vmatpush1.msra.mxu0 %v2489
    %2514 = vmatprep.subr.mxu0 0.0
    %2515 = vmatpush1.msra.mxu0 %v2490
    %2516 = vmatprep.subr.mxu0 0.0
    %2517 = vmatpush1.msra.mxu0 %v2491
    %2518 = vmatprep.subr.mxu0 0.0
    %2519 = vmatpush1.msra.mxu0 %v2492
    %2520 = vmatprep.subr.mxu0 0.0
    %2521 = vmatpush1.msra.mxu0 %v2493
    %2522 = vmatprep.subr.mxu0 0.0
    %2523 = vmatpush1.msra.mxu0 %v2494
    %2524 = vmatprep.subr.mxu0 0.0
    %2525 = vmatpush1.msra.mxu0 %v2495
    %2526 = vmatprep.subr.mxu0 0.0
    %2527 = vmatpush1.msra.mxu0 %v2496
    %2528 = vmatprep.subr.mxu0 0.0
    %2529 = vmatpush1.msra.mxu0 %v2497
    %2530 = vmatprep.subr.mxu0 0.0
    %2531 = vmatpush1.msra.mxu0 %v2498
    %2532 = vmatprep.subr.mxu0 0.0
    %2533 = vmatpush1.msra.mxu0 %v2499
    %2534 = vmatprep.subr.mxu0 0.0
    %2535 = vmatpush1.msra.mxu0 %v2500
    %2536 = vmatprep.subr.mxu0 0.0
    %2537 = vmatpush1.msra.mxu0 %v2501
    %2538 = vmatprep.subr.mxu0 0.0
    %2539 = vmatpush1.msra.mxu0 %v2502
    %2540 = vmatprep.subr.mxu0 0.0
    %2541 = vmatpush1.msra.mxu0 %v2503
    %2542 = vmatprep.subr.mxu0 0.0
    %2543 = vmatpush1.msra.mxu0 %v2504
    %2544 = vmatprep.subr.mxu0 0.0
    %2545 = vmatpush1.msra.mxu0 0.0
    %2546 = vmatprep.subr.mxu0 0.0
    %2547 = vmatpush1.msra.mxu0 0.0
    %2548 = vmatprep.subr.mxu0 0.0
    %2549 = vmatpush1.msra.mxu0 0.0
    %2550 = vmatprep.subr.mxu0 0.0
    %2551 = vmatpush1.msra.mxu0 0.0
    %2552 = vmatprep.subr.mxu0 0.0
    %2553 = vmatpush1.msra.mxu0 0.0
    %2554 = vmatprep.subr.mxu0 0.0
    %2555 = vmatpush1.msra.mxu0 0.0
    %2556 = vmatprep.subr.mxu0 0.0
    %2557 = vmatpush1.msra.mxu0 0.0
    %2558 = vmatprep.subr.mxu0 0.0
    %2559 = vmatpush1.msra.mxu0 0.0
    %2560 = vmatprep.subr.mxu0 0.0
    %2561 = vmatpush1.msra.mxu0 0.0
    %2562 = vmatprep.subr.mxu0 0.0
    %2563 = vmatpush1.msra.mxu0 0.0
    %2564 = vmatprep.subr.mxu0 0.0
    %2565 = vmatpush1.msra.mxu0 0.0
    %2566 = vmatprep.subr.mxu0 0.0
    %2567 = vmatpush1.msra.mxu0 0.0
    %2568 = vmatprep.subr.mxu0 0.0
    %2569 = vmatpush1.msra.mxu0 0.0
    %2570 = vmatprep.subr.mxu0 0.0
    %2571 = vmatpush1.msra.mxu0 0.0
    %2572 = vmatprep.subr.mxu0 0.0
    %2573 = vmatpush1.msra.mxu0 0.0
    %2574 = vmatprep.subr.mxu0 0.0
    %2575 = vmatpush1.msra.mxu0 0.0
    %2576 = vmatprep.mubr.f32.mxu0 0.0
    %2577 = vmatmul.mubr.f32.gmra.mrb[0].mxu0 %v2487
    %v2578 = vpop.f32.mrb[0].mxu0
    %v2579 = vadd.f32 %v2510, %v2578
    %v2580 = vpop.f32.mrb[0].mxu0
    %2581 = vmatprep.mubr.f32.mxu0 0.0
    %2582 = vmatmul.mubr.f32.gmra.mrb[0].mxu0 %v2488
    %v2583 = vpop.f32.mrb[0].mxu0
    %v2584 = vadd.f32 %v2510, %v2583
    %v2585 = vpop.f32.mrb[0].mxu0
    %2586 = vdwg.mxu0
    %2587 = vst [vmem:[#allocation23] sm:$0xff] %v2579
    %2588 = vst [vmem:[#allocation23 + $0x8] sm:$0xff] %v2584
    // Predicated region
    $region106: #{tpu_custom_call.1} parent=1 // pred_check
      _
    $region107: #{tpu_custom_call.1} parent=1 // pred_check_branch
      %2590 = sbr.rel (0) target = $region109
    $region108: #{tpu_custom_call.1} parent=1 // pred_region
      %s2592 = ssub.s32 256, 256
      %2593 = vsyncadd [#allocation7], %s2592
      %s2594 = sshll.u32 [#allocation23], 4
      %s2595 = int_to_ptr.vmem [resolvable:$true] %s2594
      %2600 = dma.vmem_to_hbm [thread:$0]  %s2595, 256, %s15, [#allocation7], 128, 128, 8
    $region109: #{tpu_custom_call.1} parent=1 // pred_fallthru
      _
    // Predicated region
    $region110: #{tpu_custom_call.1} parent=1 // pred_check
      _
    $region111: #{tpu_custom_call.1} parent=1 // pred_check_branch
      %2602 = sbr.rel (0) target = $region113
    $region112: #{tpu_custom_call.1} parent=1 // pred_region
      %2603 = dma.done [#allocation7], 256
    $region113: #{tpu_custom_call.1} parent=1 // pred_fallthru
      _
    %2604 = vsyncpa [#allocation6], 1
    %2605 = vsyncpa [#allocation9], 1
    %2606 = vsyncpa [#allocation12], 1
    %2607 = vsyncpa [#allocation15], 1
    %2608 = vsyncpa [#allocation18], 1
    %2609 = vsyncpa [#allocation21], 1
    %2610 = vsyncpa [#allocation7], 1

</llo_original>
